<compile_context>
chip_gen: v7x
topology: tpu7x:2x2x1
jax: 0.10.0
libtpu: 0.0.40
codegen_flags: <defaults>
</compile_context>

<pallas_src>
import jax
import jax.numpy as jnp
from jax.experimental import pallas as pl
from jax.experimental.pallas import tpu as pltpu

# ---------------- static model configuration (obs = (3, 8, 8), channel_scale=1) ----
OBS_C, OBS_H, OBS_W = 3, 8, 8
KS1, ST1 = (8, 4) if OBS_H > 9 else (4, 2)      # SmallImpalaCNN kernel/stride rules
KS2, ST2 = (4, 2) if OBS_W > 9 else (2, 1)
C1, C2 = 16, 32                                  # conv channels
HO1 = (OBS_H - KS1) // ST1 + 1
WO1 = (OBS_W - KS1) // ST1 + 1
HO2 = (HO1 - KS2) // ST2 + 1
WO2 = (WO1 - KS2) // ST2 + 1
NP1 = HO1 * WO1                                  # conv1 output pixels (9)
NP2 = HO2 * WO2                                  # conv2 output pixels (4)
IN_FEATS = C2 * NP2                              # fc in_features (PyTorch NCHW flatten)
HID = 256                                        # hidden_dim (module default)
ACT_DIM = 15                                     # discrete action count
AH = 128                                         # DiscreteActor hidden width
CH = 512                                         # critic hidden width
LN_EPS = 1e-5
# Set to jnp.bfloat16 on v6e/v7x for extra MXU throughput (keep activations f32;
# loosen the allclose tolerances vs. the f32 reference if you do).
COMPUTE_DTYPE = jnp.float32


def _pad128(n):
    return ((n + 127) // 128) * 128


K1 = OBS_C * KS1 * KS1                           # conv1 patch length
K1P = _pad128(K1)
C1P = _pad128(C1)
C2P = _pad128(C2)
K2 = KS2 * KS2 * C1P                             # conv2 fused contraction dim (512)
AP = _pad128(ACT_DIM)                            # padded action lanes
VP = 128                                         # padded critic output lanes


# ---------------------------------- kernel -----------------------------------------
def _mm(a, w):
    # weights are already pre-cast to COMPUTE_DTYPE in pack_params
    return jnp.dot(a.astype(w.dtype), w, preferred_element_type=jnp.float32)


def _layernorm(z):  # LayerNorm(elementwise_affine=False), biased variance, eps=1e-5
    m = jnp.mean(z, axis=-1, keepdims=True)
    v = jnp.mean((z - m) * (z - m), axis=-1, keepdims=True)
    return (z - m) * jax.lax.rsqrt(v + LN_EPS)


def agent_kernel(p1_ref, h0_ref, c0_ref,
                 wcv1_ref, bcv1_ref, wcv2_ref, bcv2_ref, wfc_ref, bfc_ref,
                 wlstm_ref, blstm_ref,
                 whead1_ref, bhead1_ref, wa2_ref, ba2_ref, wv2_ref, bv2_ref,
                 probs_ref, logp_ref, value_ref, hout_ref, cout_ref):
    B = h0_ref.shape[0]

    # ---- conv1 + ReLU: ONE (NP1*B, K1P) x (K1P, C1P) matmul (patches on sublanes) --
    y1 = jnp.maximum(_mm(p1_ref[...], wcv1_ref[...]) + bcv1_ref[...], 0.0)

    # ---- conv2 + ReLU: taps fused along K, output pixels stacked on sublanes -------
    rows = []
    for s in range(NP2):
        i2, j2 = s // WO2, s % WO2
        taps = []
        for di in range(KS2):
            for dj in range(KS2):
                r = (i2 * ST2 + di) * WO1 + (j2 * ST2 + dj)
                taps.append(y1[r * B:(r + 1) * B, :])
        rows.append(jnp.concatenate(taps, axis=-1))            # (B, K2)
    lhs2 = jnp.concatenate(rows, axis=0)                       # (NP2*B, K2)
    y2 = jnp.maximum(_mm(lhs2, wcv2_ref[...]) + bcv2_ref[...], 0.0)   # (NP2*B, C2P)

    # ---- flatten + fc + ReLU: ONE (B, NP2*C2P) x (NP2*C2P, HID) matmul -------------
    fc_lhs = jnp.concatenate([y2[s * B:(s + 1) * B, :] for s in range(NP2)], axis=-1)
    enc = jnp.maximum(_mm(fc_lhs, wfc_ref[...]) + bfc_ref[...], 0.0)  # (B, HID)

    # ---- LSTM cell (PyTorch gate order i,f,g,o): fused [w_ih; w_hh] matmul ---------
    gates = (_mm(jnp.concatenate([enc, h0_ref[...]], axis=-1), wlstm_ref[...])
             + blstm_ref[...])
    i_g = jax.nn.sigmoid(gates[:, 0 * HID:1 * HID])
    f_g = jax.nn.sigmoid(gates[:, 1 * HID:2 * HID])
    g_g = jnp.tanh(gates[:, 2 * HID:3 * HID])
    o_g = jax.nn.sigmoid(gates[:, 3 * HID:4 * HID])
    c_new = f_g * c0_ref[...] + i_g * g_g
    h_new = o_g * jnp.tanh(c_new)
    hout_ref[...] = h_new
    cout_ref[...] = c_new

    # ---- actor/critic first linears merged: ONE (B, HID) x (HID, AH+CH) matmul -----
    z = _mm(h_new, whead1_ref[...]) + bhead1_ref[...]
    a1 = jnp.maximum(_layernorm(z[:, :AH]), 0.0)
    v1 = jnp.maximum(_layernorm(z[:, AH:AH + CH]), 0.0)

    # ---- actor second linear + softmax (and log-probs) -----------------------------
    logits = _mm(a1, wa2_ref[...]) + ba2_ref[...]
    lane = jax.lax.broadcasted_iota(jnp.int32, logits.shape, 1)
    logits = jnp.where(lane < ACT_DIM, logits, -1e30)          # mask padded lanes
    m = jnp.max(logits, axis=-1, keepdims=True)
    e = jnp.exp(logits - m)
    se = jnp.sum(e, axis=-1, keepdims=True)
    probs_ref[...] = e * pl.reciprocal(se, approx=True)
    logp_ref[...] = (logits - m) - jnp.log(se)

    # ---- critic second linear -------------------------------------------------------
    value_ref[...] = _mm(v1, wv2_ref[...]) + bv2_ref[...]


# --------------------------------- wrapper -----------------------------------------
def impala_agent_forward(x, kernel_params, h0, c0):
    """One LSTMImpalaAgent.forward step. Returns (probs, logp, value, h_new, c_new)."""
    B = x.shape[0]

    # im2col for conv1 (pure layout): patches stacked on the SUBLANE axis, row = r*B+b
    pats = []
    for i in range(HO1):
        for j in range(WO1):
            pats.append(
                x[:, :, i * ST1:i * ST1 + KS1, j * ST1:j * ST1 + KS1].reshape(B, K1))
    p1 = jnp.concatenate(pats, axis=0)                         # (NP1*B, K1)
    p1 = jnp.pad(p1, ((0, 0), (0, K1P - K1)))                  # lane-pad patch dim

    args = (p1, h0, c0) + tuple(kernel_params)
    flops = 2 * B * (NP1 * K1P * C1P + NP2 * K2 * C2P + NP2 * C2P * HID
                     + 2 * HID * 4 * HID + HID * (AH + CH) + AH * AP + CH * VP)
    bytes_accessed = (sum(int(a.size) * a.dtype.itemsize for a in args)
                      + 4 * B * (2 * AP + VP + 2 * HID))

    vmem = pl.BlockSpec(memory_space=pltpu.MemorySpace.VMEM)
    probs_p, logp_p, value_p, h_new, c_new = pl.pallas_call(
        agent_kernel,
        out_shape=(jax.ShapeDtypeStruct((B, AP), jnp.float32),
                   jax.ShapeDtypeStruct((B, AP), jnp.float32),
                   jax.ShapeDtypeStruct((B, VP), jnp.float32),
                   jax.ShapeDtypeStruct((B, HID), jnp.float32),
                   jax.ShapeDtypeStruct((B, HID), jnp.float32)),
        in_specs=[vmem] * len(args),
        out_specs=(vmem, vmem, vmem, vmem, vmem),
        compiler_params=pltpu.CompilerParams(vmem_limit_bytes=32 * 1024 * 1024),
        cost_estimate=pl.CostEstimate(flops=int(flops),
                                      transcendentals=int(B * (5 * HID + 2 * AP)),
                                      bytes_accessed=int(bytes_accessed)),
    )(*args)
    return probs_p[:, :ACT_DIM], logp_p[:, :ACT_DIM], value_p[:, 0], h_new, c_new


def agent_act(x, kernel_params, h0, c0, deterministic=True, rng=None):
    probs, logp, value, h_new, c_new = impala_agent_forward(x, kernel_params, h0, c0)
    if deterministic:
        action = jnp.argmax(probs, axis=-1)
    else:
        action = jax.random.categorical(rng, logp, axis=-1)
    log_prob = jnp.take_along_axis(logp, action[:, None], axis=-1)[:, 0]
    return action, value, log_prob, (h_new, c_new)


# --------------------------- parameters & packing -----------------------------------
def init_params(key):
    ks = iter(jax.random.split(key, 24))

    def w(shape, fan_in):
        return jax.random.normal(next(ks), shape, jnp.float32) * (fan_in ** -0.5)

    def b(n):
        return jax.random.normal(next(ks), (n,), jnp.float32) * 0.05

    return dict(
        wconv1=w((C1, OBS_C, KS1, KS1), OBS_C * KS1 * KS1), bconv1=b(C1),
        wconv2=w((C2, C1, KS2, KS2), C1 * KS2 * KS2),       bconv2=b(C2),
        wfc=w((HID, IN_FEATS), IN_FEATS),                   bfc=b(HID),
        w_ih=w((4 * HID, HID), HID), b_ih=b(4 * HID),
        w_hh=w((4 * HID, HID), HID), b_hh=b(4 * HID),
        wa1=w((AH, HID), HID),       ba1=b(AH),
        wa2=w((ACT_DIM, AH), AH),    ba2=b(ACT_DIM),
        wcrit1=w((CH, HID), HID),    bcrit1=b(CH),
        wcrit2=w((1, CH), CH),       bcrit2=b(1),
    )


def pack_params(P):
    """PyTorch-layout params -> fused, pre-transposed, lane-padded, pre-cast operands."""
    wdt = COMPUTE_DTYPE

    def pad_bias(v, width):
        return jnp.pad(v, (0, width - v.shape[0])).reshape(1, width).astype(jnp.float32)

    wcv1 = jnp.pad(P['wconv1'].reshape(C1, K1).T,
                   ((0, K1P - K1), (0, C1P - C1))).astype(wdt)
    bcv1 = pad_bias(P['bconv1'], C1P)

    blocks = []
    for di in range(KS2):
        for dj in range(KS2):
            blk = P['wconv2'][:, :, di, dj].T                      # (C1, C2)
            blocks.append(jnp.pad(blk, ((0, C1P - C1), (0, C2P - C2))))
    wcv2 = jnp.concatenate(blocks, axis=0).astype(wdt)             # (K2, C2P)
    bcv2 = pad_bias(P['bconv2'], C2P)

    # fc weight reindexed from NCHW flatten (c2*S + s) to per-pixel channel blocks
    wfc_t = P['wfc'].T.reshape(C2, NP2, HID).transpose(1, 0, 2)
    wfc_t = jnp.pad(wfc_t, ((0, 0), (0, C2P - C2), (0, 0)))
    wfc = wfc_t.reshape(NP2 * C2P, HID).astype(wdt)
    bfc = P['bfc'].reshape(1, HID).astype(jnp.float32)

    # fused LSTM weight [w_ih; w_hh] -> (2*HID, 4*HID)
    wlstm = jnp.concatenate([P['w_ih'].T, P['w_hh'].T], axis=0).astype(wdt)
    blstm = (P['b_ih'] + P['b_hh']).reshape(1, 4 * HID).astype(jnp.float32)

    # merged actor/critic first linears -> (HID, AH+CH)
    whead1 = jnp.concatenate([P['wa1'].T, P['wcrit1'].T], axis=-1).astype(wdt)
    bhead1 = jnp.concatenate([P['ba1'], P['bcrit1']]).reshape(1, AH + CH).astype(jnp.float32)

    wa2 = jnp.pad(P['wa2'].T, ((0, 0), (0, AP - ACT_DIM))).astype(wdt)
    ba2 = pad_bias(P['ba2'], AP)
    wv2 = jnp.pad(P['wcrit2'].T, ((0, 0), (0, VP - 1))).astype(wdt)
    bv2 = pad_bias(P['bcrit2'], VP)

    return (wcv1, bcv1, wcv2, bcv2, wfc, bfc, wlstm, blstm,
            whead1, bhead1, wa2, ba2, wv2, bv2)


# ------------------------------ pure-JAX reference ----------------------------------
def ref_forward(x, P, h0, c0):
    HI = jax.lax.Precision.HIGHEST
    dn = ('NCHW', 'OIHW', 'NCHW')

    def mm(a, b):
        return jnp.dot(a, b, precision=HI)

    y1 = jax.nn.relu(jax.lax.conv_general_dilated(
        x, P['wconv1'], (ST1, ST1), 'VALID', dimension_numbers=dn, precision=HI)
        + P['bconv1'][None, :, None, None])
    y2 = jax.nn.relu(jax.lax.conv_general_dilated(
        y1, P['wconv2'], (ST2, ST2), 'VALID', dimension_numbers=dn, precision=HI)
        + P['bconv2'][None, :, None, None])
    flat = y2.reshape(x.shape[0], -1)
    enc = jax.nn.relu(mm(flat, P['wfc'].T) + P['bfc'])

    gates = mm(enc, P['w_ih'].T) + P['b_ih'] + mm(h0, P['w_hh'].T) + P['b_hh']
    i_g, f_g, g_g, o_g = jnp.split(gates, 4, axis=-1)
    i_g, f_g, o_g = jax.nn.sigmoid(i_g), jax.nn.sigmoid(f_g), jax.nn.sigmoid(o_g)
    g_g = jnp.tanh(g_g)
    c_new = f_g * c0 + i_g * g_g
    h_new = o_g * jnp.tanh(c_new)

    def ln(z):
        m = z.mean(-1, keepdims=True)
        v = ((z - m) ** 2).mean(-1, keepdims=True)
        return (z - m) / jnp.sqrt(v + LN_EPS)

    a1 = jax.nn.relu(ln(mm(h_new, P['wa1'].T) + P['ba1']))
    probs = jax.nn.softmax(mm(a1, P['wa2'].T) + P['ba2'], axis=-1)
    v1 = jax.nn.relu(ln(mm(h_new, P['wcrit1'].T) + P['bcrit1']))
    value = (mm(v1, P['wcrit2'].T) + P['bcrit2'])[:, 0]
    return probs, value, h_new, c_new


# ------------------------------------ demo ------------------------------------------
if __name__ == "__main__":
    B = 2
    key = jax.random.PRNGKey(0)
    kx, kh, kc, kp = jax.random.split(key, 4)
    x = jax.random.normal(kx, (B, OBS_C, OBS_H, OBS_W), jnp.float32)
    h0 = jax.random.normal(kh, (B, HID), jnp.float32) * 0.1
    c0 = jax.random.normal(kc, (B, HID), jnp.float32) * 0.1

    P = init_params(kp)
    kparams = pack_params(P)

    probs, logp, value, h_new, c_new = impala_agent_forward(x, kparams, h0, c0)
    jax.block_until_ready((probs, logp, value, h_new, c_new))

    # correctness check vs pure-JAX reference of the same forward pass
    r_probs, r_value, r_h, r_c = ref_forward(x, P, h0, c0)
    checks = ((probs, r_probs, "probs"), (logp, jnp.log(r_probs), "logp"),
              (value, r_value, "value"), (h_new, r_h, "h_new"), (c_new, r_c, "c_new"))
    for got, want, name in checks:
        assert jnp.allclose(got, want, atol=5e-3, rtol=5e-3), f"{name} mismatch"

    action, value, log_prob, (h_new, c_new) = agent_act(
        x, kparams, h0, c0, deterministic=True)
    jax.block_until_ready((action, value, log_prob, h_new, c_new))

    print("KERNEL_OK")
</pallas_src>

<mosaic_0001>
module attributes {stable_mosaic.version = 11 : i64} {
  func.func @agent_kernel(%arg0: memref<18x128xf32, #tpu.memory_space<vmem>>, %arg1: memref<2x256xf32, #tpu.memory_space<vmem>>, %arg2: memref<2x256xf32, #tpu.memory_space<vmem>>, %arg3: memref<128x128xf32, #tpu.memory_space<vmem>>, %arg4: memref<1x128xf32, #tpu.memory_space<vmem>>, %arg5: memref<512x128xf32, #tpu.memory_space<vmem>>, %arg6: memref<1x128xf32, #tpu.memory_space<vmem>>, %arg7: memref<512x256xf32, #tpu.memory_space<vmem>>, %arg8: memref<1x256xf32, #tpu.memory_space<vmem>>, %arg9: memref<512x1024xf32, #tpu.memory_space<vmem>>, %arg10: memref<1x1024xf32, #tpu.memory_space<vmem>>, %arg11: memref<256x640xf32, #tpu.memory_space<vmem>>, %arg12: memref<1x640xf32, #tpu.memory_space<vmem>>, %arg13: memref<128x128xf32, #tpu.memory_space<vmem>>, %arg14: memref<1x128xf32, #tpu.memory_space<vmem>>, %arg15: memref<512x128xf32, #tpu.memory_space<vmem>>, %arg16: memref<1x128xf32, #tpu.memory_space<vmem>>, %arg17: memref<2x128xf32, #tpu.memory_space<vmem>>, %arg18: memref<2x128xf32, #tpu.memory_space<vmem>>, %arg19: memref<2x128xf32, #tpu.memory_space<vmem>>, %arg20: memref<2x256xf32, #tpu.memory_space<vmem>>, %arg21: memref<2x256xf32, #tpu.memory_space<vmem>>) attributes {dimension_semantics = [], scalar_prefetch = 0 : i64, scratch_operands = 0 : i64, tpu.core_type = #tpu.core_type<tc>} {
    %c0 = arith.constant 0 : index
    %c0_0 = arith.constant 0 : index
    %0 = vector.load %arg0[%c0, %c0_0] : memref<18x128xf32, #tpu.memory_space<vmem>>, vector<18x128xf32>
    %c0_1 = arith.constant 0 : index
    %c0_2 = arith.constant 0 : index
    %1 = vector.load %arg3[%c0_1, %c0_2] : memref<128x128xf32, #tpu.memory_space<vmem>>, vector<128x128xf32>
    %cst = arith.constant dense<0.000000e+00> : vector<18x128xf32>
    %2 = tpu.matmul %0, %1, %cst {dimension_numbers = #tpu.dot_dimension_numbers<[1], [0], [0], [1], [0, 0, 1, 1], [], []>} : vector<18x128xf32>, vector<128x128xf32>, vector<18x128xf32> -> vector<18x128xf32>
    %c0_3 = arith.constant 0 : index
    %c0_4 = arith.constant 0 : index
    %3 = vector.load %arg4[%c0_3, %c0_4] : memref<1x128xf32, #tpu.memory_space<vmem>>, vector<1x128xf32>
    %4 = vector.broadcast %3 : vector<1x128xf32> to vector<18x128xf32>
    %5 = arith.addf %2, %4 : vector<18x128xf32>
    %cst_5 = arith.constant 0.000000e+00 : f32
    %6 = vector.broadcast %cst_5 : f32 to vector<18x128xf32>
    %7 = arith.maximumf %5, %6 : vector<18x128xf32>
    %8 = vector.extract_strided_slice %7 {offsets = [0, 0], sizes = [2, 128], strides = [1, 1]} : vector<18x128xf32> to vector<2x128xf32>
    %9 = vector.extract_strided_slice %7 {offsets = [2, 0], sizes = [2, 128], strides = [1, 1]} : vector<18x128xf32> to vector<2x128xf32>
    %10 = vector.extract_strided_slice %7 {offsets = [6, 0], sizes = [2, 128], strides = [1, 1]} : vector<18x128xf32> to vector<2x128xf32>
    %11 = vector.extract_strided_slice %7 {offsets = [8, 0], sizes = [2, 128], strides = [1, 1]} : vector<18x128xf32> to vector<2x128xf32>
    %12 = tpu.concatenate %8, %9, %10, %11 in 1 : vector<2x128xf32>, vector<2x128xf32>, vector<2x128xf32>, vector<2x128xf32> -> vector<2x512xf32>
    %13 = vector.extract_strided_slice %7 {offsets = [2, 0], sizes = [2, 128], strides = [1, 1]} : vector<18x128xf32> to vector<2x128xf32>
    %14 = vector.extract_strided_slice %7 {offsets = [4, 0], sizes = [2, 128], strides = [1, 1]} : vector<18x128xf32> to vector<2x128xf32>
    %15 = vector.extract_strided_slice %7 {offsets = [8, 0], sizes = [2, 128], strides = [1, 1]} : vector<18x128xf32> to vector<2x128xf32>
    %16 = vector.extract_strided_slice %7 {offsets = [10, 0], sizes = [2, 128], strides = [1, 1]} : vector<18x128xf32> to vector<2x128xf32>
    %17 = tpu.concatenate %13, %14, %15, %16 in 1 : vector<2x128xf32>, vector<2x128xf32>, vector<2x128xf32>, vector<2x128xf32> -> vector<2x512xf32>
    %18 = vector.extract_strided_slice %7 {offsets = [6, 0], sizes = [2, 128], strides = [1, 1]} : vector<18x128xf32> to vector<2x128xf32>
    %19 = vector.extract_strided_slice %7 {offsets = [8, 0], sizes = [2, 128], strides = [1, 1]} : vector<18x128xf32> to vector<2x128xf32>
    %20 = vector.extract_strided_slice %7 {offsets = [12, 0], sizes = [2, 128], strides = [1, 1]} : vector<18x128xf32> to vector<2x128xf32>
    %21 = vector.extract_strided_slice %7 {offsets = [14, 0], sizes = [2, 128], strides = [1, 1]} : vector<18x128xf32> to vector<2x128xf32>
    %22 = tpu.concatenate %18, %19, %20, %21 in 1 : vector<2x128xf32>, vector<2x128xf32>, vector<2x128xf32>, vector<2x128xf32> -> vector<2x512xf32>
    %23 = vector.extract_strided_slice %7 {offsets = [8, 0], sizes = [2, 128], strides = [1, 1]} : vector<18x128xf32> to vector<2x128xf32>
    %24 = vector.extract_strided_slice %7 {offsets = [10, 0], sizes = [2, 128], strides = [1, 1]} : vector<18x128xf32> to vector<2x128xf32>
    %25 = vector.extract_strided_slice %7 {offsets = [14, 0], sizes = [2, 128], strides = [1, 1]} : vector<18x128xf32> to vector<2x128xf32>
    %26 = vector.extract_strided_slice %7 {offsets = [16, 0], sizes = [2, 128], strides = [1, 1]} : vector<18x128xf32> to vector<2x128xf32>
    %27 = tpu.concatenate %23, %24, %25, %26 in 1 : vector<2x128xf32>, vector<2x128xf32>, vector<2x128xf32>, vector<2x128xf32> -> vector<2x512xf32>
    %28 = tpu.concatenate %12, %17, %22, %27 in 0 : vector<2x512xf32>, vector<2x512xf32>, vector<2x512xf32>, vector<2x512xf32> -> vector<8x512xf32>
    %c0_6 = arith.constant 0 : index
    %c0_7 = arith.constant 0 : index
    %29 = vector.load %arg5[%c0_6, %c0_7] : memref<512x128xf32, #tpu.memory_space<vmem>>, vector<512x128xf32>
    %cst_8 = arith.constant dense<0.000000e+00> : vector<8x128xf32>
    %30 = tpu.matmul %28, %29, %cst_8 {dimension_numbers = #tpu.dot_dimension_numbers<[1], [0], [0], [1], [0, 0, 1, 1], [], []>} : vector<8x512xf32>, vector<512x128xf32>, vector<8x128xf32> -> vector<8x128xf32>
    %c0_9 = arith.constant 0 : index
    %c0_10 = arith.constant 0 : index
    %31 = vector.load %arg6[%c0_9, %c0_10] : memref<1x128xf32, #tpu.memory_space<vmem>>, vector<1x128xf32>
    %32 = vector.broadcast %31 : vector<1x128xf32> to vector<8x128xf32>
    %33 = arith.addf %30, %32 : vector<8x128xf32>
    %cst_11 = arith.constant 0.000000e+00 : f32
    %34 = vector.broadcast %cst_11 : f32 to vector<8x128xf32>
    %35 = arith.maximumf %33, %34 : vector<8x128xf32>
    %36 = vector.extract_strided_slice %35 {offsets = [0, 0], sizes = [2, 128], strides = [1, 1]} : vector<8x128xf32> to vector<2x128xf32>
    %37 = vector.extract_strided_slice %35 {offsets = [2, 0], sizes = [2, 128], strides = [1, 1]} : vector<8x128xf32> to vector<2x128xf32>
    %38 = vector.extract_strided_slice %35 {offsets = [4, 0], sizes = [2, 128], strides = [1, 1]} : vector<8x128xf32> to vector<2x128xf32>
    %39 = vector.extract_strided_slice %35 {offsets = [6, 0], sizes = [2, 128], strides = [1, 1]} : vector<8x128xf32> to vector<2x128xf32>
    %40 = tpu.concatenate %36, %37, %38, %39 in 1 : vector<2x128xf32>, vector<2x128xf32>, vector<2x128xf32>, vector<2x128xf32> -> vector<2x512xf32>
    %c0_12 = arith.constant 0 : index
    %c0_13 = arith.constant 0 : index
    %41 = vector.load %arg7[%c0_12, %c0_13] : memref<512x256xf32, #tpu.memory_space<vmem>>, vector<512x256xf32>
    %cst_14 = arith.constant dense<0.000000e+00> : vector<2x256xf32>
    %42 = tpu.matmul %40, %41, %cst_14 {dimension_numbers = #tpu.dot_dimension_numbers<[1], [0], [0], [1], [0, 0, 1, 1], [], []>} : vector<2x512xf32>, vector<512x256xf32>, vector<2x256xf32> -> vector<2x256xf32>
    %c0_15 = arith.constant 0 : index
    %c0_16 = arith.constant 0 : index
    %43 = vector.load %arg8[%c0_15, %c0_16] : memref<1x256xf32, #tpu.memory_space<vmem>>, vector<1x256xf32>
    %44 = vector.broadcast %43 : vector<1x256xf32> to vector<2x256xf32>
    %45 = arith.addf %42, %44 : vector<2x256xf32>
    %cst_17 = arith.constant 0.000000e+00 : f32
    %46 = vector.broadcast %cst_17 : f32 to vector<2x256xf32>
    %47 = arith.maximumf %45, %46 : vector<2x256xf32>
    %c0_18 = arith.constant 0 : index
    %c0_19 = arith.constant 0 : index
    %48 = vector.load %arg1[%c0_18, %c0_19] : memref<2x256xf32, #tpu.memory_space<vmem>>, vector<2x256xf32>
    %49 = tpu.concatenate %47, %48 in 1 : vector<2x256xf32>, vector<2x256xf32> -> vector<2x512xf32>
    %c0_20 = arith.constant 0 : index
    %c0_21 = arith.constant 0 : index
    %50 = vector.load %arg9[%c0_20, %c0_21] : memref<512x1024xf32, #tpu.memory_space<vmem>>, vector<512x1024xf32>
    %cst_22 = arith.constant dense<0.000000e+00> : vector<2x1024xf32>
    %51 = tpu.matmul %49, %50, %cst_22 {dimension_numbers = #tpu.dot_dimension_numbers<[1], [0], [0], [1], [0, 0, 1, 1], [], []>} : vector<2x512xf32>, vector<512x1024xf32>, vector<2x1024xf32> -> vector<2x1024xf32>
    %c0_23 = arith.constant 0 : index
    %c0_24 = arith.constant 0 : index
    %52 = vector.load %arg10[%c0_23, %c0_24] : memref<1x1024xf32, #tpu.memory_space<vmem>>, vector<1x1024xf32>
    %53 = vector.broadcast %52 : vector<1x1024xf32> to vector<2x1024xf32>
    %54 = arith.addf %51, %53 : vector<2x1024xf32>
    %55 = vector.extract_strided_slice %54 {offsets = [0, 0], sizes = [2, 256], strides = [1, 1]} : vector<2x1024xf32> to vector<2x256xf32>
    %56 = arith.negf %55 : vector<2x256xf32>
    %57 = math.exp %56 : vector<2x256xf32>
    %cst_25 = arith.constant 1.000000e+00 : f32
    %58 = vector.broadcast %cst_25 : f32 to vector<2x256xf32>
    %59 = arith.addf %58, %57 : vector<2x256xf32>
    %60 = arith.divf %58, %59 : vector<2x256xf32>
    %61 = vector.extract_strided_slice %54 {offsets = [0, 256], sizes = [2, 256], strides = [1, 1]} : vector<2x1024xf32> to vector<2x256xf32>
    %62 = arith.negf %61 : vector<2x256xf32>
    %63 = math.exp %62 : vector<2x256xf32>
    %cst_26 = arith.constant 1.000000e+00 : f32
    %64 = vector.broadcast %cst_26 : f32 to vector<2x256xf32>
    %65 = arith.addf %64, %63 : vector<2x256xf32>
    %66 = arith.divf %64, %65 : vector<2x256xf32>
    %67 = vector.extract_strided_slice %54 {offsets = [0, 512], sizes = [2, 256], strides = [1, 1]} : vector<2x1024xf32> to vector<2x256xf32>
    %68 = math.tanh %67 : vector<2x256xf32>
    %69 = vector.extract_strided_slice %54 {offsets = [0, 768], sizes = [2, 256], strides = [1, 1]} : vector<2x1024xf32> to vector<2x256xf32>
    %70 = arith.negf %69 : vector<2x256xf32>
    %71 = math.exp %70 : vector<2x256xf32>
    %cst_27 = arith.constant 1.000000e+00 : f32
    %72 = vector.broadcast %cst_27 : f32 to vector<2x256xf32>
    %73 = arith.addf %72, %71 : vector<2x256xf32>
    %74 = arith.divf %72, %73 : vector<2x256xf32>
    %c0_28 = arith.constant 0 : index
    %c0_29 = arith.constant 0 : index
    %75 = vector.load %arg2[%c0_28, %c0_29] : memref<2x256xf32, #tpu.memory_space<vmem>>, vector<2x256xf32>
    %76 = arith.mulf %66, %75 : vector<2x256xf32>
    %77 = arith.mulf %60, %68 : vector<2x256xf32>
    %78 = arith.addf %76, %77 : vector<2x256xf32>
    %79 = math.tanh %78 : vector<2x256xf32>
    %80 = arith.mulf %74, %79 : vector<2x256xf32>
    %c0_30 = arith.constant 0 : index
    %c0_31 = arith.constant 0 : index
    %81 = vector.load %arg20[%c0_30, %c0_31] : memref<2x256xf32, #tpu.memory_space<vmem>>, vector<2x256xf32>
    tpu.vector_store %arg20[%c0_30, %c0_31], %80 {strides = array<i32>} : memref<2x256xf32, #tpu.memory_space<vmem>>, vector<2x256xf32>,
    %c0_32 = arith.constant 0 : index
    %c0_33 = arith.constant 0 : index
    %82 = vector.load %arg21[%c0_32, %c0_33] : memref<2x256xf32, #tpu.memory_space<vmem>>, vector<2x256xf32>
    tpu.vector_store %arg21[%c0_32, %c0_33], %78 {strides = array<i32>} : memref<2x256xf32, #tpu.memory_space<vmem>>, vector<2x256xf32>,
    %c0_34 = arith.constant 0 : index
    %c0_35 = arith.constant 0 : index
    %83 = vector.load %arg11[%c0_34, %c0_35] : memref<256x640xf32, #tpu.memory_space<vmem>>, vector<256x640xf32>
    %cst_36 = arith.constant dense<0.000000e+00> : vector<2x640xf32>
    %84 = tpu.matmul %80, %83, %cst_36 {dimension_numbers = #tpu.dot_dimension_numbers<[1], [0], [0], [1], [0, 0, 1, 1], [], []>} : vector<2x256xf32>, vector<256x640xf32>, vector<2x640xf32> -> vector<2x640xf32>
    %c0_37 = arith.constant 0 : index
    %c0_38 = arith.constant 0 : index
    %85 = vector.load %arg12[%c0_37, %c0_38] : memref<1x640xf32, #tpu.memory_space<vmem>>, vector<1x640xf32>
    %86 = vector.broadcast %85 : vector<1x640xf32> to vector<2x640xf32>
    %87 = arith.addf %84, %86 : vector<2x640xf32>
    %88 = vector.extract_strided_slice %87 {offsets = [0, 0], sizes = [2, 128], strides = [1, 1]} : vector<2x640xf32> to vector<2x128xf32>
    %cst_39 = arith.constant dense<0.000000e+00> : vector<2xf32>
    %89 = vector.multi_reduction <add>, %88, %cst_39 [1] : vector<2x128xf32> to vector<2xf32>
    %90 = vector.shape_cast %89 : vector<2xf32> to vector<2x1xf32>
    %cst_40 = arith.constant 1.280000e+02 : f32
    %91 = vector.broadcast %cst_40 : f32 to vector<2x1xf32>
    %92 = arith.divf %90, %91 : vector<2x1xf32>
    %93 = vector.broadcast %92 : vector<2x1xf32> to vector<2x128xf32>
    %94 = arith.subf %88, %93 : vector<2x128xf32>
    %95 = vector.broadcast %92 : vector<2x1xf32> to vector<2x128xf32>
    %96 = arith.subf %88, %95 : vector<2x128xf32>
    %97 = arith.mulf %94, %96 : vector<2x128xf32>
    %cst_41 = arith.constant dense<0.000000e+00> : vector<2xf32>
    %98 = vector.multi_reduction <add>, %97, %cst_41 [1] : vector<2x128xf32> to vector<2xf32>
    %99 = vector.shape_cast %98 : vector<2xf32> to vector<2x1xf32>
    %cst_42 = arith.constant 1.280000e+02 : f32
    %100 = vector.broadcast %cst_42 : f32 to vector<2x1xf32>
    %101 = arith.divf %99, %100 : vector<2x1xf32>
    %102 = vector.broadcast %92 : vector<2x1xf32> to vector<2x128xf32>
    %103 = arith.subf %88, %102 : vector<2x128xf32>
    %cst_43 = arith.constant 9.99999974E-6 : f32
    %104 = vector.broadcast %cst_43 : f32 to vector<2x1xf32>
    %105 = arith.addf %101, %104 : vector<2x1xf32>
    %106 = math.rsqrt %105 : vector<2x1xf32>
    %107 = vector.broadcast %106 : vector<2x1xf32> to vector<2x128xf32>
    %108 = arith.mulf %103, %107 : vector<2x128xf32>
    %cst_44 = arith.constant 0.000000e+00 : f32
    %109 = vector.broadcast %cst_44 : f32 to vector<2x128xf32>
    %110 = arith.maximumf %108, %109 : vector<2x128xf32>
    %111 = vector.extract_strided_slice %87 {offsets = [0, 128], sizes = [2, 512], strides = [1, 1]} : vector<2x640xf32> to vector<2x512xf32>
    %cst_45 = arith.constant dense<0.000000e+00> : vector<2xf32>
    %112 = vector.multi_reduction <add>, %111, %cst_45 [1] : vector<2x512xf32> to vector<2xf32>
    %113 = vector.shape_cast %112 : vector<2xf32> to vector<2x1xf32>
    %cst_46 = arith.constant 5.120000e+02 : f32
    %114 = vector.broadcast %cst_46 : f32 to vector<2x1xf32>
    %115 = arith.divf %113, %114 : vector<2x1xf32>
    %116 = vector.broadcast %115 : vector<2x1xf32> to vector<2x512xf32>
    %117 = arith.subf %111, %116 : vector<2x512xf32>
    %118 = vector.broadcast %115 : vector<2x1xf32> to vector<2x512xf32>
    %119 = arith.subf %111, %118 : vector<2x512xf32>
    %120 = arith.mulf %117, %119 : vector<2x512xf32>
    %cst_47 = arith.constant dense<0.000000e+00> : vector<2xf32>
    %121 = vector.multi_reduction <add>, %120, %cst_47 [1] : vector<2x512xf32> to vector<2xf32>
    %122 = vector.shape_cast %121 : vector<2xf32> to vector<2x1xf32>
    %cst_48 = arith.constant 5.120000e+02 : f32
    %123 = vector.broadcast %cst_48 : f32 to vector<2x1xf32>
    %124 = arith.divf %122, %123 : vector<2x1xf32>
    %125 = vector.broadcast %115 : vector<2x1xf32> to vector<2x512xf32>
    %126 = arith.subf %111, %125 : vector<2x512xf32>
    %cst_49 = arith.constant 9.99999974E-6 : f32
    %127 = vector.broadcast %cst_49 : f32 to vector<2x1xf32>
    %128 = arith.addf %124, %127 : vector<2x1xf32>
    %129 = math.rsqrt %128 : vector<2x1xf32>
    %130 = vector.broadcast %129 : vector<2x1xf32> to vector<2x512xf32>
    %131 = arith.mulf %126, %130 : vector<2x512xf32>
    %cst_50 = arith.constant 0.000000e+00 : f32
    %132 = vector.broadcast %cst_50 : f32 to vector<2x512xf32>
    %133 = arith.maximumf %131, %132 : vector<2x512xf32>
    %c0_51 = arith.constant 0 : index
    %c0_52 = arith.constant 0 : index
    %134 = vector.load %arg13[%c0_51, %c0_52] : memref<128x128xf32, #tpu.memory_space<vmem>>, vector<128x128xf32>
    %cst_53 = arith.constant dense<0.000000e+00> : vector<2x128xf32>
    %135 = tpu.matmul %110, %134, %cst_53 {dimension_numbers = #tpu.dot_dimension_numbers<[1], [0], [0], [1], [0, 0, 1, 1], [], []>} : vector<2x128xf32>, vector<128x128xf32>, vector<2x128xf32> -> vector<2x128xf32>
    %c0_54 = arith.constant 0 : index
    %c0_55 = arith.constant 0 : index
    %136 = vector.load %arg14[%c0_54, %c0_55] : memref<1x128xf32, #tpu.memory_space<vmem>>, vector<1x128xf32>
    %137 = vector.broadcast %136 : vector<1x128xf32> to vector<2x128xf32>
    %138 = arith.addf %135, %137 : vector<2x128xf32>
    %139 = tpu.iota {dimensions = array<i32: 1>} : vector<2x128xi32>
    %c15_i32 = arith.constant 15 : i32
    %140 = vector.broadcast %c15_i32 : i32 to vector<2x128xi32>
    %141 = arith.cmpi slt, %139, %140 : vector<2x128xi32>
    %cst_56 = arith.constant -1.000000e+30 : f32
    %142 = vector.broadcast %cst_56 : f32 to vector<2x128xf32>
    %143 = arith.select %141, %138, %142 : vector<2x128xi1>, vector<2x128xf32>
    %cst_57 = arith.constant dense<0xFF800000> : vector<2xf32>
    %144 = vector.multi_reduction <maximumf>, %143, %cst_57 [1] : vector<2x128xf32> to vector<2xf32>
    %145 = vector.shape_cast %144 : vector<2xf32> to vector<2x1xf32>
    %146 = vector.broadcast %145 : vector<2x1xf32> to vector<2x128xf32>
    %147 = arith.subf %143, %146 : vector<2x128xf32>
    %148 = math.exp %147 : vector<2x128xf32>
    %cst_58 = arith.constant dense<0.000000e+00> : vector<2xf32>
    %149 = vector.multi_reduction <add>, %148, %cst_58 [1] : vector<2x128xf32> to vector<2xf32>
    %150 = vector.shape_cast %149 : vector<2xf32> to vector<2x1xf32>
    %151 = tpu.reciprocal %150 {approx = true} : vector<2x1xf32> -> vector<2x1xf32>
    %152 = vector.broadcast %151 : vector<2x1xf32> to vector<2x128xf32>
    %153 = arith.mulf %148, %152 : vector<2x128xf32>
    %c0_59 = arith.constant 0 : index
    %c0_60 = arith.constant 0 : index
    %154 = vector.load %arg17[%c0_59, %c0_60] : memref<2x128xf32, #tpu.memory_space<vmem>>, vector<2x128xf32>
    tpu.vector_store %arg17[%c0_59, %c0_60], %153 {strides = array<i32>} : memref<2x128xf32, #tpu.memory_space<vmem>>, vector<2x128xf32>,
    %155 = vector.broadcast %145 : vector<2x1xf32> to vector<2x128xf32>
    %156 = arith.subf %143, %155 : vector<2x128xf32>
    %157 = math.log %150 : vector<2x1xf32>
    %158 = vector.broadcast %157 : vector<2x1xf32> to vector<2x128xf32>
    %159 = arith.subf %156, %158 : vector<2x128xf32>
    %c0_61 = arith.constant 0 : index
    %c0_62 = arith.constant 0 : index
    %160 = vector.load %arg18[%c0_61, %c0_62] : memref<2x128xf32, #tpu.memory_space<vmem>>, vector<2x128xf32>
    tpu.vector_store %arg18[%c0_61, %c0_62], %159 {strides = array<i32>} : memref<2x128xf32, #tpu.memory_space<vmem>>, vector<2x128xf32>,
    %c0_63 = arith.constant 0 : index
    %c0_64 = arith.constant 0 : index
    %161 = vector.load %arg15[%c0_63, %c0_64] : memref<512x128xf32, #tpu.memory_space<vmem>>, vector<512x128xf32>
    %cst_65 = arith.constant dense<0.000000e+00> : vector<2x128xf32>
    %162 = tpu.matmul %133, %161, %cst_65 {dimension_numbers = #tpu.dot_dimension_numbers<[1], [0], [0], [1], [0, 0, 1, 1], [], []>} : vector<2x512xf32>, vector<512x128xf32>, vector<2x128xf32> -> vector<2x128xf32>
    %c0_66 = arith.constant 0 : index
    %c0_67 = arith.constant 0 : index
    %163 = vector.load %arg16[%c0_66, %c0_67] : memref<1x128xf32, #tpu.memory_space<vmem>>, vector<1x128xf32>
    %164 = vector.broadcast %163 : vector<1x128xf32> to vector<2x128xf32>
    %165 = arith.addf %162, %164 : vector<2x128xf32>
    %c0_68 = arith.constant 0 : index
    %c0_69 = arith.constant 0 : index
    %166 = vector.load %arg19[%c0_68, %c0_69] : memref<2x128xf32, #tpu.memory_space<vmem>>, vector<2x128xf32>
    tpu.vector_store %arg19[%c0_68, %c0_69], %165 {strides = array<i32>} : memref<2x128xf32, #tpu.memory_space<vmem>>, vector<2x128xf32>,
    return
  }
}

</mosaic_0001>

<llo_original>
// kernel: tpu_custom_call.1
$region0: #{tpu_custom_call.1}
  #allocation0 [shape = 'u32[]', space=smem, size = 0x4, offset = 0x4, fixed_abs, tag = 'smem constant byte address 0x4 - core index']
  #allocation1 [shape = 'u32[144,128]{1,0:T(1,128)}', space=vmem, size = 0x12000, scoped, tag = 'internal scratch']
  %s0 = inlined_call_operand.hbm [shape: f32[18,128], index: 0, kind: input, shape index: {}]
  %s1 = inlined_call_operand.hbm [shape: f32[2,256], index: 1, kind: input, shape index: {}]
  %s2 = inlined_call_operand.hbm [shape: f32[2,256], index: 2, kind: input, shape index: {}]
  %s3 = inlined_call_operand.hbm [shape: f32[128,128], index: 3, kind: input, shape index: {}]
  %s4 = inlined_call_operand.hbm [shape: f32[1,128], index: 4, kind: input, shape index: {}]
  %s5 = inlined_call_operand.hbm [shape: f32[512,128], index: 5, kind: input, shape index: {}]
  %s6 = inlined_call_operand.hbm [shape: f32[1,128], index: 6, kind: input, shape index: {}]
  %s7 = inlined_call_operand.hbm [shape: f32[512,256], index: 7, kind: input, shape index: {}]
  %s8 = inlined_call_operand.hbm [shape: f32[1,256], index: 8, kind: input, shape index: {}]
  %s9 = inlined_call_operand.hbm [shape: f32[512,1024], index: 9, kind: input, shape index: {}]
  %s10 = inlined_call_operand.hbm [shape: f32[1,1024], index: 10, kind: input, shape index: {}]
  %s11 = inlined_call_operand.hbm [shape: f32[256,640], index: 11, kind: input, shape index: {}]
  %s12 = inlined_call_operand.hbm [shape: f32[1,640], index: 12, kind: input, shape index: {}]
  %s13 = inlined_call_operand.hbm [shape: f32[128,128], index: 13, kind: input, shape index: {}]
  %s14 = inlined_call_operand.hbm [shape: f32[1,128], index: 14, kind: input, shape index: {}]
  %s15 = inlined_call_operand.hbm [shape: f32[512,128], index: 15, kind: input, shape index: {}]
  %s16 = inlined_call_operand.hbm [shape: f32[1,128], index: 16, kind: input, shape index: {}]
  %s17 = inlined_call_operand.hbm [shape: f32[2,128], index: 17, kind: output, shape index: {0}]
  %s18 = inlined_call_operand.hbm [shape: f32[2,128], index: 18, kind: output, shape index: {1}]
  %s19 = inlined_call_operand.hbm [shape: f32[2,128], index: 19, kind: output, shape index: {2}]
  %s20 = inlined_call_operand.hbm [shape: f32[2,256], index: 20, kind: output, shape index: {3}]
  %s21 = inlined_call_operand.hbm [shape: f32[2,256], index: 21, kind: output, shape index: {4}]
  %22 = xla_tuple %s17, %s18, %s19, %s20, %s21
  %s23 = sld [smem:[#allocation0]]
  $region178: #{tpu_custom_call.1} parent=0
    _
  %s25 = ssub.s32 1, %s23
  %s26 = scalar_select 0, %s25, %s23
  $region1: #{tpu_custom_call.1} parent=0
    #allocation2 [shape = 'u8[12288]{0}', space=vmem, size = 0x3000, scoped, tag = 'input window, operand 0, single buffered']
    #allocation3 [shape = 's32[1]{0}', space=sflag, size = 0x4, scoped, tag = 'scoped memory for tpu_custom_call.1']
    #allocation4 [shape = 's32[1]{0}', space=sflag, size = 0x4, scoped, tag = 'scoped memory for tpu_custom_call.1']
    #allocation5 [shape = 'u8[2048]{0}', space=vmem, size = 0x800, scoped, tag = 'input window, operand 1, single buffered']
    #allocation6 [shape = 's32[1]{0}', space=sflag, size = 0x4, scoped, tag = 'scoped memory for tpu_custom_call.1']
    #allocation7 [shape = 'u8[2048]{0}', space=vmem, size = 0x800, scoped, tag = 'input window, operand 2, single buffered']
    #allocation8 [shape = 'u8[65536]{0}', space=vmem, size = 0x10000, scoped, tag = 'input window, operand 3, single buffered']
    #allocation9 [shape = 's32[1]{0}', space=sflag, size = 0x4, scoped, tag = 'scoped memory for tpu_custom_call.1']
    #allocation10 [shape = 'u8[512]{0}', space=vmem, size = 0x400, scoped, tag = 'input window, operand 4, single buffered']
    #allocation11 [shape = 'u8[262144]{0}', space=vmem, size = 0x40000, scoped, tag = 'input window, operand 5, single buffered']
    #allocation12 [shape = 's32[1]{0}', space=sflag, size = 0x4, scoped, tag = 'scoped memory for tpu_custom_call.1']
    #allocation13 [shape = 'u8[512]{0}', space=vmem, size = 0x400, scoped, tag = 'input window, operand 6, single buffered']
    #allocation14 [shape = 'u8[524288]{0}', space=vmem, size = 0x80000, scoped, tag = 'input window, operand 7, single buffered']
    #allocation15 [shape = 's32[1]{0}', space=sflag, size = 0x4, scoped, tag = 'scoped memory for tpu_custom_call.1']
    #allocation16 [shape = 'u8[1024]{0}', space=vmem, size = 0x400, scoped, tag = 'input window, operand 8, single buffered']
    #allocation17 [shape = 'u8[2097152]{0}', space=vmem, size = 0x200000, scoped, tag = 'input window, operand 9, single buffered']
    #allocation18 [shape = 's32[1]{0}', space=sflag, size = 0x4, scoped, tag = 'scoped memory for tpu_custom_call.1']
    #allocation19 [shape = 'u8[4096]{0}', space=vmem, size = 0x1000, scoped, tag = 'input window, operand 10, single buffered']
    #allocation20 [shape = 'u8[655360]{0}', space=vmem, size = 0xa0000, scoped, tag = 'input window, operand 11, single buffered']
    #allocation21 [shape = 's32[1]{0}', space=sflag, size = 0x4, scoped, tag = 'scoped memory for tpu_custom_call.1']
    #allocation22 [shape = 'u8[2560]{0}', space=vmem, size = 0xc00, scoped, tag = 'input window, operand 12, single buffered']
    #allocation23 [shape = 'u8[65536]{0}', space=vmem, size = 0x10000, scoped, tag = 'input window, operand 13, single buffered']
    #allocation24 [shape = 's32[1]{0}', space=sflag, size = 0x4, scoped, tag = 'scoped memory for tpu_custom_call.1']
    #allocation25 [shape = 'u8[512]{0}', space=vmem, size = 0x400, scoped, tag = 'input window, operand 14, single buffered']
    #allocation26 [shape = 'u8[262144]{0}', space=vmem, size = 0x40000, scoped, tag = 'input window, operand 15, single buffered']
    #allocation27 [shape = 's32[1]{0}', space=sflag, size = 0x4, scoped, tag = 'scoped memory for tpu_custom_call.1']
    #allocation28 [shape = 'u8[512]{0}', space=vmem, size = 0x400, scoped, tag = 'input window, operand 16, single buffered']
    #allocation29 [shape = 'u8[1024]{0}', space=vmem, size = 0x400, scoped, tag = 'output window, operand 0, single buffered']
    #allocation30 [shape = 'u8[1024]{0}', space=vmem, size = 0x400, scoped, tag = 'output window, operand 1, single buffered']
    #allocation31 [shape = 's32[1]{0}', space=sflag, size = 0x4, scoped, tag = 'scoped memory for tpu_custom_call.1']
    #allocation32 [shape = 'u8[1024]{0}', space=vmem, size = 0x400, scoped, tag = 'output window, operand 2, single buffered']
    #allocation33 [shape = 'u8[2048]{0}', space=vmem, size = 0x800, scoped, tag = 'output window, operand 3, single buffered']
    #allocation34 [shape = 's32[1]{0}', space=sflag, size = 0x4, scoped, tag = 'scoped memory for tpu_custom_call.1']
    #allocation35 [shape = 'u8[2048]{0}', space=vmem, size = 0x800, scoped, tag = 'output window, operand 4, single buffered']
    %27 = vsyncpa [#allocation3], 0
    %28 = vsyncpa [#allocation6], 0
    %29 = vsyncpa [#allocation9], 0
    %30 = vsyncpa [#allocation12], 0
    %31 = vsyncpa [#allocation15], 0
    %32 = vsyncpa [#allocation18], 0
    %33 = vsyncpa [#allocation21], 0
    %34 = vsyncpa [#allocation24], 0
    %35 = vsyncpa [#allocation27], 0
    %36 = vsyncpa [#allocation4], 0
    %37 = vsyncpa [#allocation31], 0
    %38 = vsyncpa [#allocation34], 0
    // Predicated region
    $region2: #{tpu_custom_call.1} parent=1 // pred_check
      _
    $region3: #{tpu_custom_call.1} parent=1 // pred_check_branch
      %40 = sbr.rel (0) target = $region5
    $region4: #{tpu_custom_call.1} parent=1 // pred_region
      %s42 = ssub.s32 384, 384
      %43 = vsyncadd [#allocation3], %s42
      %s44 = sshll.u32 [#allocation2], 4
      %s45 = int_to_ptr.vmem [resolvable:$true] %s44
      %50 = dma.hbm_to_vmem [thread:$0]  %s0, 384, %s45, [#allocation3], 128, 128, 8
    $region5: #{tpu_custom_call.1} parent=1 // pred_fallthru
      _
    // Predicated region
    $region6: #{tpu_custom_call.1} parent=1 // pred_check
      _
    $region7: #{tpu_custom_call.1} parent=1 // pred_check_branch
      %52 = sbr.rel (0) target = $region9
    $region8: #{tpu_custom_call.1} parent=1 // pred_region
      %s54 = ssub.s32 64, 64
      %55 = vsyncadd [#allocation6], %s54
      %s57 = sshll.u32 [#allocation5], 4
      %s58 = int_to_ptr.vmem [resolvable:$true] %s57
      %60 = dma.hbm_to_vmem [thread:$0]  %s1, 64, %s58, [#allocation6]
    $region9: #{tpu_custom_call.1} parent=1 // pred_fallthru
      _
    // Predicated region
    $region10: #{tpu_custom_call.1} parent=1 // pred_check
      _
    $region11: #{tpu_custom_call.1} parent=1 // pred_check_branch
      %62 = sbr.rel (0) target = $region13
    $region12: #{tpu_custom_call.1} parent=1 // pred_region
      %s64 = ssub.s32 64, 64
      %65 = vsyncadd [#allocation6], %s64
      %s67 = sshll.u32 [#allocation7], 4
      %s68 = int_to_ptr.vmem [resolvable:$true] %s67
      %70 = dma.hbm_to_vmem [thread:$0]  %s2, 64, %s68, [#allocation6]
    $region13: #{tpu_custom_call.1} parent=1 // pred_fallthru
      _
    // Predicated region
    $region14: #{tpu_custom_call.1} parent=1 // pred_check
      _
    $region15: #{tpu_custom_call.1} parent=1 // pred_check_branch
      %72 = sbr.rel (0) target = $region17
    $region16: #{tpu_custom_call.1} parent=1 // pred_region
      %s74 = ssub.s32 2048, 2048
      %75 = vsyncadd [#allocation9], %s74
      %s76 = sshll.u32 [#allocation8], 4
      %s77 = int_to_ptr.vmem [resolvable:$true] %s76
      %82 = dma.hbm_to_vmem [thread:$0]  %s3, 2048, %s77, [#allocation9], 128, 128, 8
    $region17: #{tpu_custom_call.1} parent=1 // pred_fallthru
      _
    // Predicated region
    $region18: #{tpu_custom_call.1} parent=1 // pred_check
      _
    $region19: #{tpu_custom_call.1} parent=1 // pred_check_branch
      %84 = sbr.rel (0) target = $region21
    $region20: #{tpu_custom_call.1} parent=1 // pred_region
      %s86 = ssub.s32 16, 16
      %87 = vsyncadd [#allocation9], %s86
      %s89 = sshll.u32 [#allocation10], 4
      %s90 = int_to_ptr.vmem [resolvable:$true] %s89
      %92 = dma.hbm_to_vmem [thread:$0]  %s4, 16, %s90, [#allocation9]
    $region21: #{tpu_custom_call.1} parent=1 // pred_fallthru
      _
    // Predicated region
    $region22: #{tpu_custom_call.1} parent=1 // pred_check
      _
    $region23: #{tpu_custom_call.1} parent=1 // pred_check_branch
      %94 = sbr.rel (0) target = $region25
    $region24: #{tpu_custom_call.1} parent=1 // pred_region
      %s96 = ssub.s32 8192, 8192
      %97 = vsyncadd [#allocation12], %s96
      %s98 = sshll.u32 [#allocation11], 4
      %s99 = int_to_ptr.vmem [resolvable:$true] %s98
      %104 = dma.hbm_to_vmem [thread:$0]  %s5, 8192, %s99, [#allocation12], 128, 128, 8
    $region25: #{tpu_custom_call.1} parent=1 // pred_fallthru
      _
    // Predicated region
    $region26: #{tpu_custom_call.1} parent=1 // pred_check
      _
    $region27: #{tpu_custom_call.1} parent=1 // pred_check_branch
      %106 = sbr.rel (0) target = $region29
    $region28: #{tpu_custom_call.1} parent=1 // pred_region
      %s108 = ssub.s32 16, 16
      %109 = vsyncadd [#allocation12], %s108
      %s111 = sshll.u32 [#allocation13], 4
      %s112 = int_to_ptr.vmem [resolvable:$true] %s111
      %114 = dma.hbm_to_vmem [thread:$0]  %s6, 16, %s112, [#allocation12]
    $region29: #{tpu_custom_call.1} parent=1 // pred_fallthru
      _
    // Predicated region
    $region30: #{tpu_custom_call.1} parent=1 // pred_check
      _
    $region31: #{tpu_custom_call.1} parent=1 // pred_check_branch
      %116 = sbr.rel (0) target = $region33
    $region32: #{tpu_custom_call.1} parent=1 // pred_region
      %s118 = ssub.s32 16384, 16384
      %119 = vsyncadd [#allocation15], %s118
      %s120 = sshll.u32 [#allocation14], 4
      %s121 = int_to_ptr.vmem [resolvable:$true] %s120
      %126 = dma.hbm_to_vmem [thread:$0]  %s7, 16384, %s121, [#allocation15], 256, 256, 16
    $region33: #{tpu_custom_call.1} parent=1 // pred_fallthru
      _
    // Predicated region
    $region34: #{tpu_custom_call.1} parent=1 // pred_check
      _
    $region35: #{tpu_custom_call.1} parent=1 // pred_check_branch
      %128 = sbr.rel (0) target = $region37
    $region36: #{tpu_custom_call.1} parent=1 // pred_region
      %s130 = ssub.s32 32, 32
      %131 = vsyncadd [#allocation15], %s130
      %s133 = sshll.u32 [#allocation16], 4
      %s134 = int_to_ptr.vmem [resolvable:$true] %s133
      %136 = dma.hbm_to_vmem [thread:$0]  %s8, 32, %s134, [#allocation15]
    $region37: #{tpu_custom_call.1} parent=1 // pred_fallthru
      _
    // Predicated region
    $region38: #{tpu_custom_call.1} parent=1 // pred_check
      _
    $region39: #{tpu_custom_call.1} parent=1 // pred_check_branch
      %138 = sbr.rel (0) target = $region41
    $region40: #{tpu_custom_call.1} parent=1 // pred_region
      %s140 = ssub.s32 65536, 65536
      %141 = vsyncadd [#allocation18], %s140
      %s142 = sshll.u32 [#allocation17], 4
      %s143 = int_to_ptr.vmem [resolvable:$true] %s142
      %148 = dma.hbm_to_vmem [thread:$0]  %s9, 65536, %s143, [#allocation18], 1024, 1024, 64
    $region41: #{tpu_custom_call.1} parent=1 // pred_fallthru
      _
    // Predicated region
    $region42: #{tpu_custom_call.1} parent=1 // pred_check
      _
    $region43: #{tpu_custom_call.1} parent=1 // pred_check_branch
      %150 = sbr.rel (0) target = $region45
    $region44: #{tpu_custom_call.1} parent=1 // pred_region
      %s152 = ssub.s32 128, 128
      %153 = vsyncadd [#allocation18], %s152
      %s155 = sshll.u32 [#allocation19], 4
      %s156 = int_to_ptr.vmem [resolvable:$true] %s155
      %158 = dma.hbm_to_vmem [thread:$0]  %s10, 128, %s156, [#allocation18]
    $region45: #{tpu_custom_call.1} parent=1 // pred_fallthru
      _
    // Predicated region
    $region46: #{tpu_custom_call.1} parent=1 // pred_check
      _
    $region47: #{tpu_custom_call.1} parent=1 // pred_check_branch
      %160 = sbr.rel (0) target = $region49
    $region48: #{tpu_custom_call.1} parent=1 // pred_region
      %s162 = ssub.s32 20480, 20480
      %163 = vsyncadd [#allocation21], %s162
      %s164 = sshll.u32 [#allocation20], 4
      %s165 = int_to_ptr.vmem [resolvable:$true] %s164
      %170 = dma.hbm_to_vmem [thread:$0]  %s11, 20480, %s165, [#allocation21], 640, 640, 40
    $region49: #{tpu_custom_call.1} parent=1 // pred_fallthru
      _
    // Predicated region
    $region50: #{tpu_custom_call.1} parent=1 // pred_check
      _
    $region51: #{tpu_custom_call.1} parent=1 // pred_check_branch
      %172 = sbr.rel (0) target = $region53
    $region52: #{tpu_custom_call.1} parent=1 // pred_region
      %s174 = ssub.s32 80, 80
      %175 = vsyncadd [#allocation21], %s174
      %s177 = sshll.u32 [#allocation22], 4
      %s178 = int_to_ptr.vmem [resolvable:$true] %s177
      %180 = dma.hbm_to_vmem [thread:$0]  %s12, 80, %s178, [#allocation21]
    $region53: #{tpu_custom_call.1} parent=1 // pred_fallthru
      _
    // Predicated region
    $region54: #{tpu_custom_call.1} parent=1 // pred_check
      _
    $region55: #{tpu_custom_call.1} parent=1 // pred_check_branch
      %182 = sbr.rel (0) target = $region57
    $region56: #{tpu_custom_call.1} parent=1 // pred_region
      %s184 = ssub.s32 2048, 2048
      %185 = vsyncadd [#allocation24], %s184
      %s186 = sshll.u32 [#allocation23], 4
      %s187 = int_to_ptr.vmem [resolvable:$true] %s186
      %192 = dma.hbm_to_vmem [thread:$0]  %s13, 2048, %s187, [#allocation24], 128, 128, 8
    $region57: #{tpu_custom_call.1} parent=1 // pred_fallthru
      _
    // Predicated region
    $region58: #{tpu_custom_call.1} parent=1 // pred_check
      _
    $region59: #{tpu_custom_call.1} parent=1 // pred_check_branch
      %194 = sbr.rel (0) target = $region61
    $region60: #{tpu_custom_call.1} parent=1 // pred_region
      %s196 = ssub.s32 16, 16
      %197 = vsyncadd [#allocation24], %s196
      %s199 = sshll.u32 [#allocation25], 4
      %s200 = int_to_ptr.vmem [resolvable:$true] %s199
      %202 = dma.hbm_to_vmem [thread:$0]  %s14, 16, %s200, [#allocation24]
    $region61: #{tpu_custom_call.1} parent=1 // pred_fallthru
      _
    // Predicated region
    $region62: #{tpu_custom_call.1} parent=1 // pred_check
      _
    $region63: #{tpu_custom_call.1} parent=1 // pred_check_branch
      %204 = sbr.rel (0) target = $region65
    $region64: #{tpu_custom_call.1} parent=1 // pred_region
      %s206 = ssub.s32 8192, 8192
      %207 = vsyncadd [#allocation27], %s206
      %s208 = sshll.u32 [#allocation26], 4
      %s209 = int_to_ptr.vmem [resolvable:$true] %s208
      %214 = dma.hbm_to_vmem [thread:$0]  %s15, 8192, %s209, [#allocation27], 128, 128, 8
    $region65: #{tpu_custom_call.1} parent=1 // pred_fallthru
      _
    // Predicated region
    $region66: #{tpu_custom_call.1} parent=1 // pred_check
      _
    $region67: #{tpu_custom_call.1} parent=1 // pred_check_branch
      %216 = sbr.rel (0) target = $region69
    $region68: #{tpu_custom_call.1} parent=1 // pred_region
      %s218 = ssub.s32 16, 16
      %219 = vsyncadd [#allocation27], %s218
      %s221 = sshll.u32 [#allocation28], 4
      %s222 = int_to_ptr.vmem [resolvable:$true] %s221
      %224 = dma.hbm_to_vmem [thread:$0]  %s16, 16, %s222, [#allocation27]
    $region69: #{tpu_custom_call.1} parent=1 // pred_fallthru
      _
    // Predicated region
    $region70: #{tpu_custom_call.1} parent=1 // pred_check
      _
    $region71: #{tpu_custom_call.1} parent=1 // pred_check_branch
      %226 = sbr.rel (0) target = $region73
    $region72: #{tpu_custom_call.1} parent=1 // pred_region
      %227 = dma.done [#allocation3], 384
    $region73: #{tpu_custom_call.1} parent=1 // pred_fallthru
      _
    // Predicated region
    $region74: #{tpu_custom_call.1} parent=1 // pred_check
      _
    $region75: #{tpu_custom_call.1} parent=1 // pred_check_branch
      %229 = sbr.rel (0) target = $region77
    $region76: #{tpu_custom_call.1} parent=1 // pred_region
      %230 = dma.done [#allocation6], 64
    $region77: #{tpu_custom_call.1} parent=1 // pred_fallthru
      _
    // Predicated region
    $region78: #{tpu_custom_call.1} parent=1 // pred_check
      _
    $region79: #{tpu_custom_call.1} parent=1 // pred_check_branch
      %232 = sbr.rel (0) target = $region81
    $region80: #{tpu_custom_call.1} parent=1 // pred_region
      %233 = dma.done [#allocation6], 64
    $region81: #{tpu_custom_call.1} parent=1 // pred_fallthru
      _
    // Predicated region
    $region82: #{tpu_custom_call.1} parent=1 // pred_check
      _
    $region83: #{tpu_custom_call.1} parent=1 // pred_check_branch
      %235 = sbr.rel (0) target = $region85
    $region84: #{tpu_custom_call.1} parent=1 // pred_region
      %236 = dma.done [#allocation9], 2048
    $region85: #{tpu_custom_call.1} parent=1 // pred_fallthru
      _
    // Predicated region
    $region86: #{tpu_custom_call.1} parent=1 // pred_check
      _
    $region87: #{tpu_custom_call.1} parent=1 // pred_check_branch
      %238 = sbr.rel (0) target = $region89
    $region88: #{tpu_custom_call.1} parent=1 // pred_region
      %239 = dma.done [#allocation9], 16
    $region89: #{tpu_custom_call.1} parent=1 // pred_fallthru
      _
    // Predicated region
    $region90: #{tpu_custom_call.1} parent=1 // pred_check
      _
    $region91: #{tpu_custom_call.1} parent=1 // pred_check_branch
      %241 = sbr.rel (0) target = $region93
    $region92: #{tpu_custom_call.1} parent=1 // pred_region
      %242 = dma.done [#allocation12], 8192
    $region93: #{tpu_custom_call.1} parent=1 // pred_fallthru
      _
    // Predicated region
    $region94: #{tpu_custom_call.1} parent=1 // pred_check
      _
    $region95: #{tpu_custom_call.1} parent=1 // pred_check_branch
      %244 = sbr.rel (0) target = $region97
    $region96: #{tpu_custom_call.1} parent=1 // pred_region
      %245 = dma.done [#allocation12], 16
    $region97: #{tpu_custom_call.1} parent=1 // pred_fallthru
      _
    // Predicated region
    $region98: #{tpu_custom_call.1} parent=1 // pred_check
      _
    $region99: #{tpu_custom_call.1} parent=1 // pred_check_branch
      %247 = sbr.rel (0) target = $region101
    $region100: #{tpu_custom_call.1} parent=1 // pred_region
      %248 = dma.done [#allocation15], 16384
    $region101: #{tpu_custom_call.1} parent=1 // pred_fallthru
      _
    // Predicated region
    $region102: #{tpu_custom_call.1} parent=1 // pred_check
      _
    $region103: #{tpu_custom_call.1} parent=1 // pred_check_branch
      %250 = sbr.rel (0) target = $region105
    $region104: #{tpu_custom_call.1} parent=1 // pred_region
      %251 = dma.done [#allocation15], 32
    $region105: #{tpu_custom_call.1} parent=1 // pred_fallthru
      _
    // Predicated region
    $region106: #{tpu_custom_call.1} parent=1 // pred_check
      _
    $region107: #{tpu_custom_call.1} parent=1 // pred_check_branch
      %253 = sbr.rel (0) target = $region109
    $region108: #{tpu_custom_call.1} parent=1 // pred_region
      %254 = dma.done [#allocation18], 65536
    $region109: #{tpu_custom_call.1} parent=1 // pred_fallthru
      _
    // Predicated region
    $region110: #{tpu_custom_call.1} parent=1 // pred_check
      _
    $region111: #{tpu_custom_call.1} parent=1 // pred_check_branch
      %256 = sbr.rel (0) target = $region113
    $region112: #{tpu_custom_call.1} parent=1 // pred_region
      %257 = dma.done [#allocation18], 128
    $region113: #{tpu_custom_call.1} parent=1 // pred_fallthru
      _
    // Predicated region
    $region114: #{tpu_custom_call.1} parent=1 // pred_check
      _
    $region115: #{tpu_custom_call.1} parent=1 // pred_check_branch
      %259 = sbr.rel (0) target = $region117
    $region116: #{tpu_custom_call.1} parent=1 // pred_region
      %260 = dma.done [#allocation21], 20480
    $region117: #{tpu_custom_call.1} parent=1 // pred_fallthru
      _
    // Predicated region
    $region118: #{tpu_custom_call.1} parent=1 // pred_check
      _
    $region119: #{tpu_custom_call.1} parent=1 // pred_check_branch
      %262 = sbr.rel (0) target = $region121
    $region120: #{tpu_custom_call.1} parent=1 // pred_region
      %263 = dma.done [#allocation21], 80
    $region121: #{tpu_custom_call.1} parent=1 // pred_fallthru
      _
    // Predicated region
    $region122: #{tpu_custom_call.1} parent=1 // pred_check
      _
    $region123: #{tpu_custom_call.1} parent=1 // pred_check_branch
      %265 = sbr.rel (0) target = $region125
    $region124: #{tpu_custom_call.1} parent=1 // pred_region
      %266 = dma.done [#allocation24], 2048
    $region125: #{tpu_custom_call.1} parent=1 // pred_fallthru
      _
    // Predicated region
    $region126: #{tpu_custom_call.1} parent=1 // pred_check
      _
    $region127: #{tpu_custom_call.1} parent=1 // pred_check_branch
      %268 = sbr.rel (0) target = $region129
    $region128: #{tpu_custom_call.1} parent=1 // pred_region
      %269 = dma.done [#allocation24], 16
    $region129: #{tpu_custom_call.1} parent=1 // pred_fallthru
      _
    // Predicated region
    $region130: #{tpu_custom_call.1} parent=1 // pred_check
      _
    $region131: #{tpu_custom_call.1} parent=1 // pred_check_branch
      %271 = sbr.rel (0) target = $region133
    $region132: #{tpu_custom_call.1} parent=1 // pred_region
      %272 = dma.done [#allocation27], 8192
    $region133: #{tpu_custom_call.1} parent=1 // pred_fallthru
      _
    // Predicated region
    $region134: #{tpu_custom_call.1} parent=1 // pred_check
      _
    $region135: #{tpu_custom_call.1} parent=1 // pred_check_branch
      %274 = sbr.rel (0) target = $region137
    $region136: #{tpu_custom_call.1} parent=1 // pred_region
      %275 = dma.done [#allocation27], 16
    $region137: #{tpu_custom_call.1} parent=1 // pred_fallthru
      _
    %v276 = vld [vmem:[#allocation2] sm:$0xff]
    %v277 = vld [vmem:[#allocation2 + $0x8] sm:$0xff]
    %v278 = vld [vmem:[#allocation2 + $0x10] sm:$0x3]
    %v279 = vld [vmem:[#allocation8] sm:$0xff]
    %v280 = vld [vmem:[#allocation8 + $0x8] sm:$0xff]
    %v281 = vld [vmem:[#allocation8 + $0x10] sm:$0xff]
    %v282 = vld [vmem:[#allocation8 + $0x18] sm:$0xff]
    %v283 = vld [vmem:[#allocation8 + $0x20] sm:$0xff]
    %v284 = vld [vmem:[#allocation8 + $0x28] sm:$0xff]
    %v285 = vld [vmem:[#allocation8 + $0x30] sm:$0xff]
    %v286 = vld [vmem:[#allocation8 + $0x38] sm:$0xff]
    %v287 = vld [vmem:[#allocation8 + $0x40] sm:$0xff]
    %v288 = vld [vmem:[#allocation8 + $0x48] sm:$0xff]
    %v289 = vld [vmem:[#allocation8 + $0x50] sm:$0xff]
    %v290 = vld [vmem:[#allocation8 + $0x58] sm:$0xff]
    %v291 = vld [vmem:[#allocation8 + $0x60] sm:$0xff]
    %v292 = vld [vmem:[#allocation8 + $0x68] sm:$0xff]
    %v293 = vld [vmem:[#allocation8 + $0x70] sm:$0xff]
    %v294 = vld [vmem:[#allocation8 + $0x78] sm:$0xff]
    %v295 = vld [vmem:[#allocation10] sm:$0x1]
    %v297 = vlaneseq
    %v298 = vshrl.u32 %v297, 7
    %v299 = vsub.s32 0, %v298
    %v300 = vrot.slane %v295, %v299
    %302 = vmatprep.subr.mxu0 0.0
    %303 = vmatpush1.msra.mxu0 %v279
    %304 = vmatprep.subr.mxu0 0.0
    %305 = vmatpush1.msra.mxu0 %v280
    %306 = vmatprep.subr.mxu0 0.0
    %307 = vmatpush1.msra.mxu0 %v281
    %308 = vmatprep.subr.mxu0 0.0
    %309 = vmatpush1.msra.mxu0 %v282
    %310 = vmatprep.subr.mxu0 0.0
    %311 = vmatpush1.msra.mxu0 %v283
    %312 = vmatprep.subr.mxu0 0.0
    %313 = vmatpush1.msra.mxu0 %v284
    %314 = vmatprep.subr.mxu0 0.0
    %315 = vmatpush1.msra.mxu0 %v285
    %316 = vmatprep.subr.mxu0 0.0
    %317 = vmatpush1.msra.mxu0 %v286
    %318 = vmatprep.subr.mxu0 0.0
    %319 = vmatpush1.msra.mxu0 %v287
    %320 = vmatprep.subr.mxu0 0.0
    %321 = vmatpush1.msra.mxu0 %v288
    %322 = vmatprep.subr.mxu0 0.0
    %323 = vmatpush1.msra.mxu0 %v289
    %324 = vmatprep.subr.mxu0 0.0
    %325 = vmatpush1.msra.mxu0 %v290
    %326 = vmatprep.subr.mxu0 0.0
    %327 = vmatpush1.msra.mxu0 %v291
    %328 = vmatprep.subr.mxu0 0.0
    %329 = vmatpush1.msra.mxu0 %v292
    %330 = vmatprep.subr.mxu0 0.0
    %331 = vmatpush1.msra.mxu0 %v293
    %332 = vmatprep.subr.mxu0 0.0
    %333 = vmatpush1.msra.mxu0 %v294
    %334 = vmatprep.subr.mxu0 0.0
    %335 = vmatpush1.msra.mxu0 0.0
    %336 = vmatprep.subr.mxu0 0.0
    %337 = vmatpush1.msra.mxu0 0.0
    %338 = vmatprep.subr.mxu0 0.0
    %339 = vmatpush1.msra.mxu0 0.0
    %340 = vmatprep.subr.mxu0 0.0
    %341 = vmatpush1.msra.mxu0 0.0
    %342 = vmatprep.subr.mxu0 0.0
    %343 = vmatpush1.msra.mxu0 0.0
    %344 = vmatprep.subr.mxu0 0.0
    %345 = vmatpush1.msra.mxu0 0.0
    %346 = vmatprep.subr.mxu0 0.0
    %347 = vmatpush1.msra.mxu0 0.0
    %348 = vmatprep.subr.mxu0 0.0
    %349 = vmatpush1.msra.mxu0 0.0
    %350 = vmatprep.subr.mxu0 0.0
    %351 = vmatpush1.msra.mxu0 0.0
    %352 = vmatprep.subr.mxu0 0.0
    %353 = vmatpush1.msra.mxu0 0.0
    %354 = vmatprep.subr.mxu0 0.0
    %355 = vmatpush1.msra.mxu0 0.0
    %356 = vmatprep.subr.mxu0 0.0
    %357 = vmatpush1.msra.mxu0 0.0
    %358 = vmatprep.subr.mxu0 0.0
    %359 = vmatpush1.msra.mxu0 0.0
    %360 = vmatprep.subr.mxu0 0.0
    %361 = vmatpush1.msra.mxu0 0.0
    %362 = vmatprep.subr.mxu0 0.0
    %363 = vmatpush1.msra.mxu0 0.0
    %364 = vmatprep.subr.mxu0 0.0
    %365 = vmatpush1.msra.mxu0 0.0
    %366 = vmatprep.mubr.f32.mxu0 0.0
    %367 = vmatmul.mubr.f32.gmra.mrb[0].mxu0 %v276
    %v368 = vpop.f32.mrb[0].mxu0
    %v369 = vadd.f32 %v300, %v368
    %v370 = vpop.f32.mrb[0].mxu0
    %371 = vmatprep.mubr.f32.mxu0 0.0
    %372 = vmatmul.mubr.f32.gmra.mrb[0].mxu0 %v277
    %v373 = vpop.f32.mrb[0].mxu0
    %v374 = vadd.f32 %v300, %v373
    %v375 = vpop.f32.mrb[0].mxu0
    %376 = vmatprep.mubr.f32.mxu0 0.0
    %377 = vmatmul.mubr.f32.gmra.mrb[0].mxu0 %v278
    %v378 = vpop.f32.mrb[0].mxu0
    %v379 = vadd.f32 %v300, %v378
    %v380 = vpop.f32.mrb[0].mxu0
    %381 = vdwg.mxu0
    %v382 = vmax.f32 %v369, 0.0
    %v383 = vmax.f32 %v374, 0.0
    %v384 = vmax.f32 %v379, 0.0
    %v386 = vrot.slane %v382, 2
    %v388 = vrot.slane %v382, 6
    %v391 = vrot.slane %v383, 6
    %v393 = vrot.slane %v383, 2
    %v394 = vrot.slane %v393, 2
    %v395 = vrot.slane %v391, 2
    %v400 = vrot.slane %v384, 2
    %vm402 = vcmask 1041408
    %v403 = vsel %vm402, %v388, %v391
    %vm404 = vcmask 1043456
    %v405 = vsel %vm404, %v382, %v386
    %v406 = vsel %vm404, %v386, %v394
    %v407 = vsel %vm404, %v403, %v395
    %v408 = vsel %vm404, %v383, %v393
    %vm409 = vcmask 1045504
    %v410 = vsel %vm409, %v405, %v393
    %v411 = vsel %vm409, %v406, %v394
    %v412 = vsel %vm409, %v407, %v395
    %v413 = vsel %vm409, %v408, %v400
    %v414 = vld [vmem:[#allocation11] sm:$0xff]
    %v415 = vld [vmem:[#allocation11 + $0x8] sm:$0xff]
    %v416 = vld [vmem:[#allocation11 + $0x10] sm:$0xff]
    %v417 = vld [vmem:[#allocation11 + $0x18] sm:$0xff]
    %v418 = vld [vmem:[#allocation11 + $0x20] sm:$0xff]
    %v419 = vld [vmem:[#allocation11 + $0x28] sm:$0xff]
    %v420 = vld [vmem:[#allocation11 + $0x30] sm:$0xff]
    %v421 = vld [vmem:[#allocation11 + $0x38] sm:$0xff]
    %v422 = vld [vmem:[#allocation11 + $0x40] sm:$0xff]
    %v423 = vld [vmem:[#allocation11 + $0x48] sm:$0xff]
    %v424 = vld [vmem:[#allocation11 + $0x50] sm:$0xff]
    %v425 = vld [vmem:[#allocation11 + $0x58] sm:$0xff]
    %v426 = vld [vmem:[#allocation11 + $0x60] sm:$0xff]
    %v427 = vld [vmem:[#allocation11 + $0x68] sm:$0xff]
    %v428 = vld [vmem:[#allocation11 + $0x70] sm:$0xff]
    %v429 = vld [vmem:[#allocation11 + $0x78] sm:$0xff]
    %v430 = vld [vmem:[#allocation11 + $0x80] sm:$0xff]
    %v431 = vld [vmem:[#allocation11 + $0x88] sm:$0xff]
    %v432 = vld [vmem:[#allocation11 + $0x90] sm:$0xff]
    %v433 = vld [vmem:[#allocation11 + $0x98] sm:$0xff]
    %v434 = vld [vmem:[#allocation11 + $0xa0] sm:$0xff]
    %v435 = vld [vmem:[#allocation11 + $0xa8] sm:$0xff]
    %v436 = vld [vmem:[#allocation11 + $0xb0] sm:$0xff]
    %v437 = vld [vmem:[#allocation11 + $0xb8] sm:$0xff]
    %v438 = vld [vmem:[#allocation11 + $0xc0] sm:$0xff]
    %v439 = vld [vmem:[#allocation11 + $0xc8] sm:$0xff]
    %v440 = vld [vmem:[#allocation11 + $0xd0] sm:$0xff]
    %v441 = vld [vmem:[#allocation11 + $0xd8] sm:$0xff]
    %v442 = vld [vmem:[#allocation11 + $0xe0] sm:$0xff]
    %v443 = vld [vmem:[#allocation11 + $0xe8] sm:$0xff]
    %v444 = vld [vmem:[#allocation11 + $0xf0] sm:$0xff]
    %v445 = vld [vmem:[#allocation11 + $0xf8] sm:$0xff]
    %v446 = vld [vmem:[#allocation11 + $0x100] sm:$0xff]
    %v447 = vld [vmem:[#allocation11 + $0x108] sm:$0xff]
    %v448 = vld [vmem:[#allocation11 + $0x110] sm:$0xff]
    %v449 = vld [vmem:[#allocation11 + $0x118] sm:$0xff]
    %v450 = vld [vmem:[#allocation11 + $0x120] sm:$0xff]
    %v451 = vld [vmem:[#allocation11 + $0x128] sm:$0xff]
    %v452 = vld [vmem:[#allocation11 + $0x130] sm:$0xff]
    %v453 = vld [vmem:[#allocation11 + $0x138] sm:$0xff]
    %v454 = vld [vmem:[#allocation11 + $0x140] sm:$0xff]
    %v455 = vld [vmem:[#allocation11 + $0x148] sm:$0xff]
    %v456 = vld [vmem:[#allocation11 + $0x150] sm:$0xff]
    %v457 = vld [vmem:[#allocation11 + $0x158] sm:$0xff]
    %v458 = vld [vmem:[#allocation11 + $0x160] sm:$0xff]
    %v459 = vld [vmem:[#allocation11 + $0x168] sm:$0xff]
    %v460 = vld [vmem:[#allocation11 + $0x170] sm:$0xff]
    %v461 = vld [vmem:[#allocation11 + $0x178] sm:$0xff]
    %v462 = vld [vmem:[#allocation11 + $0x180] sm:$0xff]
    %v463 = vld [vmem:[#allocation11 + $0x188] sm:$0xff]
    %v464 = vld [vmem:[#allocation11 + $0x190] sm:$0xff]
    %v465 = vld [vmem:[#allocation11 + $0x198] sm:$0xff]
    %v466 = vld [vmem:[#allocation11 + $0x1a0] sm:$0xff]
    %v467 = vld [vmem:[#allocation11 + $0x1a8] sm:$0xff]
    %v468 = vld [vmem:[#allocation11 + $0x1b0] sm:$0xff]
    %v469 = vld [vmem:[#allocation11 + $0x1b8] sm:$0xff]
    %v470 = vld [vmem:[#allocation11 + $0x1c0] sm:$0xff]
    %v471 = vld [vmem:[#allocation11 + $0x1c8] sm:$0xff]
    %v472 = vld [vmem:[#allocation11 + $0x1d0] sm:$0xff]
    %v473 = vld [vmem:[#allocation11 + $0x1d8] sm:$0xff]
    %v474 = vld [vmem:[#allocation11 + $0x1e0] sm:$0xff]
    %v475 = vld [vmem:[#allocation11 + $0x1e8] sm:$0xff]
    %v476 = vld [vmem:[#allocation11 + $0x1f0] sm:$0xff]
    %v477 = vld [vmem:[#allocation11 + $0x1f8] sm:$0xff]
    %v478 = vld [vmem:[#allocation13] sm:$0x1]
    %v480 = vlaneseq
    %v481 = vshrl.u32 %v480, 7
    %v482 = vsub.s32 0, %v481
    %v483 = vrot.slane %v478, %v482
    %485 = vmatprep.subr.mxu0 0.0
    %486 = vmatpush1.msra.mxu0 %v414
    %487 = vmatprep.subr.mxu0 0.0
    %488 = vmatpush1.msra.mxu0 %v415
    %489 = vmatprep.subr.mxu0 0.0
    %490 = vmatpush1.msra.mxu0 %v416
    %491 = vmatprep.subr.mxu0 0.0
    %492 = vmatpush1.msra.mxu0 %v417
    %493 = vmatprep.subr.mxu0 0.0
    %494 = vmatpush1.msra.mxu0 %v418
    %495 = vmatprep.subr.mxu0 0.0
    %496 = vmatpush1.msra.mxu0 %v419
    %497 = vmatprep.subr.mxu0 0.0
    %498 = vmatpush1.msra.mxu0 %v420
    %499 = vmatprep.subr.mxu0 0.0
    %500 = vmatpush1.msra.mxu0 %v421
    %501 = vmatprep.subr.mxu0 0.0
    %502 = vmatpush1.msra.mxu0 %v422
    %503 = vmatprep.subr.mxu0 0.0
    %504 = vmatpush1.msra.mxu0 %v423
    %505 = vmatprep.subr.mxu0 0.0
    %506 = vmatpush1.msra.mxu0 %v424
    %507 = vmatprep.subr.mxu0 0.0
    %508 = vmatpush1.msra.mxu0 %v425
    %509 = vmatprep.subr.mxu0 0.0
    %510 = vmatpush1.msra.mxu0 %v426
    %511 = vmatprep.subr.mxu0 0.0
    %512 = vmatpush1.msra.mxu0 %v427
    %513 = vmatprep.subr.mxu0 0.0
    %514 = vmatpush1.msra.mxu0 %v428
    %515 = vmatprep.subr.mxu0 0.0
    %516 = vmatpush1.msra.mxu0 %v429
    %517 = vmatprep.subr.mxu0 0.0
    %518 = vmatpush1.msra.mxu0 %v430
    %519 = vmatprep.subr.mxu0 0.0
    %520 = vmatpush1.msra.mxu0 %v431
    %521 = vmatprep.subr.mxu0 0.0
    %522 = vmatpush1.msra.mxu0 %v432
    %523 = vmatprep.subr.mxu0 0.0
    %524 = vmatpush1.msra.mxu0 %v433
    %525 = vmatprep.subr.mxu0 0.0
    %526 = vmatpush1.msra.mxu0 %v434
    %527 = vmatprep.subr.mxu0 0.0
    %528 = vmatpush1.msra.mxu0 %v435
    %529 = vmatprep.subr.mxu0 0.0
    %530 = vmatpush1.msra.mxu0 %v436
    %531 = vmatprep.subr.mxu0 0.0
    %532 = vmatpush1.msra.mxu0 %v437
    %533 = vmatprep.subr.mxu0 0.0
    %534 = vmatpush1.msra.mxu0 %v438
    %535 = vmatprep.subr.mxu0 0.0
    %536 = vmatpush1.msra.mxu0 %v439
    %537 = vmatprep.subr.mxu0 0.0
    %538 = vmatpush1.msra.mxu0 %v440
    %539 = vmatprep.subr.mxu0 0.0
    %540 = vmatpush1.msra.mxu0 %v441
    %541 = vmatprep.subr.mxu0 0.0
    %542 = vmatpush1.msra.mxu0 %v442
    %543 = vmatprep.subr.mxu0 0.0
    %544 = vmatpush1.msra.mxu0 %v443
    %545 = vmatprep.subr.mxu0 0.0
    %546 = vmatpush1.msra.mxu0 %v444
    %547 = vmatprep.subr.mxu0 0.0
    %548 = vmatpush1.msra.mxu0 %v445
    %549 = vmatprep.mubr.f32.mxu0 %v411
    %550 = vmatmul.mubr.f32.gmra.mrb[0].mxu0 %v410
    %v551 = vpop.f32.mrb[0].mxu0
    %v552 = vadd.f32 %v483, %v551
    %v553 = vpop.f32.mrb[0].mxu0
    %554 = vdwg.mxu0
    %555 = vmatprep.subr.mxu0 0.0
    %556 = vmatpush1.msra.mxu0 %v446
    %557 = vmatprep.subr.mxu0 0.0
    %558 = vmatpush1.msra.mxu0 %v447
    %559 = vmatprep.subr.mxu0 0.0
    %560 = vmatpush1.msra.mxu0 %v448
    %561 = vmatprep.subr.mxu0 0.0
    %562 = vmatpush1.msra.mxu0 %v449
    %563 = vmatprep.subr.mxu0 0.0
    %564 = vmatpush1.msra.mxu0 %v450
    %565 = vmatprep.subr.mxu0 0.0
    %566 = vmatpush1.msra.mxu0 %v451
    %567 = vmatprep.subr.mxu0 0.0
    %568 = vmatpush1.msra.mxu0 %v452
    %569 = vmatprep.subr.mxu0 0.0
    %570 = vmatpush1.msra.mxu0 %v453
    %571 = vmatprep.subr.mxu0 0.0
    %572 = vmatpush1.msra.mxu0 %v454
    %573 = vmatprep.subr.mxu0 0.0
    %574 = vmatpush1.msra.mxu0 %v455
    %575 = vmatprep.subr.mxu0 0.0
    %576 = vmatpush1.msra.mxu0 %v456
    %577 = vmatprep.subr.mxu0 0.0
    %578 = vmatpush1.msra.mxu0 %v457
    %579 = vmatprep.subr.mxu0 0.0
    %580 = vmatpush1.msra.mxu0 %v458
    %581 = vmatprep.subr.mxu0 0.0
    %582 = vmatpush1.msra.mxu0 %v459
    %583 = vmatprep.subr.mxu0 0.0
    %584 = vmatpush1.msra.mxu0 %v460
    %585 = vmatprep.subr.mxu0 0.0
    %586 = vmatpush1.msra.mxu0 %v461
    %587 = vmatprep.subr.mxu0 0.0
    %588 = vmatpush1.msra.mxu0 %v462
    %589 = vmatprep.subr.mxu0 0.0
    %590 = vmatpush1.msra.mxu0 %v463
    %591 = vmatprep.subr.mxu0 0.0
    %592 = vmatpush1.msra.mxu0 %v464
    %593 = vmatprep.subr.mxu0 0.0
    %594 = vmatpush1.msra.mxu0 %v465
    %595 = vmatprep.subr.mxu0 0.0
    %596 = vmatpush1.msra.mxu0 %v466
    %597 = vmatprep.subr.mxu0 0.0
    %598 = vmatpush1.msra.mxu0 %v467
    %599 = vmatprep.subr.mxu0 0.0
    %600 = vmatpush1.msra.mxu0 %v468
    %601 = vmatprep.subr.mxu0 0.0
    %602 = vmatpush1.msra.mxu0 %v469
    %603 = vmatprep.subr.mxu0 0.0
    %604 = vmatpush1.msra.mxu0 %v470
    %605 = vmatprep.subr.mxu0 0.0
    %606 = vmatpush1.msra.mxu0 %v471
    %607 = vmatprep.subr.mxu0 0.0
    %608 = vmatpush1.msra.mxu0 %v472
    %609 = vmatprep.subr.mxu0 0.0
    %610 = vmatpush1.msra.mxu0 %v473
    %611 = vmatprep.subr.mxu0 0.0
    %612 = vmatpush1.msra.mxu0 %v474
    %613 = vmatprep.subr.mxu0 0.0
    %614 = vmatpush1.msra.mxu0 %v475
    %615 = vmatprep.subr.mxu0 0.0
    %616 = vmatpush1.msra.mxu0 %v476
    %617 = vmatprep.subr.mxu0 0.0
    %618 = vmatpush1.msra.mxu0 %v477
    %619 = vmatprep.mubr.f32.mxu0 %v413
    %620 = vmatmul.mubr.f32.gmra.mrb[0].mxu0 %v412
    %v621 = vpop.f32.mrb[0].mxu0
    %v622 = vadd.f32 %v552, %v621
    %v623 = vpop.f32.mrb[0].mxu0
    %624 = vdwg.mxu0
    %v625 = vmax.f32 %v622, 0.0
    %v627 = vrot.slane %v625, 2
    %v629 = vrot.slane %v625, 4
    %v631 = vrot.slane %v625, 6
    %v633 = vld [vmem:[#allocation14] sm:$0xff]
    %v634 = vld [vmem:[#allocation14 + $0x8] sm:$0xff]
    %v635 = vld [vmem:[#allocation14 + $0x10] sm:$0xff]
    %v636 = vld [vmem:[#allocation14 + $0x18] sm:$0xff]
    %v637 = vld [vmem:[#allocation14 + $0x20] sm:$0xff]
    %v638 = vld [vmem:[#allocation14 + $0x28] sm:$0xff]
    %v639 = vld [vmem:[#allocation14 + $0x30] sm:$0xff]
    %v640 = vld [vmem:[#allocation14 + $0x38] sm:$0xff]
    %v641 = vld [vmem:[#allocation14 + $0x40] sm:$0xff]
    %v642 = vld [vmem:[#allocation14 + $0x48] sm:$0xff]
    %v643 = vld [vmem:[#allocation14 + $0x50] sm:$0xff]
    %v644 = vld [vmem:[#allocation14 + $0x58] sm:$0xff]
    %v645 = vld [vmem:[#allocation14 + $0x60] sm:$0xff]
    %v646 = vld [vmem:[#allocation14 + $0x68] sm:$0xff]
    %v647 = vld [vmem:[#allocation14 + $0x70] sm:$0xff]
    %v648 = vld [vmem:[#allocation14 + $0x78] sm:$0xff]
    %v649 = vld [vmem:[#allocation14 + $0x80] sm:$0xff]
    %v650 = vld [vmem:[#allocation14 + $0x88] sm:$0xff]
    %v651 = vld [vmem:[#allocation14 + $0x90] sm:$0xff]
    %v652 = vld [vmem:[#allocation14 + $0x98] sm:$0xff]
    %v653 = vld [vmem:[#allocation14 + $0xa0] sm:$0xff]
    %v654 = vld [vmem:[#allocation14 + $0xa8] sm:$0xff]
    %v655 = vld [vmem:[#allocation14 + $0xb0] sm:$0xff]
    %v656 = vld [vmem:[#allocation14 + $0xb8] sm:$0xff]
    %v657 = vld [vmem:[#allocation14 + $0xc0] sm:$0xff]
    %v658 = vld [vmem:[#allocation14 + $0xc8] sm:$0xff]
    %v659 = vld [vmem:[#allocation14 + $0xd0] sm:$0xff]
    %v660 = vld [vmem:[#allocation14 + $0xd8] sm:$0xff]
    %v661 = vld [vmem:[#allocation14 + $0xe0] sm:$0xff]
    %v662 = vld [vmem:[#allocation14 + $0xe8] sm:$0xff]
    %v663 = vld [vmem:[#allocation14 + $0xf0] sm:$0xff]
    %v664 = vld [vmem:[#allocation14 + $0xf8] sm:$0xff]
    %v665 = vld [vmem:[#allocation14 + $0x100] sm:$0xff]
    %v666 = vld [vmem:[#allocation14 + $0x108] sm:$0xff]
    %v667 = vld [vmem:[#allocation14 + $0x110] sm:$0xff]
    %v668 = vld [vmem:[#allocation14 + $0x118] sm:$0xff]
    %v669 = vld [vmem:[#allocation14 + $0x120] sm:$0xff]
    %v670 = vld [vmem:[#allocation14 + $0x128] sm:$0xff]
    %v671 = vld [vmem:[#allocation14 + $0x130] sm:$0xff]
    %v672 = vld [vmem:[#allocation14 + $0x138] sm:$0xff]
    %v673 = vld [vmem:[#allocation14 + $0x140] sm:$0xff]
    %v674 = vld [vmem:[#allocation14 + $0x148] sm:$0xff]
    %v675 = vld [vmem:[#allocation14 + $0x150] sm:$0xff]
    %v676 = vld [vmem:[#allocation14 + $0x158] sm:$0xff]
    %v677 = vld [vmem:[#allocation14 + $0x160] sm:$0xff]
    %v678 = vld [vmem:[#allocation14 + $0x168] sm:$0xff]
    %v679 = vld [vmem:[#allocation14 + $0x170] sm:$0xff]
    %v680 = vld [vmem:[#allocation14 + $0x178] sm:$0xff]
    %v681 = vld [vmem:[#allocation14 + $0x180] sm:$0xff]
    %v682 = vld [vmem:[#allocation14 + $0x188] sm:$0xff]
    %v683 = vld [vmem:[#allocation14 + $0x190] sm:$0xff]
    %v684 = vld [vmem:[#allocation14 + $0x198] sm:$0xff]
    %v685 = vld [vmem:[#allocation14 + $0x1a0] sm:$0xff]
    %v686 = vld [vmem:[#allocation14 + $0x1a8] sm:$0xff]
    %v687 = vld [vmem:[#allocation14 + $0x1b0] sm:$0xff]
    %v688 = vld [vmem:[#allocation14 + $0x1b8] sm:$0xff]
    %v689 = vld [vmem:[#allocation14 + $0x1c0] sm:$0xff]
    %v690 = vld [vmem:[#allocation14 + $0x1c8] sm:$0xff]
    %v691 = vld [vmem:[#allocation14 + $0x1d0] sm:$0xff]
    %v692 = vld [vmem:[#allocation14 + $0x1d8] sm:$0xff]
    %v693 = vld [vmem:[#allocation14 + $0x1e0] sm:$0xff]
    %v694 = vld [vmem:[#allocation14 + $0x1e8] sm:$0xff]
    %v695 = vld [vmem:[#allocation14 + $0x1f0] sm:$0xff]
    %v696 = vld [vmem:[#allocation14 + $0x1f8] sm:$0xff]
    %v697 = vld [vmem:[#allocation14 + $0x200] sm:$0xff]
    %v698 = vld [vmem:[#allocation14 + $0x208] sm:$0xff]
    %v699 = vld [vmem:[#allocation14 + $0x210] sm:$0xff]
    %v700 = vld [vmem:[#allocation14 + $0x218] sm:$0xff]
    %v701 = vld [vmem:[#allocation14 + $0x220] sm:$0xff]
    %v702 = vld [vmem:[#allocation14 + $0x228] sm:$0xff]
    %v703 = vld [vmem:[#allocation14 + $0x230] sm:$0xff]
    %v704 = vld [vmem:[#allocation14 + $0x238] sm:$0xff]
    %v705 = vld [vmem:[#allocation14 + $0x240] sm:$0xff]
    %v706 = vld [vmem:[#allocation14 + $0x248] sm:$0xff]
    %v707 = vld [vmem:[#allocation14 + $0x250] sm:$0xff]
    %v708 = vld [vmem:[#allocation14 + $0x258] sm:$0xff]
    %v709 = vld [vmem:[#allocation14 + $0x260] sm:$0xff]
    %v710 = vld [vmem:[#allocation14 + $0x268] sm:$0xff]
    %v711 = vld [vmem:[#allocation14 + $0x270] sm:$0xff]
    %v712 = vld [vmem:[#allocation14 + $0x278] sm:$0xff]
    %v713 = vld [vmem:[#allocation14 + $0x280] sm:$0xff]
    %v714 = vld [vmem:[#allocation14 + $0x288] sm:$0xff]
    %v715 = vld [vmem:[#allocation14 + $0x290] sm:$0xff]
    %v716 = vld [vmem:[#allocation14 + $0x298] sm:$0xff]
    %v717 = vld [vmem:[#allocation14 + $0x2a0] sm:$0xff]
    %v718 = vld [vmem:[#allocation14 + $0x2a8] sm:$0xff]
    %v719 = vld [vmem:[#allocation14 + $0x2b0] sm:$0xff]
    %v720 = vld [vmem:[#allocation14 + $0x2b8] sm:$0xff]
    %v721 = vld [vmem:[#allocation14 + $0x2c0] sm:$0xff]
    %v722 = vld [vmem:[#allocation14 + $0x2c8] sm:$0xff]
    %v723 = vld [vmem:[#allocation14 + $0x2d0] sm:$0xff]
    %v724 = vld [vmem:[#allocation14 + $0x2d8] sm:$0xff]
    %v725 = vld [vmem:[#allocation14 + $0x2e0] sm:$0xff]
    %v726 = vld [vmem:[#allocation14 + $0x2e8] sm:$0xff]
    %v727 = vld [vmem:[#allocation14 + $0x2f0] sm:$0xff]
    %v728 = vld [vmem:[#allocation14 + $0x2f8] sm:$0xff]
    %v729 = vld [vmem:[#allocation14 + $0x300] sm:$0xff]
    %v730 = vld [vmem:[#allocation14 + $0x308] sm:$0xff]
    %v731 = vld [vmem:[#allocation14 + $0x310] sm:$0xff]
    %v732 = vld [vmem:[#allocation14 + $0x318] sm:$0xff]
    %v733 = vld [vmem:[#allocation14 + $0x320] sm:$0xff]
    %v734 = vld [vmem:[#allocation14 + $0x328] sm:$0xff]
    %v735 = vld [vmem:[#allocation14 + $0x330] sm:$0xff]
    %v736 = vld [vmem:[#allocation14 + $0x338] sm:$0xff]
    %v737 = vld [vmem:[#allocation14 + $0x340] sm:$0xff]
    %v738 = vld [vmem:[#allocation14 + $0x348] sm:$0xff]
    %v739 = vld [vmem:[#allocation14 + $0x350] sm:$0xff]
    %v740 = vld [vmem:[#allocation14 + $0x358] sm:$0xff]
    %v741 = vld [vmem:[#allocation14 + $0x360] sm:$0xff]
    %v742 = vld [vmem:[#allocation14 + $0x368] sm:$0xff]
    %v743 = vld [vmem:[#allocation14 + $0x370] sm:$0xff]
    %v744 = vld [vmem:[#allocation14 + $0x378] sm:$0xff]
    %v745 = vld [vmem:[#allocation14 + $0x380] sm:$0xff]
    %v746 = vld [vmem:[#allocation14 + $0x388] sm:$0xff]
    %v747 = vld [vmem:[#allocation14 + $0x390] sm:$0xff]
    %v748 = vld [vmem:[#allocation14 + $0x398] sm:$0xff]
    %v749 = vld [vmem:[#allocation14 + $0x3a0] sm:$0xff]
    %v750 = vld [vmem:[#allocation14 + $0x3a8] sm:$0xff]
    %v751 = vld [vmem:[#allocation14 + $0x3b0] sm:$0xff]
    %v752 = vld [vmem:[#allocation14 + $0x3b8] sm:$0xff]
    %v753 = vld [vmem:[#allocation14 + $0x3c0] sm:$0xff]
    %v754 = vld [vmem:[#allocation14 + $0x3c8] sm:$0xff]
    %v755 = vld [vmem:[#allocation14 + $0x3d0] sm:$0xff]
    %v756 = vld [vmem:[#allocation14 + $0x3d8] sm:$0xff]
    %v757 = vld [vmem:[#allocation14 + $0x3e0] sm:$0xff]
    %v758 = vld [vmem:[#allocation14 + $0x3e8] sm:$0xff]
    %v759 = vld [vmem:[#allocation14 + $0x3f0] sm:$0xff]
    %v760 = vld [vmem:[#allocation14 + $0x3f8] sm:$0xff]
    %v761 = vld [vmem:[#allocation16] sm:$0x3]
    %v763 = vlaneseq
    %v764 = vshrl.u32 %v763, 7
    %v765 = vsub.s32 0, %v764
    %v766 = vrot.slane %v761, %v765
    %v767 = vlaneseq
    %v768 = vshrl.u32 %v767, 7
    %v769 = vsub.s32 1, %v768
    %v770 = vrot.slane %v761, %v769
    %773 = vmatprep.subr.mxu0 %v634
    %774 = vmatpush1.msra.mxu0 %v633
    %775 = vmatprep.subr.mxu0 %v636
    %776 = vmatpush1.msra.mxu0 %v635
    %777 = vmatprep.subr.mxu0 %v638
    %778 = vmatpush1.msra.mxu0 %v637
    %779 = vmatprep.subr.mxu0 %v640
    %780 = vmatpush1.msra.mxu0 %v639
    %781 = vmatprep.subr.mxu0 %v642
    %782 = vmatpush1.msra.mxu0 %v641
    %783 = vmatprep.subr.mxu0 %v644
    %784 = vmatpush1.msra.mxu0 %v643
    %785 = vmatprep.subr.mxu0 %v646
    %786 = vmatpush1.msra.mxu0 %v645
    %787 = vmatprep.subr.mxu0 %v648
    %788 = vmatpush1.msra.mxu0 %v647
    %789 = vmatprep.subr.mxu0 %v650
    %790 = vmatpush1.msra.mxu0 %v649
    %791 = vmatprep.subr.mxu0 %v652
    %792 = vmatpush1.msra.mxu0 %v651
    %793 = vmatprep.subr.mxu0 %v654
    %794 = vmatpush1.msra.mxu0 %v653
    %795 = vmatprep.subr.mxu0 %v656
    %796 = vmatpush1.msra.mxu0 %v655
    %797 = vmatprep.subr.mxu0 %v658
    %798 = vmatpush1.msra.mxu0 %v657
    %799 = vmatprep.subr.mxu0 %v660
    %800 = vmatpush1.msra.mxu0 %v659
    %801 = vmatprep.subr.mxu0 %v662
    %802 = vmatpush1.msra.mxu0 %v661
    %803 = vmatprep.subr.mxu0 %v664
    %804 = vmatpush1.msra.mxu0 %v663
    %805 = vmatprep.subr.mxu0 %v666
    %806 = vmatpush1.msra.mxu0 %v665
    %807 = vmatprep.subr.mxu0 %v668
    %808 = vmatpush1.msra.mxu0 %v667
    %809 = vmatprep.subr.mxu0 %v670
    %810 = vmatpush1.msra.mxu0 %v669
    %811 = vmatprep.subr.mxu0 %v672
    %812 = vmatpush1.msra.mxu0 %v671
    %813 = vmatprep.subr.mxu0 %v674
    %814 = vmatpush1.msra.mxu0 %v673
    %815 = vmatprep.subr.mxu0 %v676
    %816 = vmatpush1.msra.mxu0 %v675
    %817 = vmatprep.subr.mxu0 %v678
    %818 = vmatpush1.msra.mxu0 %v677
    %819 = vmatprep.subr.mxu0 %v680
    %820 = vmatpush1.msra.mxu0 %v679
    %821 = vmatprep.subr.mxu0 %v682
    %822 = vmatpush1.msra.mxu0 %v681
    %823 = vmatprep.subr.mxu0 %v684
    %824 = vmatpush1.msra.mxu0 %v683
    %825 = vmatprep.subr.mxu0 %v686
    %826 = vmatpush1.msra.mxu0 %v685
    %827 = vmatprep.subr.mxu0 %v688
    %828 = vmatpush1.msra.mxu0 %v687
    %829 = vmatprep.subr.mxu0 %v690
    %830 = vmatpush1.msra.mxu0 %v689
    %831 = vmatprep.subr.mxu0 %v692
    %832 = vmatpush1.msra.mxu0 %v691
    %833 = vmatprep.subr.mxu0 %v694
    %834 = vmatpush1.msra.mxu0 %v693
    %835 = vmatprep.subr.mxu0 %v696
    %836 = vmatpush1.msra.mxu0 %v695
    %837 = vmatprep.mubr.f32.mxu0 %v627
    %838 = vmatmul.mubr.f32.gmra.mrb[0].mxu0 %v625
    %v839 = vpop.f32.mrb[0].mxu0
    %v840 = vadd.f32 %v766, %v839
    %v841 = vpop.f32.mrb[0].mxu0
    %v842 = vadd.f32 %v770, %v841
    %843 = vdwg.mxu0
    %844 = vmatprep.subr.mxu0 %v698
    %845 = vmatpush1.msra.mxu0 %v697
    %846 = vmatprep.subr.mxu0 %v700
    %847 = vmatpush1.msra.mxu0 %v699
    %848 = vmatprep.subr.mxu0 %v702
    %849 = vmatpush1.msra.mxu0 %v701
    %850 = vmatprep.subr.mxu0 %v704
    %851 = vmatpush1.msra.mxu0 %v703
    %852 = vmatprep.subr.mxu0 %v706
    %853 = vmatpush1.msra.mxu0 %v705
    %854 = vmatprep.subr.mxu0 %v708
    %855 = vmatpush1.msra.mxu0 %v707
    %856 = vmatprep.subr.mxu0 %v710
    %857 = vmatpush1.msra.mxu0 %v709
    %858 = vmatprep.subr.mxu0 %v712
    %859 = vmatpush1.msra.mxu0 %v711
    %860 = vmatprep.subr.mxu0 %v714
    %861 = vmatpush1.msra.mxu0 %v713
    %862 = vmatprep.subr.mxu0 %v716
    %863 = vmatpush1.msra.mxu0 %v715
    %864 = vmatprep.subr.mxu0 %v718
    %865 = vmatpush1.msra.mxu0 %v717
    %866 = vmatprep.subr.mxu0 %v720
    %867 = vmatpush1.msra.mxu0 %v719
    %868 = vmatprep.subr.mxu0 %v722
    %869 = vmatpush1.msra.mxu0 %v721
    %870 = vmatprep.subr.mxu0 %v724
    %871 = vmatpush1.msra.mxu0 %v723
    %872 = vmatprep.subr.mxu0 %v726
    %873 = vmatpush1.msra.mxu0 %v725
    %874 = vmatprep.subr.mxu0 %v728
    %875 = vmatpush1.msra.mxu0 %v727
    %876 = vmatprep.subr.mxu0 %v730
    %877 = vmatpush1.msra.mxu0 %v729
    %878 = vmatprep.subr.mxu0 %v732
    %879 = vmatpush1.msra.mxu0 %v731
    %880 = vmatprep.subr.mxu0 %v734
    %881 = vmatpush1.msra.mxu0 %v733
    %882 = vmatprep.subr.mxu0 %v736
    %883 = vmatpush1.msra.mxu0 %v735
    %884 = vmatprep.subr.mxu0 %v738
    %885 = vmatpush1.msra.mxu0 %v737
    %886 = vmatprep.subr.mxu0 %v740
    %887 = vmatpush1.msra.mxu0 %v739
    %888 = vmatprep.subr.mxu0 %v742
    %889 = vmatpush1.msra.mxu0 %v741
    %890 = vmatprep.subr.mxu0 %v744
    %891 = vmatpush1.msra.mxu0 %v743
    %892 = vmatprep.subr.mxu0 %v746
    %893 = vmatpush1.msra.mxu0 %v745
    %894 = vmatprep.subr.mxu0 %v748
    %895 = vmatpush1.msra.mxu0 %v747
    %896 = vmatprep.subr.mxu0 %v750
    %897 = vmatpush1.msra.mxu0 %v749
    %898 = vmatprep.subr.mxu0 %v752
    %899 = vmatpush1.msra.mxu0 %v751
    %900 = vmatprep.subr.mxu0 %v754
    %901 = vmatpush1.msra.mxu0 %v753
    %902 = vmatprep.subr.mxu0 %v756
    %903 = vmatpush1.msra.mxu0 %v755
    %904 = vmatprep.subr.mxu0 %v758
    %905 = vmatpush1.msra.mxu0 %v757
    %906 = vmatprep.subr.mxu0 %v760
    %907 = vmatpush1.msra.mxu0 %v759
    %908 = vmatprep.mubr.f32.mxu0 %v631
    %909 = vmatmul.mubr.f32.gmra.mrb[0].mxu0 %v629
    %v910 = vpop.f32.mrb[0].mxu0
    %v911 = vadd.f32 %v840, %v910
    %v912 = vpop.f32.mrb[0].mxu0
    %v913 = vadd.f32 %v842, %v912
    %914 = vdwg.mxu0
    %v915 = vmax.f32 %v911, 0.0
    %v916 = vmax.f32 %v913, 0.0
    %v917 = vld [vmem:[#allocation5] sm:$0xf]
    %v920 = vunpack.c.l.s4 1983009808
    %v921 = vunpack.c.0.s8 %v920
    %v922 = vlaneseq
    %v923 = vshrl.u32 %v922, 7
    %v924 = vsub.s32 %v921, %v923
    %v925 = vrot.slane %v917, %v924
    %v926 = vcombine.high %v925, %v925
    %v929 = vld [vmem:[#allocation17] sm:$0xff]
    %v930 = vld [vmem:[#allocation17 + $0x8] sm:$0xff]
    %v931 = vld [vmem:[#allocation17 + $0x10] sm:$0xff]
    %v932 = vld [vmem:[#allocation17 + $0x18] sm:$0xff]
    %v933 = vld [vmem:[#allocation17 + $0x20] sm:$0xff]
    %v934 = vld [vmem:[#allocation17 + $0x28] sm:$0xff]
    %v935 = vld [vmem:[#allocation17 + $0x30] sm:$0xff]
    %v936 = vld [vmem:[#allocation17 + $0x38] sm:$0xff]
    %v937 = vld [vmem:[#allocation17 + $0x40] sm:$0xff]
    %v938 = vld [vmem:[#allocation17 + $0x48] sm:$0xff]
    %v939 = vld [vmem:[#allocation17 + $0x50] sm:$0xff]
    %v940 = vld [vmem:[#allocation17 + $0x58] sm:$0xff]
    %v941 = vld [vmem:[#allocation17 + $0x60] sm:$0xff]
    %v942 = vld [vmem:[#allocation17 + $0x68] sm:$0xff]
    %v943 = vld [vmem:[#allocation17 + $0x70] sm:$0xff]
    %v944 = vld [vmem:[#allocation17 + $0x78] sm:$0xff]
    %v945 = vld [vmem:[#allocation17 + $0x80] sm:$0xff]
    %v946 = vld [vmem:[#allocation17 + $0x88] sm:$0xff]
    %v947 = vld [vmem:[#allocation17 + $0x90] sm:$0xff]
    %v948 = vld [vmem:[#allocation17 + $0x98] sm:$0xff]
    %v949 = vld [vmem:[#allocation17 + $0xa0] sm:$0xff]
    %v950 = vld [vmem:[#allocation17 + $0xa8] sm:$0xff]
    %v951 = vld [vmem:[#allocation17 + $0xb0] sm:$0xff]
    %v952 = vld [vmem:[#allocation17 + $0xb8] sm:$0xff]
    %v953 = vld [vmem:[#allocation17 + $0xc0] sm:$0xff]
    %v954 = vld [vmem:[#allocation17 + $0xc8] sm:$0xff]
    %v955 = vld [vmem:[#allocation17 + $0xd0] sm:$0xff]
    %v956 = vld [vmem:[#allocation17 + $0xd8] sm:$0xff]
    %v957 = vld [vmem:[#allocation17 + $0xe0] sm:$0xff]
    %v958 = vld [vmem:[#allocation17 + $0xe8] sm:$0xff]
    %v959 = vld [vmem:[#allocation17 + $0xf0] sm:$0xff]
    %v960 = vld [vmem:[#allocation17 + $0xf8] sm:$0xff]
    %v961 = vld [vmem:[#allocation17 + $0x100] sm:$0xff]
    %v962 = vld [vmem:[#allocation17 + $0x108] sm:$0xff]
    %v963 = vld [vmem:[#allocation17 + $0x110] sm:$0xff]
    %v964 = vld [vmem:[#allocation17 + $0x118] sm:$0xff]
    %v965 = vld [vmem:[#allocation17 + $0x120] sm:$0xff]
    %v966 = vld [vmem:[#allocation17 + $0x128] sm:$0xff]
    %v967 = vld [vmem:[#allocation17 + $0x130] sm:$0xff]
    %v968 = vld [vmem:[#allocation17 + $0x138] sm:$0xff]
    %v969 = vld [vmem:[#allocation17 + $0x140] sm:$0xff]
    %v970 = vld [vmem:[#allocation17 + $0x148] sm:$0xff]
    %v971 = vld [vmem:[#allocation17 + $0x150] sm:$0xff]
    %v972 = vld [vmem:[#allocation17 + $0x158] sm:$0xff]
    %v973 = vld [vmem:[#allocation17 + $0x160] sm:$0xff]
    %v974 = vld [vmem:[#allocation17 + $0x168] sm:$0xff]
    %v975 = vld [vmem:[#allocation17 + $0x170] sm:$0xff]
    %v976 = vld [vmem:[#allocation17 + $0x178] sm:$0xff]
    %v977 = vld [vmem:[#allocation17 + $0x180] sm:$0xff]
    %v978 = vld [vmem:[#allocation17 + $0x188] sm:$0xff]
    %v979 = vld [vmem:[#allocation17 + $0x190] sm:$0xff]
    %v980 = vld [vmem:[#allocation17 + $0x198] sm:$0xff]
    %v981 = vld [vmem:[#allocation17 + $0x1a0] sm:$0xff]
    %v982 = vld [vmem:[#allocation17 + $0x1a8] sm:$0xff]
    %v983 = vld [vmem:[#allocation17 + $0x1b0] sm:$0xff]
    %v984 = vld [vmem:[#allocation17 + $0x1b8] sm:$0xff]
    %v985 = vld [vmem:[#allocation17 + $0x1c0] sm:$0xff]
    %v986 = vld [vmem:[#allocation17 + $0x1c8] sm:$0xff]
    %v987 = vld [vmem:[#allocation17 + $0x1d0] sm:$0xff]
    %v988 = vld [vmem:[#allocation17 + $0x1d8] sm:$0xff]
    %v989 = vld [vmem:[#allocation17 + $0x1e0] sm:$0xff]
    %v990 = vld [vmem:[#allocation17 + $0x1e8] sm:$0xff]
    %v991 = vld [vmem:[#allocation17 + $0x1f0] sm:$0xff]
    %v992 = vld [vmem:[#allocation17 + $0x1f8] sm:$0xff]
    %v993 = vld [vmem:[#allocation17 + $0x200] sm:$0xff]
    %v994 = vld [vmem:[#allocation17 + $0x208] sm:$0xff]
    %v995 = vld [vmem:[#allocation17 + $0x210] sm:$0xff]
    %v996 = vld [vmem:[#allocation17 + $0x218] sm:$0xff]
    %v997 = vld [vmem:[#allocation17 + $0x220] sm:$0xff]
    %v998 = vld [vmem:[#allocation17 + $0x228] sm:$0xff]
    %v999 = vld [vmem:[#allocation17 + $0x230] sm:$0xff]
    %v1000 = vld [vmem:[#allocation17 + $0x238] sm:$0xff]
    %v1001 = vld [vmem:[#allocation17 + $0x240] sm:$0xff]
    %v1002 = vld [vmem:[#allocation17 + $0x248] sm:$0xff]
    %v1003 = vld [vmem:[#allocation17 + $0x250] sm:$0xff]
    %v1004 = vld [vmem:[#allocation17 + $0x258] sm:$0xff]
    %v1005 = vld [vmem:[#allocation17 + $0x260] sm:$0xff]
    %v1006 = vld [vmem:[#allocation17 + $0x268] sm:$0xff]
    %v1007 = vld [vmem:[#allocation17 + $0x270] sm:$0xff]
    %v1008 = vld [vmem:[#allocation17 + $0x278] sm:$0xff]
    %v1009 = vld [vmem:[#allocation17 + $0x280] sm:$0xff]
    %v1010 = vld [vmem:[#allocation17 + $0x288] sm:$0xff]
    %v1011 = vld [vmem:[#allocation17 + $0x290] sm:$0xff]
    %v1012 = vld [vmem:[#allocation17 + $0x298] sm:$0xff]
    %v1013 = vld [vmem:[#allocation17 + $0x2a0] sm:$0xff]
    %v1014 = vld [vmem:[#allocation17 + $0x2a8] sm:$0xff]
    %v1015 = vld [vmem:[#allocation17 + $0x2b0] sm:$0xff]
    %v1016 = vld [vmem:[#allocation17 + $0x2b8] sm:$0xff]
    %v1017 = vld [vmem:[#allocation17 + $0x2c0] sm:$0xff]
    %v1018 = vld [vmem:[#allocation17 + $0x2c8] sm:$0xff]
    %v1019 = vld [vmem:[#allocation17 + $0x2d0] sm:$0xff]
    %v1020 = vld [vmem:[#allocation17 + $0x2d8] sm:$0xff]
    %v1021 = vld [vmem:[#allocation17 + $0x2e0] sm:$0xff]
    %v1022 = vld [vmem:[#allocation17 + $0x2e8] sm:$0xff]
    %v1023 = vld [vmem:[#allocation17 + $0x2f0] sm:$0xff]
    %v1024 = vld [vmem:[#allocation17 + $0x2f8] sm:$0xff]
    %v1025 = vld [vmem:[#allocation17 + $0x300] sm:$0xff]
    %v1026 = vld [vmem:[#allocation17 + $0x308] sm:$0xff]
    %v1027 = vld [vmem:[#allocation17 + $0x310] sm:$0xff]
    %v1028 = vld [vmem:[#allocation17 + $0x318] sm:$0xff]
    %v1029 = vld [vmem:[#allocation17 + $0x320] sm:$0xff]
    %v1030 = vld [vmem:[#allocation17 + $0x328] sm:$0xff]
    %v1031 = vld [vmem:[#allocation17 + $0x330] sm:$0xff]
    %v1032 = vld [vmem:[#allocation17 + $0x338] sm:$0xff]
    %v1033 = vld [vmem:[#allocation17 + $0x340] sm:$0xff]
    %v1034 = vld [vmem:[#allocation17 + $0x348] sm:$0xff]
    %v1035 = vld [vmem:[#allocation17 + $0x350] sm:$0xff]
    %v1036 = vld [vmem:[#allocation17 + $0x358] sm:$0xff]
    %v1037 = vld [vmem:[#allocation17 + $0x360] sm:$0xff]
    %v1038 = vld [vmem:[#allocation17 + $0x368] sm:$0xff]
    %v1039 = vld [vmem:[#allocation17 + $0x370] sm:$0xff]
    %v1040 = vld [vmem:[#allocation17 + $0x378] sm:$0xff]
    %v1041 = vld [vmem:[#allocation17 + $0x380] sm:$0xff]
    %v1042 = vld [vmem:[#allocation17 + $0x388] sm:$0xff]
    %v1043 = vld [vmem:[#allocation17 + $0x390] sm:$0xff]
    %v1044 = vld [vmem:[#allocation17 + $0x398] sm:$0xff]
    %v1045 = vld [vmem:[#allocation17 + $0x3a0] sm:$0xff]
    %v1046 = vld [vmem:[#allocation17 + $0x3a8] sm:$0xff]
    %v1047 = vld [vmem:[#allocation17 + $0x3b0] sm:$0xff]
    %v1048 = vld [vmem:[#allocation17 + $0x3b8] sm:$0xff]
    %v1049 = vld [vmem:[#allocation17 + $0x3c0] sm:$0xff]
    %v1050 = vld [vmem:[#allocation17 + $0x3c8] sm:$0xff]
    %v1051 = vld [vmem:[#allocation17 + $0x3d0] sm:$0xff]
    %v1052 = vld [vmem:[#allocation17 + $0x3d8] sm:$0xff]
    %v1053 = vld [vmem:[#allocation17 + $0x3e0] sm:$0xff]
    %v1054 = vld [vmem:[#allocation17 + $0x3e8] sm:$0xff]
    %v1055 = vld [vmem:[#allocation17 + $0x3f0] sm:$0xff]
    %v1056 = vld [vmem:[#allocation17 + $0x3f8] sm:$0xff]
    %v1057 = vld [vmem:[#allocation17 + $0x400] sm:$0xff]
    %v1058 = vld [vmem:[#allocation17 + $0x408] sm:$0xff]
    %v1059 = vld [vmem:[#allocation17 + $0x410] sm:$0xff]
    %v1060 = vld [vmem:[#allocation17 + $0x418] sm:$0xff]
    %v1061 = vld [vmem:[#allocation17 + $0x420] sm:$0xff]
    %v1062 = vld [vmem:[#allocation17 + $0x428] sm:$0xff]
    %v1063 = vld [vmem:[#allocation17 + $0x430] sm:$0xff]
    %v1064 = vld [vmem:[#allocation17 + $0x438] sm:$0xff]
    %v1065 = vld [vmem:[#allocation17 + $0x440] sm:$0xff]
    %v1066 = vld [vmem:[#allocation17 + $0x448] sm:$0xff]
    %v1067 = vld [vmem:[#allocation17 + $0x450] sm:$0xff]
    %v1068 = vld [vmem:[#allocation17 + $0x458] sm:$0xff]
    %v1069 = vld [vmem:[#allocation17 + $0x460] sm:$0xff]
    %v1070 = vld [vmem:[#allocation17 + $0x468] sm:$0xff]
    %v1071 = vld [vmem:[#allocation17 + $0x470] sm:$0xff]
    %v1072 = vld [vmem:[#allocation17 + $0x478] sm:$0xff]
    %v1073 = vld [vmem:[#allocation17 + $0x480] sm:$0xff]
    %v1074 = vld [vmem:[#allocation17 + $0x488] sm:$0xff]
    %v1075 = vld [vmem:[#allocation17 + $0x490] sm:$0xff]
    %v1076 = vld [vmem:[#allocation17 + $0x498] sm:$0xff]
    %v1077 = vld [vmem:[#allocation17 + $0x4a0] sm:$0xff]
    %v1078 = vld [vmem:[#allocation17 + $0x4a8] sm:$0xff]
    %v1079 = vld [vmem:[#allocation17 + $0x4b0] sm:$0xff]
    %v1080 = vld [vmem:[#allocation17 + $0x4b8] sm:$0xff]
    %v1081 = vld [vmem:[#allocation17 + $0x4c0] sm:$0xff]
    %v1082 = vld [vmem:[#allocation17 + $0x4c8] sm:$0xff]
    %v1083 = vld [vmem:[#allocation17 + $0x4d0] sm:$0xff]
    %v1084 = vld [vmem:[#allocation17 + $0x4d8] sm:$0xff]
    %v1085 = vld [vmem:[#allocation17 + $0x4e0] sm:$0xff]
    %v1086 = vld [vmem:[#allocation17 + $0x4e8] sm:$0xff]
    %v1087 = vld [vmem:[#allocation17 + $0x4f0] sm:$0xff]
    %v1088 = vld [vmem:[#allocation17 + $0x4f8] sm:$0xff]
    %v1089 = vld [vmem:[#allocation17 + $0x500] sm:$0xff]
    %v1090 = vld [vmem:[#allocation17 + $0x508] sm:$0xff]
    %v1091 = vld [vmem:[#allocation17 + $0x510] sm:$0xff]
    %v1092 = vld [vmem:[#allocation17 + $0x518] sm:$0xff]
    %v1093 = vld [vmem:[#allocation17 + $0x520] sm:$0xff]
    %v1094 = vld [vmem:[#allocation17 + $0x528] sm:$0xff]
    %v1095 = vld [vmem:[#allocation17 + $0x530] sm:$0xff]
    %v1096 = vld [vmem:[#allocation17 + $0x538] sm:$0xff]
    %v1097 = vld [vmem:[#allocation17 + $0x540] sm:$0xff]
    %v1098 = vld [vmem:[#allocation17 + $0x548] sm:$0xff]
    %v1099 = vld [vmem:[#allocation17 + $0x550] sm:$0xff]
    %v1100 = vld [vmem:[#allocation17 + $0x558] sm:$0xff]
    %v1101 = vld [vmem:[#allocation17 + $0x560] sm:$0xff]
    %v1102 = vld [vmem:[#allocation17 + $0x568] sm:$0xff]
    %v1103 = vld [vmem:[#allocation17 + $0x570] sm:$0xff]
    %v1104 = vld [vmem:[#allocation17 + $0x578] sm:$0xff]
    %v1105 = vld [vmem:[#allocation17 + $0x580] sm:$0xff]
    %v1106 = vld [vmem:[#allocation17 + $0x588] sm:$0xff]
    %v1107 = vld [vmem:[#allocation17 + $0x590] sm:$0xff]
    %v1108 = vld [vmem:[#allocation17 + $0x598] sm:$0xff]
    %v1109 = vld [vmem:[#allocation17 + $0x5a0] sm:$0xff]
    %v1110 = vld [vmem:[#allocation17 + $0x5a8] sm:$0xff]
    %v1111 = vld [vmem:[#allocation17 + $0x5b0] sm:$0xff]
    %v1112 = vld [vmem:[#allocation17 + $0x5b8] sm:$0xff]
    %v1113 = vld [vmem:[#allocation17 + $0x5c0] sm:$0xff]
    %v1114 = vld [vmem:[#allocation17 + $0x5c8] sm:$0xff]
    %v1115 = vld [vmem:[#allocation17 + $0x5d0] sm:$0xff]
    %v1116 = vld [vmem:[#allocation17 + $0x5d8] sm:$0xff]
    %v1117 = vld [vmem:[#allocation17 + $0x5e0] sm:$0xff]
    %v1118 = vld [vmem:[#allocation17 + $0x5e8] sm:$0xff]
    %v1119 = vld [vmem:[#allocation17 + $0x5f0] sm:$0xff]
    %v1120 = vld [vmem:[#allocation17 + $0x5f8] sm:$0xff]
    %v1121 = vld [vmem:[#allocation17 + $0x600] sm:$0xff]
    %v1122 = vld [vmem:[#allocation17 + $0x608] sm:$0xff]
    %v1123 = vld [vmem:[#allocation17 + $0x610] sm:$0xff]
    %v1124 = vld [vmem:[#allocation17 + $0x618] sm:$0xff]
    %v1125 = vld [vmem:[#allocation17 + $0x620] sm:$0xff]
    %v1126 = vld [vmem:[#allocation17 + $0x628] sm:$0xff]
    %v1127 = vld [vmem:[#allocation17 + $0x630] sm:$0xff]
    %v1128 = vld [vmem:[#allocation17 + $0x638] sm:$0xff]
    %v1129 = vld [vmem:[#allocation17 + $0x640] sm:$0xff]
    %v1130 = vld [vmem:[#allocation17 + $0x648] sm:$0xff]
    %v1131 = vld [vmem:[#allocation17 + $0x650] sm:$0xff]
    %v1132 = vld [vmem:[#allocation17 + $0x658] sm:$0xff]
    %v1133 = vld [vmem:[#allocation17 + $0x660] sm:$0xff]
    %v1134 = vld [vmem:[#allocation17 + $0x668] sm:$0xff]
    %v1135 = vld [vmem:[#allocation17 + $0x670] sm:$0xff]
    %v1136 = vld [vmem:[#allocation17 + $0x678] sm:$0xff]
    %v1137 = vld [vmem:[#allocation17 + $0x680] sm:$0xff]
    %v1138 = vld [vmem:[#allocation17 + $0x688] sm:$0xff]
    %v1139 = vld [vmem:[#allocation17 + $0x690] sm:$0xff]
    %v1140 = vld [vmem:[#allocation17 + $0x698] sm:$0xff]
    %v1141 = vld [vmem:[#allocation17 + $0x6a0] sm:$0xff]
    %v1142 = vld [vmem:[#allocation17 + $0x6a8] sm:$0xff]
    %v1143 = vld [vmem:[#allocation17 + $0x6b0] sm:$0xff]
    %v1144 = vld [vmem:[#allocation17 + $0x6b8] sm:$0xff]
    %v1145 = vld [vmem:[#allocation17 + $0x6c0] sm:$0xff]
    %v1146 = vld [vmem:[#allocation17 + $0x6c8] sm:$0xff]
    %v1147 = vld [vmem:[#allocation17 + $0x6d0] sm:$0xff]
    %v1148 = vld [vmem:[#allocation17 + $0x6d8] sm:$0xff]
    %v1149 = vld [vmem:[#allocation17 + $0x6e0] sm:$0xff]
    %v1150 = vld [vmem:[#allocation17 + $0x6e8] sm:$0xff]
    %v1151 = vld [vmem:[#allocation17 + $0x6f0] sm:$0xff]
    %v1152 = vld [vmem:[#allocation17 + $0x6f8] sm:$0xff]
    %v1153 = vld [vmem:[#allocation17 + $0x700] sm:$0xff]
    %v1154 = vld [vmem:[#allocation17 + $0x708] sm:$0xff]
    %v1155 = vld [vmem:[#allocation17 + $0x710] sm:$0xff]
    %v1156 = vld [vmem:[#allocation17 + $0x718] sm:$0xff]
    %v1157 = vld [vmem:[#allocation17 + $0x720] sm:$0xff]
    %v1158 = vld [vmem:[#allocation17 + $0x728] sm:$0xff]
    %v1159 = vld [vmem:[#allocation17 + $0x730] sm:$0xff]
    %v1160 = vld [vmem:[#allocation17 + $0x738] sm:$0xff]
    %v1161 = vld [vmem:[#allocation17 + $0x740] sm:$0xff]
    %v1162 = vld [vmem:[#allocation17 + $0x748] sm:$0xff]
    %v1163 = vld [vmem:[#allocation17 + $0x750] sm:$0xff]
    %v1164 = vld [vmem:[#allocation17 + $0x758] sm:$0xff]
    %v1165 = vld [vmem:[#allocation17 + $0x760] sm:$0xff]
    %v1166 = vld [vmem:[#allocation17 + $0x768] sm:$0xff]
    %v1167 = vld [vmem:[#allocation17 + $0x770] sm:$0xff]
    %v1168 = vld [vmem:[#allocation17 + $0x778] sm:$0xff]
    %v1169 = vld [vmem:[#allocation17 + $0x780] sm:$0xff]
    %v1170 = vld [vmem:[#allocation17 + $0x788] sm:$0xff]
    %v1171 = vld [vmem:[#allocation17 + $0x790] sm:$0xff]
    %v1172 = vld [vmem:[#allocation17 + $0x798] sm:$0xff]
    %v1173 = vld [vmem:[#allocation17 + $0x7a0] sm:$0xff]
    %v1174 = vld [vmem:[#allocation17 + $0x7a8] sm:$0xff]
    %v1175 = vld [vmem:[#allocation17 + $0x7b0] sm:$0xff]
    %v1176 = vld [vmem:[#allocation17 + $0x7b8] sm:$0xff]
    %v1177 = vld [vmem:[#allocation17 + $0x7c0] sm:$0xff]
    %v1178 = vld [vmem:[#allocation17 + $0x7c8] sm:$0xff]
    %v1179 = vld [vmem:[#allocation17 + $0x7d0] sm:$0xff]
    %v1180 = vld [vmem:[#allocation17 + $0x7d8] sm:$0xff]
    %v1181 = vld [vmem:[#allocation17 + $0x7e0] sm:$0xff]
    %v1182 = vld [vmem:[#allocation17 + $0x7e8] sm:$0xff]
    %v1183 = vld [vmem:[#allocation17 + $0x7f0] sm:$0xff]
    %v1184 = vld [vmem:[#allocation17 + $0x7f8] sm:$0xff]
    %v1185 = vld [vmem:[#allocation17 + $0x800] sm:$0xff]
    %v1186 = vld [vmem:[#allocation17 + $0x808] sm:$0xff]
    %v1187 = vld [vmem:[#allocation17 + $0x810] sm:$0xff]
    %v1188 = vld [vmem:[#allocation17 + $0x818] sm:$0xff]
    %v1189 = vld [vmem:[#allocation17 + $0x820] sm:$0xff]
    %v1190 = vld [vmem:[#allocation17 + $0x828] sm:$0xff]
    %v1191 = vld [vmem:[#allocation17 + $0x830] sm:$0xff]
    %v1192 = vld [vmem:[#allocation17 + $0x838] sm:$0xff]
    %v1193 = vld [vmem:[#allocation17 + $0x840] sm:$0xff]
    %v1194 = vld [vmem:[#allocation17 + $0x848] sm:$0xff]
    %v1195 = vld [vmem:[#allocation17 + $0x850] sm:$0xff]
    %v1196 = vld [vmem:[#allocation17 + $0x858] sm:$0xff]
    %v1197 = vld [vmem:[#allocation17 + $0x860] sm:$0xff]
    %v1198 = vld [vmem:[#allocation17 + $0x868] sm:$0xff]
    %v1199 = vld [vmem:[#allocation17 + $0x870] sm:$0xff]
    %v1200 = vld [vmem:[#allocation17 + $0x878] sm:$0xff]
    %v1201 = vld [vmem:[#allocation17 + $0x880] sm:$0xff]
    %v1202 = vld [vmem:[#allocation17 + $0x888] sm:$0xff]
    %v1203 = vld [vmem:[#allocation17 + $0x890] sm:$0xff]
    %v1204 = vld [vmem:[#allocation17 + $0x898] sm:$0xff]
    %v1205 = vld [vmem:[#allocation17 + $0x8a0] sm:$0xff]
    %v1206 = vld [vmem:[#allocation17 + $0x8a8] sm:$0xff]
    %v1207 = vld [vmem:[#allocation17 + $0x8b0] sm:$0xff]
    %v1208 = vld [vmem:[#allocation17 + $0x8b8] sm:$0xff]
    %v1209 = vld [vmem:[#allocation17 + $0x8c0] sm:$0xff]
    %v1210 = vld [vmem:[#allocation17 + $0x8c8] sm:$0xff]
    %v1211 = vld [vmem:[#allocation17 + $0x8d0] sm:$0xff]
    %v1212 = vld [vmem:[#allocation17 + $0x8d8] sm:$0xff]
    %v1213 = vld [vmem:[#allocation17 + $0x8e0] sm:$0xff]
    %v1214 = vld [vmem:[#allocation17 + $0x8e8] sm:$0xff]
    %v1215 = vld [vmem:[#allocation17 + $0x8f0] sm:$0xff]
    %v1216 = vld [vmem:[#allocation17 + $0x8f8] sm:$0xff]
    %v1217 = vld [vmem:[#allocation17 + $0x900] sm:$0xff]
    %v1218 = vld [vmem:[#allocation17 + $0x908] sm:$0xff]
    %v1219 = vld [vmem:[#allocation17 + $0x910] sm:$0xff]
    %v1220 = vld [vmem:[#allocation17 + $0x918] sm:$0xff]
    %v1221 = vld [vmem:[#allocation17 + $0x920] sm:$0xff]
    %v1222 = vld [vmem:[#allocation17 + $0x928] sm:$0xff]
    %v1223 = vld [vmem:[#allocation17 + $0x930] sm:$0xff]
    %v1224 = vld [vmem:[#allocation17 + $0x938] sm:$0xff]
    %v1225 = vld [vmem:[#allocation17 + $0x940] sm:$0xff]
    %v1226 = vld [vmem:[#allocation17 + $0x948] sm:$0xff]
    %v1227 = vld [vmem:[#allocation17 + $0x950] sm:$0xff]
    %v1228 = vld [vmem:[#allocation17 + $0x958] sm:$0xff]
    %v1229 = vld [vmem:[#allocation17 + $0x960] sm:$0xff]
    %v1230 = vld [vmem:[#allocation17 + $0x968] sm:$0xff]
    %v1231 = vld [vmem:[#allocation17 + $0x970] sm:$0xff]
    %v1232 = vld [vmem:[#allocation17 + $0x978] sm:$0xff]
    %v1233 = vld [vmem:[#allocation17 + $0x980] sm:$0xff]
    %v1234 = vld [vmem:[#allocation17 + $0x988] sm:$0xff]
    %v1235 = vld [vmem:[#allocation17 + $0x990] sm:$0xff]
    %v1236 = vld [vmem:[#allocation17 + $0x998] sm:$0xff]
    %v1237 = vld [vmem:[#allocation17 + $0x9a0] sm:$0xff]
    %v1238 = vld [vmem:[#allocation17 + $0x9a8] sm:$0xff]
    %v1239 = vld [vmem:[#allocation17 + $0x9b0] sm:$0xff]
    %v1240 = vld [vmem:[#allocation17 + $0x9b8] sm:$0xff]
    %v1241 = vld [vmem:[#allocation17 + $0x9c0] sm:$0xff]
    %v1242 = vld [vmem:[#allocation17 + $0x9c8] sm:$0xff]
    %v1243 = vld [vmem:[#allocation17 + $0x9d0] sm:$0xff]
    %v1244 = vld [vmem:[#allocation17 + $0x9d8] sm:$0xff]
    %v1245 = vld [vmem:[#allocation17 + $0x9e0] sm:$0xff]
    %v1246 = vld [vmem:[#allocation17 + $0x9e8] sm:$0xff]
    %v1247 = vld [vmem:[#allocation17 + $0x9f0] sm:$0xff]
    %v1248 = vld [vmem:[#allocation17 + $0x9f8] sm:$0xff]
    %v1249 = vld [vmem:[#allocation17 + $0xa00] sm:$0xff]
    %v1250 = vld [vmem:[#allocation17 + $0xa08] sm:$0xff]
    %v1251 = vld [vmem:[#allocation17 + $0xa10] sm:$0xff]
    %v1252 = vld [vmem:[#allocation17 + $0xa18] sm:$0xff]
    %v1253 = vld [vmem:[#allocation17 + $0xa20] sm:$0xff]
    %v1254 = vld [vmem:[#allocation17 + $0xa28] sm:$0xff]
    %v1255 = vld [vmem:[#allocation17 + $0xa30] sm:$0xff]
    %v1256 = vld [vmem:[#allocation17 + $0xa38] sm:$0xff]
    %v1257 = vld [vmem:[#allocation17 + $0xa40] sm:$0xff]
    %v1258 = vld [vmem:[#allocation17 + $0xa48] sm:$0xff]
    %v1259 = vld [vmem:[#allocation17 + $0xa50] sm:$0xff]
    %v1260 = vld [vmem:[#allocation17 + $0xa58] sm:$0xff]
    %v1261 = vld [vmem:[#allocation17 + $0xa60] sm:$0xff]
    %v1262 = vld [vmem:[#allocation17 + $0xa68] sm:$0xff]
    %v1263 = vld [vmem:[#allocation17 + $0xa70] sm:$0xff]
    %v1264 = vld [vmem:[#allocation17 + $0xa78] sm:$0xff]
    %v1265 = vld [vmem:[#allocation17 + $0xa80] sm:$0xff]
    %v1266 = vld [vmem:[#allocation17 + $0xa88] sm:$0xff]
    %v1267 = vld [vmem:[#allocation17 + $0xa90] sm:$0xff]
    %v1268 = vld [vmem:[#allocation17 + $0xa98] sm:$0xff]
    %v1269 = vld [vmem:[#allocation17 + $0xaa0] sm:$0xff]
    %v1270 = vld [vmem:[#allocation17 + $0xaa8] sm:$0xff]
    %v1271 = vld [vmem:[#allocation17 + $0xab0] sm:$0xff]
    %v1272 = vld [vmem:[#allocation17 + $0xab8] sm:$0xff]
    %v1273 = vld [vmem:[#allocation17 + $0xac0] sm:$0xff]
    %v1274 = vld [vmem:[#allocation17 + $0xac8] sm:$0xff]
    %v1275 = vld [vmem:[#allocation17 + $0xad0] sm:$0xff]
    %v1276 = vld [vmem:[#allocation17 + $0xad8] sm:$0xff]
    %v1277 = vld [vmem:[#allocation17 + $0xae0] sm:$0xff]
    %v1278 = vld [vmem:[#allocation17 + $0xae8] sm:$0xff]
    %v1279 = vld [vmem:[#allocation17 + $0xaf0] sm:$0xff]
    %v1280 = vld [vmem:[#allocation17 + $0xaf8] sm:$0xff]
    %v1281 = vld [vmem:[#allocation17 + $0xb00] sm:$0xff]
    %v1282 = vld [vmem:[#allocation17 + $0xb08] sm:$0xff]
    %v1283 = vld [vmem:[#allocation17 + $0xb10] sm:$0xff]
    %v1284 = vld [vmem:[#allocation17 + $0xb18] sm:$0xff]
    %v1285 = vld [vmem:[#allocation17 + $0xb20] sm:$0xff]
    %v1286 = vld [vmem:[#allocation17 + $0xb28] sm:$0xff]
    %v1287 = vld [vmem:[#allocation17 + $0xb30] sm:$0xff]
    %v1288 = vld [vmem:[#allocation17 + $0xb38] sm:$0xff]
    %v1289 = vld [vmem:[#allocation17 + $0xb40] sm:$0xff]
    %v1290 = vld [vmem:[#allocation17 + $0xb48] sm:$0xff]
    %v1291 = vld [vmem:[#allocation17 + $0xb50] sm:$0xff]
    %v1292 = vld [vmem:[#allocation17 + $0xb58] sm:$0xff]
    %v1293 = vld [vmem:[#allocation17 + $0xb60] sm:$0xff]
    %v1294 = vld [vmem:[#allocation17 + $0xb68] sm:$0xff]
    %v1295 = vld [vmem:[#allocation17 + $0xb70] sm:$0xff]
    %v1296 = vld [vmem:[#allocation17 + $0xb78] sm:$0xff]
    %v1297 = vld [vmem:[#allocation17 + $0xb80] sm:$0xff]
    %v1298 = vld [vmem:[#allocation17 + $0xb88] sm:$0xff]
    %v1299 = vld [vmem:[#allocation17 + $0xb90] sm:$0xff]
    %v1300 = vld [vmem:[#allocation17 + $0xb98] sm:$0xff]
    %v1301 = vld [vmem:[#allocation17 + $0xba0] sm:$0xff]
    %v1302 = vld [vmem:[#allocation17 + $0xba8] sm:$0xff]
    %v1303 = vld [vmem:[#allocation17 + $0xbb0] sm:$0xff]
    %v1304 = vld [vmem:[#allocation17 + $0xbb8] sm:$0xff]
    %v1305 = vld [vmem:[#allocation17 + $0xbc0] sm:$0xff]
    %v1306 = vld [vmem:[#allocation17 + $0xbc8] sm:$0xff]
    %v1307 = vld [vmem:[#allocation17 + $0xbd0] sm:$0xff]
    %v1308 = vld [vmem:[#allocation17 + $0xbd8] sm:$0xff]
    %v1309 = vld [vmem:[#allocation17 + $0xbe0] sm:$0xff]
    %v1310 = vld [vmem:[#allocation17 + $0xbe8] sm:$0xff]
    %v1311 = vld [vmem:[#allocation17 + $0xbf0] sm:$0xff]
    %v1312 = vld [vmem:[#allocation17 + $0xbf8] sm:$0xff]
    %v1313 = vld [vmem:[#allocation17 + $0xc00] sm:$0xff]
    %v1314 = vld [vmem:[#allocation17 + $0xc08] sm:$0xff]
    %v1315 = vld [vmem:[#allocation17 + $0xc10] sm:$0xff]
    %v1316 = vld [vmem:[#allocation17 + $0xc18] sm:$0xff]
    %v1317 = vld [vmem:[#allocation17 + $0xc20] sm:$0xff]
    %v1318 = vld [vmem:[#allocation17 + $0xc28] sm:$0xff]
    %v1319 = vld [vmem:[#allocation17 + $0xc30] sm:$0xff]
    %v1320 = vld [vmem:[#allocation17 + $0xc38] sm:$0xff]
    %v1321 = vld [vmem:[#allocation17 + $0xc40] sm:$0xff]
    %v1322 = vld [vmem:[#allocation17 + $0xc48] sm:$0xff]
    %v1323 = vld [vmem:[#allocation17 + $0xc50] sm:$0xff]
    %v1324 = vld [vmem:[#allocation17 + $0xc58] sm:$0xff]
    %v1325 = vld [vmem:[#allocation17 + $0xc60] sm:$0xff]
    %v1326 = vld [vmem:[#allocation17 + $0xc68] sm:$0xff]
    %v1327 = vld [vmem:[#allocation17 + $0xc70] sm:$0xff]
    %v1328 = vld [vmem:[#allocation17 + $0xc78] sm:$0xff]
    %v1329 = vld [vmem:[#allocation17 + $0xc80] sm:$0xff]
    %v1330 = vld [vmem:[#allocation17 + $0xc88] sm:$0xff]
    %v1331 = vld [vmem:[#allocation17 + $0xc90] sm:$0xff]
    %v1332 = vld [vmem:[#allocation17 + $0xc98] sm:$0xff]
    %v1333 = vld [vmem:[#allocation17 + $0xca0] sm:$0xff]
    %v1334 = vld [vmem:[#allocation17 + $0xca8] sm:$0xff]
    %v1335 = vld [vmem:[#allocation17 + $0xcb0] sm:$0xff]
    %v1336 = vld [vmem:[#allocation17 + $0xcb8] sm:$0xff]
    %v1337 = vld [vmem:[#allocation17 + $0xcc0] sm:$0xff]
    %v1338 = vld [vmem:[#allocation17 + $0xcc8] sm:$0xff]
    %v1339 = vld [vmem:[#allocation17 + $0xcd0] sm:$0xff]
    %v1340 = vld [vmem:[#allocation17 + $0xcd8] sm:$0xff]
    %v1341 = vld [vmem:[#allocation17 + $0xce0] sm:$0xff]
    %v1342 = vld [vmem:[#allocation17 + $0xce8] sm:$0xff]
    %v1343 = vld [vmem:[#allocation17 + $0xcf0] sm:$0xff]
    %v1344 = vld [vmem:[#allocation17 + $0xcf8] sm:$0xff]
    %v1345 = vld [vmem:[#allocation17 + $0xd00] sm:$0xff]
    %v1346 = vld [vmem:[#allocation17 + $0xd08] sm:$0xff]
    %v1347 = vld [vmem:[#allocation17 + $0xd10] sm:$0xff]
    %v1348 = vld [vmem:[#allocation17 + $0xd18] sm:$0xff]
    %v1349 = vld [vmem:[#allocation17 + $0xd20] sm:$0xff]
    %v1350 = vld [vmem:[#allocation17 + $0xd28] sm:$0xff]
    %v1351 = vld [vmem:[#allocation17 + $0xd30] sm:$0xff]
    %v1352 = vld [vmem:[#allocation17 + $0xd38] sm:$0xff]
    %v1353 = vld [vmem:[#allocation17 + $0xd40] sm:$0xff]
    %v1354 = vld [vmem:[#allocation17 + $0xd48] sm:$0xff]
    %v1355 = vld [vmem:[#allocation17 + $0xd50] sm:$0xff]
    %v1356 = vld [vmem:[#allocation17 + $0xd58] sm:$0xff]
    %v1357 = vld [vmem:[#allocation17 + $0xd60] sm:$0xff]
    %v1358 = vld [vmem:[#allocation17 + $0xd68] sm:$0xff]
    %v1359 = vld [vmem:[#allocation17 + $0xd70] sm:$0xff]
    %v1360 = vld [vmem:[#allocation17 + $0xd78] sm:$0xff]
    %v1361 = vld [vmem:[#allocation17 + $0xd80] sm:$0xff]
    %v1362 = vld [vmem:[#allocation17 + $0xd88] sm:$0xff]
    %v1363 = vld [vmem:[#allocation17 + $0xd90] sm:$0xff]
    %v1364 = vld [vmem:[#allocation17 + $0xd98] sm:$0xff]
    %v1365 = vld [vmem:[#allocation17 + $0xda0] sm:$0xff]
    %v1366 = vld [vmem:[#allocation17 + $0xda8] sm:$0xff]
    %v1367 = vld [vmem:[#allocation17 + $0xdb0] sm:$0xff]
    %v1368 = vld [vmem:[#allocation17 + $0xdb8] sm:$0xff]
    %v1369 = vld [vmem:[#allocation17 + $0xdc0] sm:$0xff]
    %v1370 = vld [vmem:[#allocation17 + $0xdc8] sm:$0xff]
    %v1371 = vld [vmem:[#allocation17 + $0xdd0] sm:$0xff]
    %v1372 = vld [vmem:[#allocation17 + $0xdd8] sm:$0xff]
    %v1373 = vld [vmem:[#allocation17 + $0xde0] sm:$0xff]
    %v1374 = vld [vmem:[#allocation17 + $0xde8] sm:$0xff]
    %v1375 = vld [vmem:[#allocation17 + $0xdf0] sm:$0xff]
    %v1376 = vld [vmem:[#allocation17 + $0xdf8] sm:$0xff]
    %v1377 = vld [vmem:[#allocation17 + $0xe00] sm:$0xff]
    %v1378 = vld [vmem:[#allocation17 + $0xe08] sm:$0xff]
    %v1379 = vld [vmem:[#allocation17 + $0xe10] sm:$0xff]
    %v1380 = vld [vmem:[#allocation17 + $0xe18] sm:$0xff]
    %v1381 = vld [vmem:[#allocation17 + $0xe20] sm:$0xff]
    %v1382 = vld [vmem:[#allocation17 + $0xe28] sm:$0xff]
    %v1383 = vld [vmem:[#allocation17 + $0xe30] sm:$0xff]
    %v1384 = vld [vmem:[#allocation17 + $0xe38] sm:$0xff]
    %v1385 = vld [vmem:[#allocation17 + $0xe40] sm:$0xff]
    %v1386 = vld [vmem:[#allocation17 + $0xe48] sm:$0xff]
    %v1387 = vld [vmem:[#allocation17 + $0xe50] sm:$0xff]
    %v1388 = vld [vmem:[#allocation17 + $0xe58] sm:$0xff]
    %v1389 = vld [vmem:[#allocation17 + $0xe60] sm:$0xff]
    %v1390 = vld [vmem:[#allocation17 + $0xe68] sm:$0xff]
    %v1391 = vld [vmem:[#allocation17 + $0xe70] sm:$0xff]
    %v1392 = vld [vmem:[#allocation17 + $0xe78] sm:$0xff]
    %v1393 = vld [vmem:[#allocation17 + $0xe80] sm:$0xff]
    %v1394 = vld [vmem:[#allocation17 + $0xe88] sm:$0xff]
    %v1395 = vld [vmem:[#allocation17 + $0xe90] sm:$0xff]
    %v1396 = vld [vmem:[#allocation17 + $0xe98] sm:$0xff]
    %v1397 = vld [vmem:[#allocation17 + $0xea0] sm:$0xff]
    %v1398 = vld [vmem:[#allocation17 + $0xea8] sm:$0xff]
    %v1399 = vld [vmem:[#allocation17 + $0xeb0] sm:$0xff]
    %v1400 = vld [vmem:[#allocation17 + $0xeb8] sm:$0xff]
    %v1401 = vld [vmem:[#allocation17 + $0xec0] sm:$0xff]
    %v1402 = vld [vmem:[#allocation17 + $0xec8] sm:$0xff]
    %v1403 = vld [vmem:[#allocation17 + $0xed0] sm:$0xff]
    %v1404 = vld [vmem:[#allocation17 + $0xed8] sm:$0xff]
    %v1405 = vld [vmem:[#allocation17 + $0xee0] sm:$0xff]
    %v1406 = vld [vmem:[#allocation17 + $0xee8] sm:$0xff]
    %v1407 = vld [vmem:[#allocation17 + $0xef0] sm:$0xff]
    %v1408 = vld [vmem:[#allocation17 + $0xef8] sm:$0xff]
    %v1409 = vld [vmem:[#allocation17 + $0xf00] sm:$0xff]
    %v1410 = vld [vmem:[#allocation17 + $0xf08] sm:$0xff]
    %v1411 = vld [vmem:[#allocation17 + $0xf10] sm:$0xff]
    %v1412 = vld [vmem:[#allocation17 + $0xf18] sm:$0xff]
    %v1413 = vld [vmem:[#allocation17 + $0xf20] sm:$0xff]
    %v1414 = vld [vmem:[#allocation17 + $0xf28] sm:$0xff]
    %v1415 = vld [vmem:[#allocation17 + $0xf30] sm:$0xff]
    %v1416 = vld [vmem:[#allocation17 + $0xf38] sm:$0xff]
    %v1417 = vld [vmem:[#allocation17 + $0xf40] sm:$0xff]
    %v1418 = vld [vmem:[#allocation17 + $0xf48] sm:$0xff]
    %v1419 = vld [vmem:[#allocation17 + $0xf50] sm:$0xff]
    %v1420 = vld [vmem:[#allocation17 + $0xf58] sm:$0xff]
    %v1421 = vld [vmem:[#allocation17 + $0xf60] sm:$0xff]
    %v1422 = vld [vmem:[#allocation17 + $0xf68] sm:$0xff]
    %v1423 = vld [vmem:[#allocation17 + $0xf70] sm:$0xff]
    %v1424 = vld [vmem:[#allocation17 + $0xf78] sm:$0xff]
    %v1425 = vld [vmem:[#allocation17 + $0xf80] sm:$0xff]
    %v1426 = vld [vmem:[#allocation17 + $0xf88] sm:$0xff]
    %v1427 = vld [vmem:[#allocation17 + $0xf90] sm:$0xff]
    %v1428 = vld [vmem:[#allocation17 + $0xf98] sm:$0xff]
    %v1429 = vld [vmem:[#allocation17 + $0xfa0] sm:$0xff]
    %v1430 = vld [vmem:[#allocation17 + $0xfa8] sm:$0xff]
    %v1431 = vld [vmem:[#allocation17 + $0xfb0] sm:$0xff]
    %v1432 = vld [vmem:[#allocation17 + $0xfb8] sm:$0xff]
    %v1433 = vld [vmem:[#allocation17 + $0xfc0] sm:$0xff]
    %v1434 = vld [vmem:[#allocation17 + $0xfc8] sm:$0xff]
    %v1435 = vld [vmem:[#allocation17 + $0xfd0] sm:$0xff]
    %v1436 = vld [vmem:[#allocation17 + $0xfd8] sm:$0xff]
    %v1437 = vld [vmem:[#allocation17 + $0xfe0] sm:$0xff]
    %v1438 = vld [vmem:[#allocation17 + $0xfe8] sm:$0xff]
    %v1439 = vld [vmem:[#allocation17 + $0xff0] sm:$0xff]
    %v1440 = vld [vmem:[#allocation17 + $0xff8] sm:$0xff]
    %v1441 = vld [vmem:[#allocation19] sm:$0xff]
    %v1443 = vlaneseq
    %v1444 = vshrl.u32 %v1443, 7
    %v1445 = vsub.s32 0, %v1444
    %v1446 = vrot.slane %v1441, %v1445
    %v1447 = vlaneseq
    %v1448 = vshrl.u32 %v1447, 7
    %v1449 = vsub.s32 1, %v1448
    %v1450 = vrot.slane %v1441, %v1449
    %v1451 = vlaneseq
    %v1452 = vshrl.u32 %v1451, 7
    %v1453 = vsub.s32 2, %v1452
    %v1454 = vrot.slane %v1441, %v1453
    %v1455 = vlaneseq
    %v1456 = vshrl.u32 %v1455, 7
    %v1457 = vsub.s32 3, %v1456
    %v1458 = vrot.slane %v1441, %v1457
    %v1459 = vlaneseq
    %v1460 = vshrl.u32 %v1459, 7
    %v1461 = vsub.s32 4, %v1460
    %v1462 = vrot.slane %v1441, %v1461
    %v1463 = vlaneseq
    %v1464 = vshrl.u32 %v1463, 7
    %v1465 = vsub.s32 5, %v1464
    %v1466 = vrot.slane %v1441, %v1465
    %v1467 = vlaneseq
    %v1468 = vshrl.u32 %v1467, 7
    %v1469 = vsub.s32 6, %v1468
    %v1470 = vrot.slane %v1441, %v1469
    %v1471 = vlaneseq
    %v1472 = vshrl.u32 %v1471, 7
    %v1473 = vsub.s32 7, %v1472
    %v1474 = vrot.slane %v1441, %v1473
    %1483 = vmatprep.subr.mxu0 %v930
    %1484 = vmatpush1.msra.mxu0 %v929
    %1485 = vmatprep.subr.mxu0 %v938
    %1486 = vmatpush1.msra.mxu0 %v937
    %1487 = vmatprep.subr.mxu0 %v946
    %1488 = vmatpush1.msra.mxu0 %v945
    %1489 = vmatprep.subr.mxu0 %v954
    %1490 = vmatpush1.msra.mxu0 %v953
    %1491 = vmatprep.subr.mxu0 %v962
    %1492 = vmatpush1.msra.mxu0 %v961
    %1493 = vmatprep.subr.mxu0 %v970
    %1494 = vmatpush1.msra.mxu0 %v969
    %1495 = vmatprep.subr.mxu0 %v978
    %1496 = vmatpush1.msra.mxu0 %v977
    %1497 = vmatprep.subr.mxu0 %v986
    %1498 = vmatpush1.msra.mxu0 %v985
    %1499 = vmatprep.subr.mxu0 %v994
    %1500 = vmatpush1.msra.mxu0 %v993
    %1501 = vmatprep.subr.mxu0 %v1002
    %1502 = vmatpush1.msra.mxu0 %v1001
    %1503 = vmatprep.subr.mxu0 %v1010
    %1504 = vmatpush1.msra.mxu0 %v1009
    %1505 = vmatprep.subr.mxu0 %v1018
    %1506 = vmatpush1.msra.mxu0 %v1017
    %1507 = vmatprep.subr.mxu0 %v1026
    %1508 = vmatpush1.msra.mxu0 %v1025
    %1509 = vmatprep.subr.mxu0 %v1034
    %1510 = vmatpush1.msra.mxu0 %v1033
    %1511 = vmatprep.subr.mxu0 %v1042
    %1512 = vmatpush1.msra.mxu0 %v1041
    %1513 = vmatprep.subr.mxu0 %v1050
    %1514 = vmatpush1.msra.mxu0 %v1049
    %1515 = vmatprep.subr.mxu0 %v1058
    %1516 = vmatpush1.msra.mxu0 %v1057
    %1517 = vmatprep.subr.mxu0 %v1066
    %1518 = vmatpush1.msra.mxu0 %v1065
    %1519 = vmatprep.subr.mxu0 %v1074
    %1520 = vmatpush1.msra.mxu0 %v1073
    %1521 = vmatprep.subr.mxu0 %v1082
    %1522 = vmatpush1.msra.mxu0 %v1081
    %1523 = vmatprep.subr.mxu0 %v1090
    %1524 = vmatpush1.msra.mxu0 %v1089
    %1525 = vmatprep.subr.mxu0 %v1098
    %1526 = vmatpush1.msra.mxu0 %v1097
    %1527 = vmatprep.subr.mxu0 %v1106
    %1528 = vmatpush1.msra.mxu0 %v1105
    %1529 = vmatprep.subr.mxu0 %v1114
    %1530 = vmatpush1.msra.mxu0 %v1113
    %1531 = vmatprep.subr.mxu0 %v1122
    %1532 = vmatpush1.msra.mxu0 %v1121
    %1533 = vmatprep.subr.mxu0 %v1130
    %1534 = vmatpush1.msra.mxu0 %v1129
    %1535 = vmatprep.subr.mxu0 %v1138
    %1536 = vmatpush1.msra.mxu0 %v1137
    %1537 = vmatprep.subr.mxu0 %v1146
    %1538 = vmatpush1.msra.mxu0 %v1145
    %1539 = vmatprep.subr.mxu0 %v1154
    %1540 = vmatpush1.msra.mxu0 %v1153
    %1541 = vmatprep.subr.mxu0 %v1162
    %1542 = vmatpush1.msra.mxu0 %v1161
    %1543 = vmatprep.subr.mxu0 %v1170
    %1544 = vmatpush1.msra.mxu0 %v1169
    %1545 = vmatprep.subr.mxu0 %v1178
    %1546 = vmatpush1.msra.mxu0 %v1177
    %1547 = vmatprep.mubr.f32.mxu0 %v916
    %1548 = vmatmul.mubr.f32.gmra.mrb[0].mxu0 %v915
    %v1549 = vpop.f32.mrb[0].mxu0
    %v1550 = vadd.f32 %v1446, %v1549
    %v1551 = vpop.f32.mrb[0].mxu0
    %v1552 = vadd.f32 %v1450, %v1551
    %1553 = vdwg.mxu0
    %1554 = vmatprep.subr.mxu0 %v1186
    %1555 = vmatpush1.msra.mxu0 %v1185
    %1556 = vmatprep.subr.mxu0 %v1194
    %1557 = vmatpush1.msra.mxu0 %v1193
    %1558 = vmatprep.subr.mxu0 %v1202
    %1559 = vmatpush1.msra.mxu0 %v1201
    %1560 = vmatprep.subr.mxu0 %v1210
    %1561 = vmatpush1.msra.mxu0 %v1209
    %1562 = vmatprep.subr.mxu0 %v1218
    %1563 = vmatpush1.msra.mxu0 %v1217
    %1564 = vmatprep.subr.mxu0 %v1226
    %1565 = vmatpush1.msra.mxu0 %v1225
    %1566 = vmatprep.subr.mxu0 %v1234
    %1567 = vmatpush1.msra.mxu0 %v1233
    %1568 = vmatprep.subr.mxu0 %v1242
    %1569 = vmatpush1.msra.mxu0 %v1241
    %1570 = vmatprep.subr.mxu0 %v1250
    %1571 = vmatpush1.msra.mxu0 %v1249
    %1572 = vmatprep.subr.mxu0 %v1258
    %1573 = vmatpush1.msra.mxu0 %v1257
    %1574 = vmatprep.subr.mxu0 %v1266
    %1575 = vmatpush1.msra.mxu0 %v1265
    %1576 = vmatprep.subr.mxu0 %v1274
    %1577 = vmatpush1.msra.mxu0 %v1273
    %1578 = vmatprep.subr.mxu0 %v1282
    %1579 = vmatpush1.msra.mxu0 %v1281
    %1580 = vmatprep.subr.mxu0 %v1290
    %1581 = vmatpush1.msra.mxu0 %v1289
    %1582 = vmatprep.subr.mxu0 %v1298
    %1583 = vmatpush1.msra.mxu0 %v1297
    %1584 = vmatprep.subr.mxu0 %v1306
    %1585 = vmatpush1.msra.mxu0 %v1305
    %1586 = vmatprep.subr.mxu0 %v1314
    %1587 = vmatpush1.msra.mxu0 %v1313
    %1588 = vmatprep.subr.mxu0 %v1322
    %1589 = vmatpush1.msra.mxu0 %v1321
    %1590 = vmatprep.subr.mxu0 %v1330
    %1591 = vmatpush1.msra.mxu0 %v1329
    %1592 = vmatprep.subr.mxu0 %v1338
    %1593 = vmatpush1.msra.mxu0 %v1337
    %1594 = vmatprep.subr.mxu0 %v1346
    %1595 = vmatpush1.msra.mxu0 %v1345
    %1596 = vmatprep.subr.mxu0 %v1354
    %1597 = vmatpush1.msra.mxu0 %v1353
    %1598 = vmatprep.subr.mxu0 %v1362
    %1599 = vmatpush1.msra.mxu0 %v1361
    %1600 = vmatprep.subr.mxu0 %v1370
    %1601 = vmatpush1.msra.mxu0 %v1369
    %1602 = vmatprep.subr.mxu0 %v1378
    %1603 = vmatpush1.msra.mxu0 %v1377
    %1604 = vmatprep.subr.mxu0 %v1386
    %1605 = vmatpush1.msra.mxu0 %v1385
    %1606 = vmatprep.subr.mxu0 %v1394
    %1607 = vmatpush1.msra.mxu0 %v1393
    %1608 = vmatprep.subr.mxu0 %v1402
    %1609 = vmatpush1.msra.mxu0 %v1401
    %1610 = vmatprep.subr.mxu0 %v1410
    %1611 = vmatpush1.msra.mxu0 %v1409
    %1612 = vmatprep.subr.mxu0 %v1418
    %1613 = vmatpush1.msra.mxu0 %v1417
    %1614 = vmatprep.subr.mxu0 %v1426
    %1615 = vmatpush1.msra.mxu0 %v1425
    %1616 = vmatprep.subr.mxu0 %v1434
    %1617 = vmatpush1.msra.mxu0 %v1433
    %1618 = vmatprep.mubr.f32.mxu0 %v926
    %1619 = vmatmul.mubr.f32.gmra.mrb[0].mxu0 %v925
    %v1620 = vpop.f32.mrb[0].mxu0
    %v1621 = vadd.f32 %v1550, %v1620
    %v1622 = vpop.f32.mrb[0].mxu0
    %v1623 = vadd.f32 %v1552, %v1622
    %1624 = vdwg.mxu0
    %1625 = vmatprep.subr.mxu0 %v932
    %1626 = vmatpush1.msra.mxu0 %v931
    %1627 = vmatprep.subr.mxu0 %v940
    %1628 = vmatpush1.msra.mxu0 %v939
    %1629 = vmatprep.subr.mxu0 %v948
    %1630 = vmatpush1.msra.mxu0 %v947
    %1631 = vmatprep.subr.mxu0 %v956
    %1632 = vmatpush1.msra.mxu0 %v955
    %1633 = vmatprep.subr.mxu0 %v964
    %1634 = vmatpush1.msra.mxu0 %v963
    %1635 = vmatprep.subr.mxu0 %v972
    %1636 = vmatpush1.msra.mxu0 %v971
    %1637 = vmatprep.subr.mxu0 %v980
    %1638 = vmatpush1.msra.mxu0 %v979
    %1639 = vmatprep.subr.mxu0 %v988
    %1640 = vmatpush1.msra.mxu0 %v987
    %1641 = vmatprep.subr.mxu0 %v996
    %1642 = vmatpush1.msra.mxu0 %v995
    %1643 = vmatprep.subr.mxu0 %v1004
    %1644 = vmatpush1.msra.mxu0 %v1003
    %1645 = vmatprep.subr.mxu0 %v1012
    %1646 = vmatpush1.msra.mxu0 %v1011
    %1647 = vmatprep.subr.mxu0 %v1020
    %1648 = vmatpush1.msra.mxu0 %v1019
    %1649 = vmatprep.subr.mxu0 %v1028
    %1650 = vmatpush1.msra.mxu0 %v1027
    %1651 = vmatprep.subr.mxu0 %v1036
    %1652 = vmatpush1.msra.mxu0 %v1035
    %1653 = vmatprep.subr.mxu0 %v1044
    %1654 = vmatpush1.msra.mxu0 %v1043
    %1655 = vmatprep.subr.mxu0 %v1052
    %1656 = vmatpush1.msra.mxu0 %v1051
    %1657 = vmatprep.subr.mxu0 %v1060
    %1658 = vmatpush1.msra.mxu0 %v1059
    %1659 = vmatprep.subr.mxu0 %v1068
    %1660 = vmatpush1.msra.mxu0 %v1067
    %1661 = vmatprep.subr.mxu0 %v1076
    %1662 = vmatpush1.msra.mxu0 %v1075
    %1663 = vmatprep.subr.mxu0 %v1084
    %1664 = vmatpush1.msra.mxu0 %v1083
    %1665 = vmatprep.subr.mxu0 %v1092
    %1666 = vmatpush1.msra.mxu0 %v1091
    %1667 = vmatprep.subr.mxu0 %v1100
    %1668 = vmatpush1.msra.mxu0 %v1099
    %1669 = vmatprep.subr.mxu0 %v1108
    %1670 = vmatpush1.msra.mxu0 %v1107
    %1671 = vmatprep.subr.mxu0 %v1116
    %1672 = vmatpush1.msra.mxu0 %v1115
    %1673 = vmatprep.subr.mxu0 %v1124
    %1674 = vmatpush1.msra.mxu0 %v1123
    %1675 = vmatprep.subr.mxu0 %v1132
    %1676 = vmatpush1.msra.mxu0 %v1131
    %1677 = vmatprep.subr.mxu0 %v1140
    %1678 = vmatpush1.msra.mxu0 %v1139
    %1679 = vmatprep.subr.mxu0 %v1148
    %1680 = vmatpush1.msra.mxu0 %v1147
    %1681 = vmatprep.subr.mxu0 %v1156
    %1682 = vmatpush1.msra.mxu0 %v1155
    %1683 = vmatprep.subr.mxu0 %v1164
    %1684 = vmatpush1.msra.mxu0 %v1163
    %1685 = vmatprep.subr.mxu0 %v1172
    %1686 = vmatpush1.msra.mxu0 %v1171
    %1687 = vmatprep.subr.mxu0 %v1180
    %1688 = vmatpush1.msra.mxu0 %v1179
    %1689 = vmatprep.mubr.f32.mxu0 %v916
    %1690 = vmatmul.mubr.f32.gmra.mrb[0].mxu0 %v915
    %v1691 = vpop.f32.mrb[0].mxu0
    %v1692 = vadd.f32 %v1454, %v1691
    %v1693 = vpop.f32.mrb[0].mxu0
    %v1694 = vadd.f32 %v1458, %v1693
    %1695 = vdwg.mxu0
    %1696 = vmatprep.subr.mxu0 %v1188
    %1697 = vmatpush1.msra.mxu0 %v1187
    %1698 = vmatprep.subr.mxu0 %v1196
    %1699 = vmatpush1.msra.mxu0 %v1195
    %1700 = vmatprep.subr.mxu0 %v1204
    %1701 = vmatpush1.msra.mxu0 %v1203
    %1702 = vmatprep.subr.mxu0 %v1212
    %1703 = vmatpush1.msra.mxu0 %v1211
    %1704 = vmatprep.subr.mxu0 %v1220
    %1705 = vmatpush1.msra.mxu0 %v1219
    %1706 = vmatprep.subr.mxu0 %v1228
    %1707 = vmatpush1.msra.mxu0 %v1227
    %1708 = vmatprep.subr.mxu0 %v1236
    %1709 = vmatpush1.msra.mxu0 %v1235
    %1710 = vmatprep.subr.mxu0 %v1244
    %1711 = vmatpush1.msra.mxu0 %v1243
    %1712 = vmatprep.subr.mxu0 %v1252
    %1713 = vmatpush1.msra.mxu0 %v1251
    %1714 = vmatprep.subr.mxu0 %v1260
    %1715 = vmatpush1.msra.mxu0 %v1259
    %1716 = vmatprep.subr.mxu0 %v1268
    %1717 = vmatpush1.msra.mxu0 %v1267
    %1718 = vmatprep.subr.mxu0 %v1276
    %1719 = vmatpush1.msra.mxu0 %v1275
    %1720 = vmatprep.subr.mxu0 %v1284
    %1721 = vmatpush1.msra.mxu0 %v1283
    %1722 = vmatprep.subr.mxu0 %v1292
    %1723 = vmatpush1.msra.mxu0 %v1291
    %1724 = vmatprep.subr.mxu0 %v1300
    %1725 = vmatpush1.msra.mxu0 %v1299
    %1726 = vmatprep.subr.mxu0 %v1308
    %1727 = vmatpush1.msra.mxu0 %v1307
    %1728 = vmatprep.subr.mxu0 %v1316
    %1729 = vmatpush1.msra.mxu0 %v1315
    %1730 = vmatprep.subr.mxu0 %v1324
    %1731 = vmatpush1.msra.mxu0 %v1323
    %1732 = vmatprep.subr.mxu0 %v1332
    %1733 = vmatpush1.msra.mxu0 %v1331
    %1734 = vmatprep.subr.mxu0 %v1340
    %1735 = vmatpush1.msra.mxu0 %v1339
    %1736 = vmatprep.subr.mxu0 %v1348
    %1737 = vmatpush1.msra.mxu0 %v1347
    %1738 = vmatprep.subr.mxu0 %v1356
    %1739 = vmatpush1.msra.mxu0 %v1355
    %1740 = vmatprep.subr.mxu0 %v1364
    %1741 = vmatpush1.msra.mxu0 %v1363
    %1742 = vmatprep.subr.mxu0 %v1372
    %1743 = vmatpush1.msra.mxu0 %v1371
    %1744 = vmatprep.subr.mxu0 %v1380
    %1745 = vmatpush1.msra.mxu0 %v1379
    %1746 = vmatprep.subr.mxu0 %v1388
    %1747 = vmatpush1.msra.mxu0 %v1387
    %1748 = vmatprep.subr.mxu0 %v1396
    %1749 = vmatpush1.msra.mxu0 %v1395
    %1750 = vmatprep.subr.mxu0 %v1404
    %1751 = vmatpush1.msra.mxu0 %v1403
    %1752 = vmatprep.subr.mxu0 %v1412
    %1753 = vmatpush1.msra.mxu0 %v1411
    %1754 = vmatprep.subr.mxu0 %v1420
    %1755 = vmatpush1.msra.mxu0 %v1419
    %1756 = vmatprep.subr.mxu0 %v1428
    %1757 = vmatpush1.msra.mxu0 %v1427
    %1758 = vmatprep.subr.mxu0 %v1436
    %1759 = vmatpush1.msra.mxu0 %v1435
    %1760 = vmatprep.mubr.f32.mxu0 %v926
    %1761 = vmatmul.mubr.f32.gmra.mrb[0].mxu0 %v925
    %v1762 = vpop.f32.mrb[0].mxu0
    %v1763 = vadd.f32 %v1692, %v1762
    %v1764 = vpop.f32.mrb[0].mxu0
    %v1765 = vadd.f32 %v1694, %v1764
    %1766 = vdwg.mxu0
    %1767 = vmatprep.subr.mxu0 %v934
    %1768 = vmatpush1.msra.mxu0 %v933
    %1769 = vmatprep.subr.mxu0 %v942
    %1770 = vmatpush1.msra.mxu0 %v941
    %1771 = vmatprep.subr.mxu0 %v950
    %1772 = vmatpush1.msra.mxu0 %v949
    %1773 = vmatprep.subr.mxu0 %v958
    %1774 = vmatpush1.msra.mxu0 %v957
    %1775 = vmatprep.subr.mxu0 %v966
    %1776 = vmatpush1.msra.mxu0 %v965
    %1777 = vmatprep.subr.mxu0 %v974
    %1778 = vmatpush1.msra.mxu0 %v973
    %1779 = vmatprep.subr.mxu0 %v982
    %1780 = vmatpush1.msra.mxu0 %v981
    %1781 = vmatprep.subr.mxu0 %v990
    %1782 = vmatpush1.msra.mxu0 %v989
    %1783 = vmatprep.subr.mxu0 %v998
    %1784 = vmatpush1.msra.mxu0 %v997
    %1785 = vmatprep.subr.mxu0 %v1006
    %1786 = vmatpush1.msra.mxu0 %v1005
    %1787 = vmatprep.subr.mxu0 %v1014
    %1788 = vmatpush1.msra.mxu0 %v1013
    %1789 = vmatprep.subr.mxu0 %v1022
    %1790 = vmatpush1.msra.mxu0 %v1021
    %1791 = vmatprep.subr.mxu0 %v1030
    %1792 = vmatpush1.msra.mxu0 %v1029
    %1793 = vmatprep.subr.mxu0 %v1038
    %1794 = vmatpush1.msra.mxu0 %v1037
    %1795 = vmatprep.subr.mxu0 %v1046
    %1796 = vmatpush1.msra.mxu0 %v1045
    %1797 = vmatprep.subr.mxu0 %v1054
    %1798 = vmatpush1.msra.mxu0 %v1053
    %1799 = vmatprep.subr.mxu0 %v1062
    %1800 = vmatpush1.msra.mxu0 %v1061
    %1801 = vmatprep.subr.mxu0 %v1070
    %1802 = vmatpush1.msra.mxu0 %v1069
    %1803 = vmatprep.subr.mxu0 %v1078
    %1804 = vmatpush1.msra.mxu0 %v1077
    %1805 = vmatprep.subr.mxu0 %v1086
    %1806 = vmatpush1.msra.mxu0 %v1085
    %1807 = vmatprep.subr.mxu0 %v1094
    %1808 = vmatpush1.msra.mxu0 %v1093
    %1809 = vmatprep.subr.mxu0 %v1102
    %1810 = vmatpush1.msra.mxu0 %v1101
    %1811 = vmatprep.subr.mxu0 %v1110
    %1812 = vmatpush1.msra.mxu0 %v1109
    %1813 = vmatprep.subr.mxu0 %v1118
    %1814 = vmatpush1.msra.mxu0 %v1117
    %1815 = vmatprep.subr.mxu0 %v1126
    %1816 = vmatpush1.msra.mxu0 %v1125
    %1817 = vmatprep.subr.mxu0 %v1134
    %1818 = vmatpush1.msra.mxu0 %v1133
    %1819 = vmatprep.subr.mxu0 %v1142
    %1820 = vmatpush1.msra.mxu0 %v1141
    %1821 = vmatprep.subr.mxu0 %v1150
    %1822 = vmatpush1.msra.mxu0 %v1149
    %1823 = vmatprep.subr.mxu0 %v1158
    %1824 = vmatpush1.msra.mxu0 %v1157
    %1825 = vmatprep.subr.mxu0 %v1166
    %1826 = vmatpush1.msra.mxu0 %v1165
    %1827 = vmatprep.subr.mxu0 %v1174
    %1828 = vmatpush1.msra.mxu0 %v1173
    %1829 = vmatprep.subr.mxu0 %v1182
    %1830 = vmatpush1.msra.mxu0 %v1181
    %1831 = vmatprep.mubr.f32.mxu0 %v916
    %1832 = vmatmul.mubr.f32.gmra.mrb[0].mxu0 %v915
    %v1833 = vpop.f32.mrb[0].mxu0
    %v1834 = vadd.f32 %v1462, %v1833
    %v1835 = vpop.f32.mrb[0].mxu0
    %v1836 = vadd.f32 %v1466, %v1835
    %1837 = vdwg.mxu0
    %1838 = vmatprep.subr.mxu0 %v1190
    %1839 = vmatpush1.msra.mxu0 %v1189
    %1840 = vmatprep.subr.mxu0 %v1198
    %1841 = vmatpush1.msra.mxu0 %v1197
    %1842 = vmatprep.subr.mxu0 %v1206
    %1843 = vmatpush1.msra.mxu0 %v1205
    %1844 = vmatprep.subr.mxu0 %v1214
    %1845 = vmatpush1.msra.mxu0 %v1213
    %1846 = vmatprep.subr.mxu0 %v1222
    %1847 = vmatpush1.msra.mxu0 %v1221
    %1848 = vmatprep.subr.mxu0 %v1230
    %1849 = vmatpush1.msra.mxu0 %v1229
    %1850 = vmatprep.subr.mxu0 %v1238
    %1851 = vmatpush1.msra.mxu0 %v1237
    %1852 = vmatprep.subr.mxu0 %v1246
    %1853 = vmatpush1.msra.mxu0 %v1245
    %1854 = vmatprep.subr.mxu0 %v1254
    %1855 = vmatpush1.msra.mxu0 %v1253
    %1856 = vmatprep.subr.mxu0 %v1262
    %1857 = vmatpush1.msra.mxu0 %v1261
    %1858 = vmatprep.subr.mxu0 %v1270
    %1859 = vmatpush1.msra.mxu0 %v1269
    %1860 = vmatprep.subr.mxu0 %v1278
    %1861 = vmatpush1.msra.mxu0 %v1277
    %1862 = vmatprep.subr.mxu0 %v1286
    %1863 = vmatpush1.msra.mxu0 %v1285
    %1864 = vmatprep.subr.mxu0 %v1294
    %1865 = vmatpush1.msra.mxu0 %v1293
    %1866 = vmatprep.subr.mxu0 %v1302
    %1867 = vmatpush1.msra.mxu0 %v1301
    %1868 = vmatprep.subr.mxu0 %v1310
    %1869 = vmatpush1.msra.mxu0 %v1309
    %1870 = vmatprep.subr.mxu0 %v1318
    %1871 = vmatpush1.msra.mxu0 %v1317
    %1872 = vmatprep.subr.mxu0 %v1326
    %1873 = vmatpush1.msra.mxu0 %v1325
    %1874 = vmatprep.subr.mxu0 %v1334
    %1875 = vmatpush1.msra.mxu0 %v1333
    %1876 = vmatprep.subr.mxu0 %v1342
    %1877 = vmatpush1.msra.mxu0 %v1341
    %1878 = vmatprep.subr.mxu0 %v1350
    %1879 = vmatpush1.msra.mxu0 %v1349
    %1880 = vmatprep.subr.mxu0 %v1358
    %1881 = vmatpush1.msra.mxu0 %v1357
    %1882 = vmatprep.subr.mxu0 %v1366
    %1883 = vmatpush1.msra.mxu0 %v1365
    %1884 = vmatprep.subr.mxu0 %v1374
    %1885 = vmatpush1.msra.mxu0 %v1373
    %1886 = vmatprep.subr.mxu0 %v1382
    %1887 = vmatpush1.msra.mxu0 %v1381
    %1888 = vmatprep.subr.mxu0 %v1390
    %1889 = vmatpush1.msra.mxu0 %v1389
    %1890 = vmatprep.subr.mxu0 %v1398
    %1891 = vmatpush1.msra.mxu0 %v1397
    %1892 = vmatprep.subr.mxu0 %v1406
    %1893 = vmatpush1.msra.mxu0 %v1405
    %1894 = vmatprep.subr.mxu0 %v1414
    %1895 = vmatpush1.msra.mxu0 %v1413
    %1896 = vmatprep.subr.mxu0 %v1422
    %1897 = vmatpush1.msra.mxu0 %v1421
    %1898 = vmatprep.subr.mxu0 %v1430
    %1899 = vmatpush1.msra.mxu0 %v1429
    %1900 = vmatprep.subr.mxu0 %v1438
    %1901 = vmatpush1.msra.mxu0 %v1437
    %1902 = vmatprep.mubr.f32.mxu0 %v926
    %1903 = vmatmul.mubr.f32.gmra.mrb[0].mxu0 %v925
    %v1904 = vpop.f32.mrb[0].mxu0
    %v1905 = vadd.f32 %v1834, %v1904
    %v1906 = vpop.f32.mrb[0].mxu0
    %v1907 = vadd.f32 %v1836, %v1906
    %1908 = vdwg.mxu0
    %1909 = vmatprep.subr.mxu0 %v936
    %1910 = vmatpush1.msra.mxu0 %v935
    %1911 = vmatprep.subr.mxu0 %v944
    %1912 = vmatpush1.msra.mxu0 %v943
    %1913 = vmatprep.subr.mxu0 %v952
    %1914 = vmatpush1.msra.mxu0 %v951
    %1915 = vmatprep.subr.mxu0 %v960
    %1916 = vmatpush1.msra.mxu0 %v959
    %1917 = vmatprep.subr.mxu0 %v968
    %1918 = vmatpush1.msra.mxu0 %v967
    %1919 = vmatprep.subr.mxu0 %v976
    %1920 = vmatpush1.msra.mxu0 %v975
    %1921 = vmatprep.subr.mxu0 %v984
    %1922 = vmatpush1.msra.mxu0 %v983
    %1923 = vmatprep.subr.mxu0 %v992
    %1924 = vmatpush1.msra.mxu0 %v991
    %1925 = vmatprep.subr.mxu0 %v1000
    %1926 = vmatpush1.msra.mxu0 %v999
    %1927 = vmatprep.subr.mxu0 %v1008
    %1928 = vmatpush1.msra.mxu0 %v1007
    %1929 = vmatprep.subr.mxu0 %v1016
    %1930 = vmatpush1.msra.mxu0 %v1015
    %1931 = vmatprep.subr.mxu0 %v1024
    %1932 = vmatpush1.msra.mxu0 %v1023
    %1933 = vmatprep.subr.mxu0 %v1032
    %1934 = vmatpush1.msra.mxu0 %v1031
    %1935 = vmatprep.subr.mxu0 %v1040
    %1936 = vmatpush1.msra.mxu0 %v1039
    %1937 = vmatprep.subr.mxu0 %v1048
    %1938 = vmatpush1.msra.mxu0 %v1047
    %1939 = vmatprep.subr.mxu0 %v1056
    %1940 = vmatpush1.msra.mxu0 %v1055
    %1941 = vmatprep.subr.mxu0 %v1064
    %1942 = vmatpush1.msra.mxu0 %v1063
    %1943 = vmatprep.subr.mxu0 %v1072
    %1944 = vmatpush1.msra.mxu0 %v1071
    %1945 = vmatprep.subr.mxu0 %v1080
    %1946 = vmatpush1.msra.mxu0 %v1079
    %1947 = vmatprep.subr.mxu0 %v1088
    %1948 = vmatpush1.msra.mxu0 %v1087
    %1949 = vmatprep.subr.mxu0 %v1096
    %1950 = vmatpush1.msra.mxu0 %v1095
    %1951 = vmatprep.subr.mxu0 %v1104
    %1952 = vmatpush1.msra.mxu0 %v1103
    %1953 = vmatprep.subr.mxu0 %v1112
    %1954 = vmatpush1.msra.mxu0 %v1111
    %1955 = vmatprep.subr.mxu0 %v1120
    %1956 = vmatpush1.msra.mxu0 %v1119
    %1957 = vmatprep.subr.mxu0 %v1128
    %1958 = vmatpush1.msra.mxu0 %v1127
    %1959 = vmatprep.subr.mxu0 %v1136
    %1960 = vmatpush1.msra.mxu0 %v1135
    %1961 = vmatprep.subr.mxu0 %v1144
    %1962 = vmatpush1.msra.mxu0 %v1143
    %1963 = vmatprep.subr.mxu0 %v1152
    %1964 = vmatpush1.msra.mxu0 %v1151
    %1965 = vmatprep.subr.mxu0 %v1160
    %1966 = vmatpush1.msra.mxu0 %v1159
    %1967 = vmatprep.subr.mxu0 %v1168
    %1968 = vmatpush1.msra.mxu0 %v1167
    %1969 = vmatprep.subr.mxu0 %v1176
    %1970 = vmatpush1.msra.mxu0 %v1175
    %1971 = vmatprep.subr.mxu0 %v1184
    %1972 = vmatpush1.msra.mxu0 %v1183
    %1973 = vmatprep.mubr.f32.mxu0 %v916
    %1974 = vmatmul.mubr.f32.gmra.mrb[0].mxu0 %v915
    %v1975 = vpop.f32.mrb[0].mxu0
    %v1976 = vadd.f32 %v1470, %v1975
    %v1977 = vpop.f32.mrb[0].mxu0
    %v1978 = vadd.f32 %v1474, %v1977
    %1979 = vdwg.mxu0
    %1980 = vmatprep.subr.mxu0 %v1192
    %1981 = vmatpush1.msra.mxu0 %v1191
    %1982 = vmatprep.subr.mxu0 %v1200
    %1983 = vmatpush1.msra.mxu0 %v1199
    %1984 = vmatprep.subr.mxu0 %v1208
    %1985 = vmatpush1.msra.mxu0 %v1207
    %1986 = vmatprep.subr.mxu0 %v1216
    %1987 = vmatpush1.msra.mxu0 %v1215
    %1988 = vmatprep.subr.mxu0 %v1224
    %1989 = vmatpush1.msra.mxu0 %v1223
    %1990 = vmatprep.subr.mxu0 %v1232
    %1991 = vmatpush1.msra.mxu0 %v1231
    %1992 = vmatprep.subr.mxu0 %v1240
    %1993 = vmatpush1.msra.mxu0 %v1239
    %1994 = vmatprep.subr.mxu0 %v1248
    %1995 = vmatpush1.msra.mxu0 %v1247
    %1996 = vmatprep.subr.mxu0 %v1256
    %1997 = vmatpush1.msra.mxu0 %v1255
    %1998 = vmatprep.subr.mxu0 %v1264
    %1999 = vmatpush1.msra.mxu0 %v1263
    %2000 = vmatprep.subr.mxu0 %v1272
    %2001 = vmatpush1.msra.mxu0 %v1271
    %2002 = vmatprep.subr.mxu0 %v1280
    %2003 = vmatpush1.msra.mxu0 %v1279
    %2004 = vmatprep.subr.mxu0 %v1288
    %2005 = vmatpush1.msra.mxu0 %v1287
    %2006 = vmatprep.subr.mxu0 %v1296
    %2007 = vmatpush1.msra.mxu0 %v1295
    %2008 = vmatprep.subr.mxu0 %v1304
    %2009 = vmatpush1.msra.mxu0 %v1303
    %2010 = vmatprep.subr.mxu0 %v1312
    %2011 = vmatpush1.msra.mxu0 %v1311
    %2012 = vmatprep.subr.mxu0 %v1320
    %2013 = vmatpush1.msra.mxu0 %v1319
    %2014 = vmatprep.subr.mxu0 %v1328
    %2015 = vmatpush1.msra.mxu0 %v1327
    %2016 = vmatprep.subr.mxu0 %v1336
    %2017 = vmatpush1.msra.mxu0 %v1335
    %2018 = vmatprep.subr.mxu0 %v1344
    %2019 = vmatpush1.msra.mxu0 %v1343
    %2020 = vmatprep.subr.mxu0 %v1352
    %2021 = vmatpush1.msra.mxu0 %v1351
    %2022 = vmatprep.subr.mxu0 %v1360
    %2023 = vmatpush1.msra.mxu0 %v1359
    %2024 = vmatprep.subr.mxu0 %v1368
    %2025 = vmatpush1.msra.mxu0 %v1367
    %2026 = vmatprep.subr.mxu0 %v1376
    %2027 = vmatpush1.msra.mxu0 %v1375
    %2028 = vmatprep.subr.mxu0 %v1384
    %2029 = vmatpush1.msra.mxu0 %v1383
    %2030 = vmatprep.subr.mxu0 %v1392
    %2031 = vmatpush1.msra.mxu0 %v1391
    %2032 = vmatprep.subr.mxu0 %v1400
    %2033 = vmatpush1.msra.mxu0 %v1399
    %2034 = vmatprep.subr.mxu0 %v1408
    %2035 = vmatpush1.msra.mxu0 %v1407
    %2036 = vmatprep.subr.mxu0 %v1416
    %2037 = vmatpush1.msra.mxu0 %v1415
    %2038 = vmatprep.subr.mxu0 %v1424
    %2039 = vmatpush1.msra.mxu0 %v1423
    %2040 = vmatprep.subr.mxu0 %v1432
    %2041 = vmatpush1.msra.mxu0 %v1431
    %2042 = vmatprep.subr.mxu0 %v1440
    %2043 = vmatpush1.msra.mxu0 %v1439
    %2044 = vmatprep.mubr.f32.mxu0 %v926
    %2045 = vmatmul.mubr.f32.gmra.mrb[0].mxu0 %v925
    %v2046 = vpop.f32.mrb[0].mxu0
    %v2047 = vadd.f32 %v1976, %v2046
    %v2048 = vpop.f32.mrb[0].mxu0
    %v2049 = vadd.f32 %v1978, %v2048
    %2050 = vdwg.mxu0
    %v2051 = vxor.u32 %v1621, 2147483648
    %v2052 = vxor.u32 %v1623, 2147483648
    %v2053 = vmul.f32 %v2051, 1.442695
    %v2054 = vpow.pop %v2053
    %v2055 = vmul.f32 %v2052, 1.442695
    %v2056 = vpow.pop %v2055
    %v2057 = vadd.f32 %v2054, 1.0
    %v2058 = vadd.f32 %v2056, 1.0
    %v2059 = vrcp.pop %v2057
    %v2060 = vmul.f32 1.0, %v2059
    %v2061 = vrcp.pop %v2058
    %v2062 = vmul.f32 1.0, %v2061
    %v2063 = vxor.u32 %v1763, 2147483648
    %v2064 = vxor.u32 %v1765, 2147483648
    %v2065 = vmul.f32 %v2063, 1.442695
    %v2066 = vpow.pop %v2065
    %v2067 = vmul.f32 %v2064, 1.442695
    %v2068 = vpow.pop %v2067
    %v2069 = vadd.f32 %v2066, 1.0
    %v2070 = vadd.f32 %v2068, 1.0
    %v2071 = vrcp.pop %v2069
    %v2072 = vmul.f32 1.0, %v2071
    %v2073 = vrcp.pop %v2070
    %v2074 = vmul.f32 1.0, %v2073
    %v2075 = vtanh.pop %v1905
    %v2076 = vtanh.pop %v1907
    %v2077 = vxor.u32 %v2047, 2147483648
    %v2078 = vxor.u32 %v2049, 2147483648
    %v2079 = vmul.f32 %v2077, 1.442695
    %v2080 = vpow.pop %v2079
    %v2081 = vmul.f32 %v2078, 1.442695
    %v2082 = vpow.pop %v2081
    %v2083 = vadd.f32 %v2080, 1.0
    %v2084 = vadd.f32 %v2082, 1.0
    %v2085 = vrcp.pop %v2083
    %v2086 = vmul.f32 1.0, %v2085
    %v2087 = vrcp.pop %v2084
    %v2088 = vmul.f32 1.0, %v2087
    %v2089 = vld [vmem:[#allocation7] sm:$0xf]
    %v2092 = vunpack.c.l.s4 1983009808
    %v2093 = vunpack.c.0.s8 %v2092
    %v2094 = vlaneseq
    %v2095 = vshrl.u32 %v2094, 7
    %v2096 = vsub.s32 %v2093, %v2095
    %v2097 = vrot.slane %v2089, %v2096
    %v2098 = vcombine.high %v2097, %v2097
    %v2101 = vmul.f32 %v2072, %v2097
    %v2102 = vmul.f32 %v2074, %v2098
    %v2103 = vmul.f32 %v2060, %v2075
    %v2104 = vmul.f32 %v2062, %v2076
    %v2105 = vadd.f32 %v2101, %v2103
    %v2106 = vadd.f32 %v2102, %v2104
    %v2107 = vtanh.pop %v2105
    %v2108 = vtanh.pop %v2106
    %v2109 = vmul.f32 %v2086, %v2107
    %v2110 = vmul.f32 %v2088, %v2108
    %v2113 = vcombine.low %v2109, %v2110
    %v2115 = vunpack.c.l.s4 1983009808
    %v2116 = vunpack.c.0.s8 %v2115
    %v2117 = vlaneseq
    %v2118 = vshrl.u32 %v2117, 7
    %v2119 = vsub.s32 %v2116, %v2118
    %v2120 = vrot.slane %v2113, %v2119
    %2122 = vst [vmem:[#allocation33] sm:$0xf] %v2120
    %v2125 = vcombine.low %v2105, %v2106
    %v2127 = vunpack.c.l.s4 1983009808
    %v2128 = vunpack.c.0.s8 %v2127
    %v2129 = vlaneseq
    %v2130 = vshrl.u32 %v2129, 7
    %v2131 = vsub.s32 %v2128, %v2130
    %v2132 = vrot.slane %v2125, %v2131
    %2134 = vst [vmem:[#allocation35] sm:$0xf] %v2132
    %v2135 = vld [vmem:[#allocation20] sm:$0xff]
    %v2136 = vld [vmem:[#allocation20 + $0x8] sm:$0xff]
    %v2137 = vld [vmem:[#allocation20 + $0x10] sm:$0xff]
    %v2138 = vld [vmem:[#allocation20 + $0x18] sm:$0xff]
    %v2139 = vld [vmem:[#allocation20 + $0x20] sm:$0xff]
    %v2140 = vld [vmem:[#allocation20 + $0x28] sm:$0xff]
    %v2141 = vld [vmem:[#allocation20 + $0x30] sm:$0xff]
    %v2142 = vld [vmem:[#allocation20 + $0x38] sm:$0xff]
    %v2143 = vld [vmem:[#allocation20 + $0x40] sm:$0xff]
    %v2144 = vld [vmem:[#allocation20 + $0x48] sm:$0xff]
    %v2145 = vld [vmem:[#allocation20 + $0x50] sm:$0xff]
    %v2146 = vld [vmem:[#allocation20 + $0x58] sm:$0xff]
    %v2147 = vld [vmem:[#allocation20 + $0x60] sm:$0xff]
    %v2148 = vld [vmem:[#allocation20 + $0x68] sm:$0xff]
    %v2149 = vld [vmem:[#allocation20 + $0x70] sm:$0xff]
    %v2150 = vld [vmem:[#allocation20 + $0x78] sm:$0xff]
    %v2151 = vld [vmem:[#allocation20 + $0x80] sm:$0xff]
    %v2152 = vld [vmem:[#allocation20 + $0x88] sm:$0xff]
    %v2153 = vld [vmem:[#allocation20 + $0x90] sm:$0xff]
    %v2154 = vld [vmem:[#allocation20 + $0x98] sm:$0xff]
    %v2155 = vld [vmem:[#allocation20 + $0xa0] sm:$0xff]
    %v2156 = vld [vmem:[#allocation20 + $0xa8] sm:$0xff]
    %v2157 = vld [vmem:[#allocation20 + $0xb0] sm:$0xff]
    %v2158 = vld [vmem:[#allocation20 + $0xb8] sm:$0xff]
    %v2159 = vld [vmem:[#allocation20 + $0xc0] sm:$0xff]
    %v2160 = vld [vmem:[#allocation20 + $0xc8] sm:$0xff]
    %v2161 = vld [vmem:[#allocation20 + $0xd0] sm:$0xff]
    %v2162 = vld [vmem:[#allocation20 + $0xd8] sm:$0xff]
    %v2163 = vld [vmem:[#allocation20 + $0xe0] sm:$0xff]
    %v2164 = vld [vmem:[#allocation20 + $0xe8] sm:$0xff]
    %v2165 = vld [vmem:[#allocation20 + $0xf0] sm:$0xff]
    %v2166 = vld [vmem:[#allocation20 + $0xf8] sm:$0xff]
    %v2167 = vld [vmem:[#allocation20 + $0x100] sm:$0xff]
    %v2168 = vld [vmem:[#allocation20 + $0x108] sm:$0xff]
    %v2169 = vld [vmem:[#allocation20 + $0x110] sm:$0xff]
    %v2170 = vld [vmem:[#allocation20 + $0x118] sm:$0xff]
    %v2171 = vld [vmem:[#allocation20 + $0x120] sm:$0xff]
    %v2172 = vld [vmem:[#allocation20 + $0x128] sm:$0xff]
    %v2173 = vld [vmem:[#allocation20 + $0x130] sm:$0xff]
    %v2174 = vld [vmem:[#allocation20 + $0x138] sm:$0xff]
    %v2175 = vld [vmem:[#allocation20 + $0x140] sm:$0xff]
    %v2176 = vld [vmem:[#allocation20 + $0x148] sm:$0xff]
    %v2177 = vld [vmem:[#allocation20 + $0x150] sm:$0xff]
    %v2178 = vld [vmem:[#allocation20 + $0x158] sm:$0xff]
    %v2179 = vld [vmem:[#allocation20 + $0x160] sm:$0xff]
    %v2180 = vld [vmem:[#allocation20 + $0x168] sm:$0xff]
    %v2181 = vld [vmem:[#allocation20 + $0x170] sm:$0xff]
    %v2182 = vld [vmem:[#allocation20 + $0x178] sm:$0xff]
    %v2183 = vld [vmem:[#allocation20 + $0x180] sm:$0xff]
    %v2184 = vld [vmem:[#allocation20 + $0x188] sm:$0xff]
    %v2185 = vld [vmem:[#allocation20 + $0x190] sm:$0xff]
    %v2186 = vld [vmem:[#allocation20 + $0x198] sm:$0xff]
    %v2187 = vld [vmem:[#allocation20 + $0x1a0] sm:$0xff]
    %v2188 = vld [vmem:[#allocation20 + $0x1a8] sm:$0xff]
    %v2189 = vld [vmem:[#allocation20 + $0x1b0] sm:$0xff]
    %v2190 = vld [vmem:[#allocation20 + $0x1b8] sm:$0xff]
    %v2191 = vld [vmem:[#allocation20 + $0x1c0] sm:$0xff]
    %v2192 = vld [vmem:[#allocation20 + $0x1c8] sm:$0xff]
    %v2193 = vld [vmem:[#allocation20 + $0x1d0] sm:$0xff]
    %v2194 = vld [vmem:[#allocation20 + $0x1d8] sm:$0xff]
    %v2195 = vld [vmem:[#allocation20 + $0x1e0] sm:$0xff]
    %v2196 = vld [vmem:[#allocation20 + $0x1e8] sm:$0xff]
    %v2197 = vld [vmem:[#allocation20 + $0x1f0] sm:$0xff]
    %v2198 = vld [vmem:[#allocation20 + $0x1f8] sm:$0xff]
    %v2199 = vld [vmem:[#allocation20 + $0x200] sm:$0xff]
    %v2200 = vld [vmem:[#allocation20 + $0x208] sm:$0xff]
    %v2201 = vld [vmem:[#allocation20 + $0x210] sm:$0xff]
    %v2202 = vld [vmem:[#allocation20 + $0x218] sm:$0xff]
    %v2203 = vld [vmem:[#allocation20 + $0x220] sm:$0xff]
    %v2204 = vld [vmem:[#allocation20 + $0x228] sm:$0xff]
    %v2205 = vld [vmem:[#allocation20 + $0x230] sm:$0xff]
    %v2206 = vld [vmem:[#allocation20 + $0x238] sm:$0xff]
    %v2207 = vld [vmem:[#allocation20 + $0x240] sm:$0xff]
    %v2208 = vld [vmem:[#allocation20 + $0x248] sm:$0xff]
    %v2209 = vld [vmem:[#allocation20 + $0x250] sm:$0xff]
    %v2210 = vld [vmem:[#allocation20 + $0x258] sm:$0xff]
    %v2211 = vld [vmem:[#allocation20 + $0x260] sm:$0xff]
    %v2212 = vld [vmem:[#allocation20 + $0x268] sm:$0xff]
    %v2213 = vld [vmem:[#allocation20 + $0x270] sm:$0xff]
    %v2214 = vld [vmem:[#allocation20 + $0x278] sm:$0xff]
    %v2215 = vld [vmem:[#allocation20 + $0x280] sm:$0xff]
    %v2216 = vld [vmem:[#allocation20 + $0x288] sm:$0xff]
    %v2217 = vld [vmem:[#allocation20 + $0x290] sm:$0xff]
    %v2218 = vld [vmem:[#allocation20 + $0x298] sm:$0xff]
    %v2219 = vld [vmem:[#allocation20 + $0x2a0] sm:$0xff]
    %v2220 = vld [vmem:[#allocation20 + $0x2a8] sm:$0xff]
    %v2221 = vld [vmem:[#allocation20 + $0x2b0] sm:$0xff]
    %v2222 = vld [vmem:[#allocation20 + $0x2b8] sm:$0xff]
    %v2223 = vld [vmem:[#allocation20 + $0x2c0] sm:$0xff]
    %v2224 = vld [vmem:[#allocation20 + $0x2c8] sm:$0xff]
    %v2225 = vld [vmem:[#allocation20 + $0x2d0] sm:$0xff]
    %v2226 = vld [vmem:[#allocation20 + $0x2d8] sm:$0xff]
    %v2227 = vld [vmem:[#allocation20 + $0x2e0] sm:$0xff]
    %v2228 = vld [vmem:[#allocation20 + $0x2e8] sm:$0xff]
    %v2229 = vld [vmem:[#allocation20 + $0x2f0] sm:$0xff]
    %v2230 = vld [vmem:[#allocation20 + $0x2f8] sm:$0xff]
    %v2231 = vld [vmem:[#allocation20 + $0x300] sm:$0xff]
    %v2232 = vld [vmem:[#allocation20 + $0x308] sm:$0xff]
    %v2233 = vld [vmem:[#allocation20 + $0x310] sm:$0xff]
    %v2234 = vld [vmem:[#allocation20 + $0x318] sm:$0xff]
    %v2235 = vld [vmem:[#allocation20 + $0x320] sm:$0xff]
    %v2236 = vld [vmem:[#allocation20 + $0x328] sm:$0xff]
    %v2237 = vld [vmem:[#allocation20 + $0x330] sm:$0xff]
    %v2238 = vld [vmem:[#allocation20 + $0x338] sm:$0xff]
    %v2239 = vld [vmem:[#allocation20 + $0x340] sm:$0xff]
    %v2240 = vld [vmem:[#allocation20 + $0x348] sm:$0xff]
    %v2241 = vld [vmem:[#allocation20 + $0x350] sm:$0xff]
    %v2242 = vld [vmem:[#allocation20 + $0x358] sm:$0xff]
    %v2243 = vld [vmem:[#allocation20 + $0x360] sm:$0xff]
    %v2244 = vld [vmem:[#allocation20 + $0x368] sm:$0xff]
    %v2245 = vld [vmem:[#allocation20 + $0x370] sm:$0xff]
    %v2246 = vld [vmem:[#allocation20 + $0x378] sm:$0xff]
    %v2247 = vld [vmem:[#allocation20 + $0x380] sm:$0xff]
    %v2248 = vld [vmem:[#allocation20 + $0x388] sm:$0xff]
    %v2249 = vld [vmem:[#allocation20 + $0x390] sm:$0xff]
    %v2250 = vld [vmem:[#allocation20 + $0x398] sm:$0xff]
    %v2251 = vld [vmem:[#allocation20 + $0x3a0] sm:$0xff]
    %v2252 = vld [vmem:[#allocation20 + $0x3a8] sm:$0xff]
    %v2253 = vld [vmem:[#allocation20 + $0x3b0] sm:$0xff]
    %v2254 = vld [vmem:[#allocation20 + $0x3b8] sm:$0xff]
    %v2255 = vld [vmem:[#allocation20 + $0x3c0] sm:$0xff]
    %v2256 = vld [vmem:[#allocation20 + $0x3c8] sm:$0xff]
    %v2257 = vld [vmem:[#allocation20 + $0x3d0] sm:$0xff]
    %v2258 = vld [vmem:[#allocation20 + $0x3d8] sm:$0xff]
    %v2259 = vld [vmem:[#allocation20 + $0x3e0] sm:$0xff]
    %v2260 = vld [vmem:[#allocation20 + $0x3e8] sm:$0xff]
    %v2261 = vld [vmem:[#allocation20 + $0x3f0] sm:$0xff]
    %v2262 = vld [vmem:[#allocation20 + $0x3f8] sm:$0xff]
    %v2263 = vld [vmem:[#allocation20 + $0x400] sm:$0xff]
    %v2264 = vld [vmem:[#allocation20 + $0x408] sm:$0xff]
    %v2265 = vld [vmem:[#allocation20 + $0x410] sm:$0xff]
    %v2266 = vld [vmem:[#allocation20 + $0x418] sm:$0xff]
    %v2267 = vld [vmem:[#allocation20 + $0x420] sm:$0xff]
    %v2268 = vld [vmem:[#allocation20 + $0x428] sm:$0xff]
    %v2269 = vld [vmem:[#allocation20 + $0x430] sm:$0xff]
    %v2270 = vld [vmem:[#allocation20 + $0x438] sm:$0xff]
    %v2271 = vld [vmem:[#allocation20 + $0x440] sm:$0xff]
    %v2272 = vld [vmem:[#allocation20 + $0x448] sm:$0xff]
    %v2273 = vld [vmem:[#allocation20 + $0x450] sm:$0xff]
    %v2274 = vld [vmem:[#allocation20 + $0x458] sm:$0xff]
    %v2275 = vld [vmem:[#allocation20 + $0x460] sm:$0xff]
    %v2276 = vld [vmem:[#allocation20 + $0x468] sm:$0xff]
    %v2277 = vld [vmem:[#allocation20 + $0x470] sm:$0xff]
    %v2278 = vld [vmem:[#allocation20 + $0x478] sm:$0xff]
    %v2279 = vld [vmem:[#allocation20 + $0x480] sm:$0xff]
    %v2280 = vld [vmem:[#allocation20 + $0x488] sm:$0xff]
    %v2281 = vld [vmem:[#allocation20 + $0x490] sm:$0xff]
    %v2282 = vld [vmem:[#allocation20 + $0x498] sm:$0xff]
    %v2283 = vld [vmem:[#allocation20 + $0x4a0] sm:$0xff]
    %v2284 = vld [vmem:[#allocation20 + $0x4a8] sm:$0xff]
    %v2285 = vld [vmem:[#allocation20 + $0x4b0] sm:$0xff]
    %v2286 = vld [vmem:[#allocation20 + $0x4b8] sm:$0xff]
    %v2287 = vld [vmem:[#allocation20 + $0x4c0] sm:$0xff]
    %v2288 = vld [vmem:[#allocation20 + $0x4c8] sm:$0xff]
    %v2289 = vld [vmem:[#allocation20 + $0x4d0] sm:$0xff]
    %v2290 = vld [vmem:[#allocation20 + $0x4d8] sm:$0xff]
    %v2291 = vld [vmem:[#allocation20 + $0x4e0] sm:$0xff]
    %v2292 = vld [vmem:[#allocation20 + $0x4e8] sm:$0xff]
    %v2293 = vld [vmem:[#allocation20 + $0x4f0] sm:$0xff]
    %v2294 = vld [vmem:[#allocation20 + $0x4f8] sm:$0xff]
    %v2295 = vld [vmem:[#allocation22] sm:$0x1f]
    %v2297 = vlaneseq
    %v2298 = vshrl.u32 %v2297, 7
    %v2299 = vsub.s32 0, %v2298
    %v2300 = vrot.slane %v2295, %v2299
    %v2301 = vlaneseq
    %v2302 = vshrl.u32 %v2301, 7
    %v2303 = vsub.s32 1, %v2302
    %v2304 = vrot.slane %v2295, %v2303
    %v2305 = vlaneseq
    %v2306 = vshrl.u32 %v2305, 7
    %v2307 = vsub.s32 2, %v2306
    %v2308 = vrot.slane %v2295, %v2307
    %v2309 = vlaneseq
    %v2310 = vshrl.u32 %v2309, 7
    %v2311 = vsub.s32 3, %v2310
    %v2312 = vrot.slane %v2295, %v2311
    %v2313 = vlaneseq
    %v2314 = vshrl.u32 %v2313, 7
    %v2315 = vsub.s32 4, %v2314
    %v2316 = vrot.slane %v2295, %v2315
    %2322 = vmatprep.subr.mxu0 %v2136
    %2323 = vmatpush1.msra.mxu0 %v2135
    %2324 = vmatprep.subr.mxu0 %v2141
    %2325 = vmatpush1.msra.mxu0 %v2140
    %2326 = vmatprep.subr.mxu0 %v2146
    %2327 = vmatpush1.msra.mxu0 %v2145
    %2328 = vmatprep.subr.mxu0 %v2151
    %2329 = vmatpush1.msra.mxu0 %v2150
    %2330 = vmatprep.subr.mxu0 %v2156
    %2331 = vmatpush1.msra.mxu0 %v2155
    %2332 = vmatprep.subr.mxu0 %v2161
    %2333 = vmatpush1.msra.mxu0 %v2160
    %2334 = vmatprep.subr.mxu0 %v2166
    %2335 = vmatpush1.msra.mxu0 %v2165
    %2336 = vmatprep.subr.mxu0 %v2171
    %2337 = vmatpush1.msra.mxu0 %v2170
    %2338 = vmatprep.subr.mxu0 %v2176
    %2339 = vmatpush1.msra.mxu0 %v2175
    %2340 = vmatprep.subr.mxu0 %v2181
    %2341 = vmatpush1.msra.mxu0 %v2180
    %2342 = vmatprep.subr.mxu0 %v2186
    %2343 = vmatpush1.msra.mxu0 %v2185
    %2344 = vmatprep.subr.mxu0 %v2191
    %2345 = vmatpush1.msra.mxu0 %v2190
    %2346 = vmatprep.subr.mxu0 %v2196
    %2347 = vmatpush1.msra.mxu0 %v2195
    %2348 = vmatprep.subr.mxu0 %v2201
    %2349 = vmatpush1.msra.mxu0 %v2200
    %2350 = vmatprep.subr.mxu0 %v2206
    %2351 = vmatpush1.msra.mxu0 %v2205
    %2352 = vmatprep.subr.mxu0 %v2211
    %2353 = vmatpush1.msra.mxu0 %v2210
    %2354 = vmatprep.subr.mxu0 %v2216
    %2355 = vmatpush1.msra.mxu0 %v2215
    %2356 = vmatprep.subr.mxu0 %v2221
    %2357 = vmatpush1.msra.mxu0 %v2220
    %2358 = vmatprep.subr.mxu0 %v2226
    %2359 = vmatpush1.msra.mxu0 %v2225
    %2360 = vmatprep.subr.mxu0 %v2231
    %2361 = vmatpush1.msra.mxu0 %v2230
    %2362 = vmatprep.subr.mxu0 %v2236
    %2363 = vmatpush1.msra.mxu0 %v2235
    %2364 = vmatprep.subr.mxu0 %v2241
    %2365 = vmatpush1.msra.mxu0 %v2240
    %2366 = vmatprep.subr.mxu0 %v2246
    %2367 = vmatpush1.msra.mxu0 %v2245
    %2368 = vmatprep.subr.mxu0 %v2251
    %2369 = vmatpush1.msra.mxu0 %v2250
    %2370 = vmatprep.subr.mxu0 %v2256
    %2371 = vmatpush1.msra.mxu0 %v2255
    %2372 = vmatprep.subr.mxu0 %v2261
    %2373 = vmatpush1.msra.mxu0 %v2260
    %2374 = vmatprep.subr.mxu0 %v2266
    %2375 = vmatpush1.msra.mxu0 %v2265
    %2376 = vmatprep.subr.mxu0 %v2271
    %2377 = vmatpush1.msra.mxu0 %v2270
    %2378 = vmatprep.subr.mxu0 %v2276
    %2379 = vmatpush1.msra.mxu0 %v2275
    %2380 = vmatprep.subr.mxu0 %v2281
    %2381 = vmatpush1.msra.mxu0 %v2280
    %2382 = vmatprep.subr.mxu0 %v2286
    %2383 = vmatpush1.msra.mxu0 %v2285
    %2384 = vmatprep.subr.mxu0 %v2291
    %2385 = vmatpush1.msra.mxu0 %v2290
    %2386 = vmatprep.mubr.f32.mxu0 %v2110
    %2387 = vmatmul.mubr.f32.gmra.mrb[0].mxu0 %v2109
    %v2388 = vpop.f32.mrb[0].mxu0
    %v2389 = vadd.f32 %v2300, %v2388
    %v2390 = vpop.f32.mrb[0].mxu0
    %v2391 = vadd.f32 %v2304, %v2390
    %2392 = vdwg.mxu0
    %2393 = vmatprep.subr.mxu0 %v2138
    %2394 = vmatpush1.msra.mxu0 %v2137
    %2395 = vmatprep.subr.mxu0 %v2143
    %2396 = vmatpush1.msra.mxu0 %v2142
    %2397 = vmatprep.subr.mxu0 %v2148
    %2398 = vmatpush1.msra.mxu0 %v2147
    %2399 = vmatprep.subr.mxu0 %v2153
    %2400 = vmatpush1.msra.mxu0 %v2152
    %2401 = vmatprep.subr.mxu0 %v2158
    %2402 = vmatpush1.msra.mxu0 %v2157
    %2403 = vmatprep.subr.mxu0 %v2163
    %2404 = vmatpush1.msra.mxu0 %v2162
    %2405 = vmatprep.subr.mxu0 %v2168
    %2406 = vmatpush1.msra.mxu0 %v2167
    %2407 = vmatprep.subr.mxu0 %v2173
    %2408 = vmatpush1.msra.mxu0 %v2172
    %2409 = vmatprep.subr.mxu0 %v2178
    %2410 = vmatpush1.msra.mxu0 %v2177
    %2411 = vmatprep.subr.mxu0 %v2183
    %2412 = vmatpush1.msra.mxu0 %v2182
    %2413 = vmatprep.subr.mxu0 %v2188
    %2414 = vmatpush1.msra.mxu0 %v2187
    %2415 = vmatprep.subr.mxu0 %v2193
    %2416 = vmatpush1.msra.mxu0 %v2192
    %2417 = vmatprep.subr.mxu0 %v2198
    %2418 = vmatpush1.msra.mxu0 %v2197
    %2419 = vmatprep.subr.mxu0 %v2203
    %2420 = vmatpush1.msra.mxu0 %v2202
    %2421 = vmatprep.subr.mxu0 %v2208
    %2422 = vmatpush1.msra.mxu0 %v2207
    %2423 = vmatprep.subr.mxu0 %v2213
    %2424 = vmatpush1.msra.mxu0 %v2212
    %2425 = vmatprep.subr.mxu0 %v2218
    %2426 = vmatpush1.msra.mxu0 %v2217
    %2427 = vmatprep.subr.mxu0 %v2223
    %2428 = vmatpush1.msra.mxu0 %v2222
    %2429 = vmatprep.subr.mxu0 %v2228
    %2430 = vmatpush1.msra.mxu0 %v2227
    %2431 = vmatprep.subr.mxu0 %v2233
    %2432 = vmatpush1.msra.mxu0 %v2232
    %2433 = vmatprep.subr.mxu0 %v2238
    %2434 = vmatpush1.msra.mxu0 %v2237
    %2435 = vmatprep.subr.mxu0 %v2243
    %2436 = vmatpush1.msra.mxu0 %v2242
    %2437 = vmatprep.subr.mxu0 %v2248
    %2438 = vmatpush1.msra.mxu0 %v2247
    %2439 = vmatprep.subr.mxu0 %v2253
    %2440 = vmatpush1.msra.mxu0 %v2252
    %2441 = vmatprep.subr.mxu0 %v2258
    %2442 = vmatpush1.msra.mxu0 %v2257
    %2443 = vmatprep.subr.mxu0 %v2263
    %2444 = vmatpush1.msra.mxu0 %v2262
    %2445 = vmatprep.subr.mxu0 %v2268
    %2446 = vmatpush1.msra.mxu0 %v2267
    %2447 = vmatprep.subr.mxu0 %v2273
    %2448 = vmatpush1.msra.mxu0 %v2272
    %2449 = vmatprep.subr.mxu0 %v2278
    %2450 = vmatpush1.msra.mxu0 %v2277
    %2451 = vmatprep.subr.mxu0 %v2283
    %2452 = vmatpush1.msra.mxu0 %v2282
    %2453 = vmatprep.subr.mxu0 %v2288
    %2454 = vmatpush1.msra.mxu0 %v2287
    %2455 = vmatprep.subr.mxu0 %v2293
    %2456 = vmatpush1.msra.mxu0 %v2292
    %2457 = vmatprep.mubr.f32.mxu0 %v2110
    %2458 = vmatmul.mubr.f32.gmra.mrb[0].mxu0 %v2109
    %v2459 = vpop.f32.mrb[0].mxu0
    %v2460 = vadd.f32 %v2308, %v2459
    %v2461 = vpop.f32.mrb[0].mxu0
    %v2462 = vadd.f32 %v2312, %v2461
    %2463 = vdwg.mxu0
    %2464 = vmatprep.subr.mxu0 0.0
    %2465 = vmatpush1.msra.mxu0 %v2139
    %2466 = vmatprep.subr.mxu0 0.0
    %2467 = vmatpush1.msra.mxu0 %v2144
    %2468 = vmatprep.subr.mxu0 0.0
    %2469 = vmatpush1.msra.mxu0 %v2149
    %2470 = vmatprep.subr.mxu0 0.0
    %2471 = vmatpush1.msra.mxu0 %v2154
    %2472 = vmatprep.subr.mxu0 0.0
    %2473 = vmatpush1.msra.mxu0 %v2159
    %2474 = vmatprep.subr.mxu0 0.0
    %2475 = vmatpush1.msra.mxu0 %v2164
    %2476 = vmatprep.subr.mxu0 0.0
    %2477 = vmatpush1.msra.mxu0 %v2169
    %2478 = vmatprep.subr.mxu0 0.0
    %2479 = vmatpush1.msra.mxu0 %v2174
    %2480 = vmatprep.subr.mxu0 0.0
    %2481 = vmatpush1.msra.mxu0 %v2179
    %2482 = vmatprep.subr.mxu0 0.0
    %2483 = vmatpush1.msra.mxu0 %v2184
    %2484 = vmatprep.subr.mxu0 0.0
    %2485 = vmatpush1.msra.mxu0 %v2189
    %2486 = vmatprep.subr.mxu0 0.0
    %2487 = vmatpush1.msra.mxu0 %v2194
    %2488 = vmatprep.subr.mxu0 0.0
    %2489 = vmatpush1.msra.mxu0 %v2199
    %2490 = vmatprep.subr.mxu0 0.0
    %2491 = vmatpush1.msra.mxu0 %v2204
    %2492 = vmatprep.subr.mxu0 0.0
    %2493 = vmatpush1.msra.mxu0 %v2209
    %2494 = vmatprep.subr.mxu0 0.0
    %2495 = vmatpush1.msra.mxu0 %v2214
    %2496 = vmatprep.subr.mxu0 0.0
    %2497 = vmatpush1.msra.mxu0 %v2219
    %2498 = vmatprep.subr.mxu0 0.0
    %2499 = vmatpush1.msra.mxu0 %v2224
    %2500 = vmatprep.subr.mxu0 0.0
    %2501 = vmatpush1.msra.mxu0 %v2229
    %2502 = vmatprep.subr.mxu0 0.0
    %2503 = vmatpush1.msra.mxu0 %v2234
    %2504 = vmatprep.subr.mxu0 0.0
    %2505 = vmatpush1.msra.mxu0 %v2239
    %2506 = vmatprep.subr.mxu0 0.0
    %2507 = vmatpush1.msra.mxu0 %v2244
    %2508 = vmatprep.subr.mxu0 0.0
    %2509 = vmatpush1.msra.mxu0 %v2249
    %2510 = vmatprep.subr.mxu0 0.0
    %2511 = vmatpush1.msra.mxu0 %v2254
    %2512 = vmatprep.subr.mxu0 0.0
    %2513 = vmatpush1.msra.mxu0 %v2259
    %2514 = vmatprep.subr.mxu0 0.0
    %2515 = vmatpush1.msra.mxu0 %v2264
    %2516 = vmatprep.subr.mxu0 0.0
    %2517 = vmatpush1.msra.mxu0 %v2269
    %2518 = vmatprep.subr.mxu0 0.0
    %2519 = vmatpush1.msra.mxu0 %v2274
    %2520 = vmatprep.subr.mxu0 0.0
    %2521 = vmatpush1.msra.mxu0 %v2279
    %2522 = vmatprep.subr.mxu0 0.0
    %2523 = vmatpush1.msra.mxu0 %v2284
    %2524 = vmatprep.subr.mxu0 0.0
    %2525 = vmatpush1.msra.mxu0 %v2289
    %2526 = vmatprep.subr.mxu0 0.0
    %2527 = vmatpush1.msra.mxu0 %v2294
    %2528 = vmatprep.mubr.f32.mxu0 %v2110
    %2529 = vmatmul.mubr.f32.gmra.mrb[0].mxu0 %v2109
    %v2530 = vpop.f32.mrb[0].mxu0
    %v2531 = vadd.f32 %v2316, %v2530
    %v2532 = vpop.f32.mrb[0].mxu0
    %2533 = vdwg.mxu0
    %v2534 = vsel %vm402, %v2389, 0.0
    %2535 = vadd.xlane.f32.xlu0 %v2534
    %v2536 = vpop.xlane.xlu0 %2535
    %v2537 = vrcp.pop 128.0
    %v2538 = vmul.f32 %v2536, %v2537
    %v2539 = vsub.f32 %v2389, %v2538
    %v2540 = vmul.f32 %v2539, %v2539
    %v2541 = vsel %vm402, %v2540, 0.0
    %2542 = vadd.xlane.f32.xlu0 %v2541
    %v2543 = vpop.xlane.xlu0 %2542
    %v2544 = vmul.f32 %v2543, %v2537
    %v2545 = vadd.f32 %v2544, 1e-05
    %v2546 = vrsqrt.pop %v2545
    %v2547 = vmul.f32 %v2539, %v2546
    %v2548 = vmax.f32 %v2547, 0.0
    %v2549 = vsel %vm402, %v2391, 0.0
    %v2550 = vsel %vm402, %v2460, 0.0
    %v2551 = vadd.f32 %v2549, %v2550
    %v2552 = vsel %vm402, %v2462, 0.0
    %v2553 = vadd.f32 %v2551, %v2552
    %v2554 = vsel %vm402, %v2531, 0.0
    %v2555 = vadd.f32 %v2553, %v2554
    %2556 = vadd.xlane.f32.xlu0 %v2555
    %v2557 = vpop.xlane.xlu0 %2556
    %v2558 = vrcp.pop 512.0
    %v2559 = vmul.f32 %v2557, %v2558
    %v2560 = vsub.f32 %v2391, %v2559
    %v2561 = vsub.f32 %v2460, %v2559
    %v2562 = vsub.f32 %v2462, %v2559
    %v2563 = vsub.f32 %v2531, %v2559
    %v2564 = vmul.f32 %v2560, %v2560
    %v2565 = vmul.f32 %v2561, %v2561
    %v2566 = vmul.f32 %v2562, %v2562
    %v2567 = vmul.f32 %v2563, %v2563
    %v2568 = vsel %vm402, %v2564, 0.0
    %v2569 = vsel %vm402, %v2565, 0.0
    %v2570 = vadd.f32 %v2568, %v2569
    %v2571 = vsel %vm402, %v2566, 0.0
    %v2572 = vadd.f32 %v2570, %v2571
    %v2573 = vsel %vm402, %v2567, 0.0
    %v2574 = vadd.f32 %v2572, %v2573
    %2575 = vadd.xlane.f32.xlu0 %v2574
    %v2576 = vpop.xlane.xlu0 %2575
    %v2577 = vmul.f32 %v2576, %v2558
    %v2578 = vadd.f32 %v2577, 1e-05
    %v2579 = vrsqrt.pop %v2578
    %v2580 = vmul.f32 %v2560, %v2579
    %v2581 = vmul.f32 %v2561, %v2579
    %v2582 = vmul.f32 %v2562, %v2579
    %v2583 = vmul.f32 %v2563, %v2579
    %v2584 = vmax.f32 %v2580, 0.0
    %v2585 = vmax.f32 %v2581, 0.0
    %v2586 = vmax.f32 %v2582, 0.0
    %v2587 = vmax.f32 %v2583, 0.0
    %v2588 = vld [vmem:[#allocation23] sm:$0xff]
    %v2589 = vld [vmem:[#allocation23 + $0x8] sm:$0xff]
    %v2590 = vld [vmem:[#allocation23 + $0x10] sm:$0xff]
    %v2591 = vld [vmem:[#allocation23 + $0x18] sm:$0xff]
    %v2592 = vld [vmem:[#allocation23 + $0x20] sm:$0xff]
    %v2593 = vld [vmem:[#allocation23 + $0x28] sm:$0xff]
    %v2594 = vld [vmem:[#allocation23 + $0x30] sm:$0xff]
    %v2595 = vld [vmem:[#allocation23 + $0x38] sm:$0xff]
    %v2596 = vld [vmem:[#allocation23 + $0x40] sm:$0xff]
    %v2597 = vld [vmem:[#allocation23 + $0x48] sm:$0xff]
    %v2598 = vld [vmem:[#allocation23 + $0x50] sm:$0xff]
    %v2599 = vld [vmem:[#allocation23 + $0x58] sm:$0xff]
    %v2600 = vld [vmem:[#allocation23 + $0x60] sm:$0xff]
    %v2601 = vld [vmem:[#allocation23 + $0x68] sm:$0xff]
    %v2602 = vld [vmem:[#allocation23 + $0x70] sm:$0xff]
    %v2603 = vld [vmem:[#allocation23 + $0x78] sm:$0xff]
    %v2604 = vld [vmem:[#allocation25] sm:$0x1]
    %v2606 = vlaneseq
    %v2607 = vshrl.u32 %v2606, 7
    %v2608 = vsub.s32 0, %v2607
    %v2609 = vrot.slane %v2604, %v2608
    %2611 = vmatprep.subr.mxu0 0.0
    %2612 = vmatpush1.msra.mxu0 %v2588
    %2613 = vmatprep.subr.mxu0 0.0
    %2614 = vmatpush1.msra.mxu0 %v2589
    %2615 = vmatprep.subr.mxu0 0.0
    %2616 = vmatpush1.msra.mxu0 %v2590
    %2617 = vmatprep.subr.mxu0 0.0
    %2618 = vmatpush1.msra.mxu0 %v2591
    %2619 = vmatprep.subr.mxu0 0.0
    %2620 = vmatpush1.msra.mxu0 %v2592
    %2621 = vmatprep.subr.mxu0 0.0
    %2622 = vmatpush1.msra.mxu0 %v2593
    %2623 = vmatprep.subr.mxu0 0.0
    %2624 = vmatpush1.msra.mxu0 %v2594
    %2625 = vmatprep.subr.mxu0 0.0
    %2626 = vmatpush1.msra.mxu0 %v2595
    %2627 = vmatprep.subr.mxu0 0.0
    %2628 = vmatpush1.msra.mxu0 %v2596
    %2629 = vmatprep.subr.mxu0 0.0
    %2630 = vmatpush1.msra.mxu0 %v2597
    %2631 = vmatprep.subr.mxu0 0.0
    %2632 = vmatpush1.msra.mxu0 %v2598
    %2633 = vmatprep.subr.mxu0 0.0
    %2634 = vmatpush1.msra.mxu0 %v2599
    %2635 = vmatprep.subr.mxu0 0.0
    %2636 = vmatpush1.msra.mxu0 %v2600
    %2637 = vmatprep.subr.mxu0 0.0
    %2638 = vmatpush1.msra.mxu0 %v2601
    %2639 = vmatprep.subr.mxu0 0.0
    %2640 = vmatpush1.msra.mxu0 %v2602
    %2641 = vmatprep.subr.mxu0 0.0
    %2642 = vmatpush1.msra.mxu0 %v2603
    %2643 = vmatprep.subr.mxu0 0.0
    %2644 = vmatpush1.msra.mxu0 0.0
    %2645 = vmatprep.subr.mxu0 0.0
    %2646 = vmatpush1.msra.mxu0 0.0
    %2647 = vmatprep.subr.mxu0 0.0
    %2648 = vmatpush1.msra.mxu0 0.0
    %2649 = vmatprep.subr.mxu0 0.0
    %2650 = vmatpush1.msra.mxu0 0.0
    %2651 = vmatprep.subr.mxu0 0.0
    %2652 = vmatpush1.msra.mxu0 0.0
    %2653 = vmatprep.subr.mxu0 0.0
    %2654 = vmatpush1.msra.mxu0 0.0
    %2655 = vmatprep.subr.mxu0 0.0
    %2656 = vmatpush1.msra.mxu0 0.0
    %2657 = vmatprep.subr.mxu0 0.0
    %2658 = vmatpush1.msra.mxu0 0.0
    %2659 = vmatprep.subr.mxu0 0.0
    %2660 = vmatpush1.msra.mxu0 0.0
    %2661 = vmatprep.subr.mxu0 0.0
    %2662 = vmatpush1.msra.mxu0 0.0
    %2663 = vmatprep.subr.mxu0 0.0
    %2664 = vmatpush1.msra.mxu0 0.0
    %2665 = vmatprep.subr.mxu0 0.0
    %2666 = vmatpush1.msra.mxu0 0.0
    %2667 = vmatprep.subr.mxu0 0.0
    %2668 = vmatpush1.msra.mxu0 0.0
    %2669 = vmatprep.subr.mxu0 0.0
    %2670 = vmatpush1.msra.mxu0 0.0
    %2671 = vmatprep.subr.mxu0 0.0
    %2672 = vmatpush1.msra.mxu0 0.0
    %2673 = vmatprep.subr.mxu0 0.0
    %2674 = vmatpush1.msra.mxu0 0.0
    %2675 = vmatprep.mubr.f32.mxu0 0.0
    %2676 = vmatmul.mubr.f32.gmra.mrb[0].mxu0 %v2548
    %v2677 = vpop.f32.mrb[0].mxu0
    %v2678 = vadd.f32 %v2609, %v2677
    %v2679 = vpop.f32.mrb[0].mxu0
    %2680 = vdwg.mxu0
    %v2681 = vlaneseq
    %v2682 = vand.u32 %v2681, 127
    %vm2683 = vcmp.lt.s32.totalorder %v2682, 15
    %v2684 = vsel %vm2683, %v2678, -1e+30
    %v2685 = vsel %vm402, %v2684, -inf
    %2686 = vmax.xlane.f32.xlu0 %v2685
    %v2687 = vpop.xlane.xlu0 %2686
    %v2688 = vsub.f32 %v2684, %v2687
    %v2689 = vmul.f32 %v2688, 1.442695
    %v2690 = vpow.pop %v2689
    %v2691 = vsel %vm402, %v2690, 0.0
    %2692 = vadd.xlane.f32.xlu0 %v2691
    %v2693 = vpop.xlane.xlu0 %2692
    %v2694 = vrcp.pop %v2693
    %v2695 = vmul.f32 %v2690, %v2694
    %2696 = vst [vmem:[#allocation29] sm:$0x3] %v2695
    %v2697 = vlog2.pop %v2693
    %v2698 = vmul.f32 %v2697, 0.6931472
    %v2699 = vsub.f32 %v2688, %v2698
    %2700 = vst [vmem:[#allocation30] sm:$0x3] %v2699
    %v2701 = vld [vmem:[#allocation26] sm:$0xff]
    %v2702 = vld [vmem:[#allocation26 + $0x8] sm:$0xff]
    %v2703 = vld [vmem:[#allocation26 + $0x10] sm:$0xff]
    %v2704 = vld [vmem:[#allocation26 + $0x18] sm:$0xff]
    %v2705 = vld [vmem:[#allocation26 + $0x20] sm:$0xff]
    %v2706 = vld [vmem:[#allocation26 + $0x28] sm:$0xff]
    %v2707 = vld [vmem:[#allocation26 + $0x30] sm:$0xff]
    %v2708 = vld [vmem:[#allocation26 + $0x38] sm:$0xff]
    %v2709 = vld [vmem:[#allocation26 + $0x40] sm:$0xff]
    %v2710 = vld [vmem:[#allocation26 + $0x48] sm:$0xff]
    %v2711 = vld [vmem:[#allocation26 + $0x50] sm:$0xff]
    %v2712 = vld [vmem:[#allocation26 + $0x58] sm:$0xff]
    %v2713 = vld [vmem:[#allocation26 + $0x60] sm:$0xff]
    %v2714 = vld [vmem:[#allocation26 + $0x68] sm:$0xff]
    %v2715 = vld [vmem:[#allocation26 + $0x70] sm:$0xff]
    %v2716 = vld [vmem:[#allocation26 + $0x78] sm:$0xff]
    %v2717 = vld [vmem:[#allocation26 + $0x80] sm:$0xff]
    %v2718 = vld [vmem:[#allocation26 + $0x88] sm:$0xff]
    %v2719 = vld [vmem:[#allocation26 + $0x90] sm:$0xff]
    %v2720 = vld [vmem:[#allocation26 + $0x98] sm:$0xff]
    %v2721 = vld [vmem:[#allocation26 + $0xa0] sm:$0xff]
    %v2722 = vld [vmem:[#allocation26 + $0xa8] sm:$0xff]
    %v2723 = vld [vmem:[#allocation26 + $0xb0] sm:$0xff]
    %v2724 = vld [vmem:[#allocation26 + $0xb8] sm:$0xff]
    %v2725 = vld [vmem:[#allocation26 + $0xc0] sm:$0xff]
    %v2726 = vld [vmem:[#allocation26 + $0xc8] sm:$0xff]
    %v2727 = vld [vmem:[#allocation26 + $0xd0] sm:$0xff]
    %v2728 = vld [vmem:[#allocation26 + $0xd8] sm:$0xff]
    %v2729 = vld [vmem:[#allocation26 + $0xe0] sm:$0xff]
    %v2730 = vld [vmem:[#allocation26 + $0xe8] sm:$0xff]
    %v2731 = vld [vmem:[#allocation26 + $0xf0] sm:$0xff]
    %v2732 = vld [vmem:[#allocation26 + $0xf8] sm:$0xff]
    %v2733 = vld [vmem:[#allocation26 + $0x100] sm:$0xff]
    %v2734 = vld [vmem:[#allocation26 + $0x108] sm:$0xff]
    %v2735 = vld [vmem:[#allocation26 + $0x110] sm:$0xff]
    %v2736 = vld [vmem:[#allocation26 + $0x118] sm:$0xff]
    %v2737 = vld [vmem:[#allocation26 + $0x120] sm:$0xff]
    %v2738 = vld [vmem:[#allocation26 + $0x128] sm:$0xff]
    %v2739 = vld [vmem:[#allocation26 + $0x130] sm:$0xff]
    %v2740 = vld [vmem:[#allocation26 + $0x138] sm:$0xff]
    %v2741 = vld [vmem:[#allocation26 + $0x140] sm:$0xff]
    %v2742 = vld [vmem:[#allocation26 + $0x148] sm:$0xff]
    %v2743 = vld [vmem:[#allocation26 + $0x150] sm:$0xff]
    %v2744 = vld [vmem:[#allocation26 + $0x158] sm:$0xff]
    %v2745 = vld [vmem:[#allocation26 + $0x160] sm:$0xff]
    %v2746 = vld [vmem:[#allocation26 + $0x168] sm:$0xff]
    %v2747 = vld [vmem:[#allocation26 + $0x170] sm:$0xff]
    %v2748 = vld [vmem:[#allocation26 + $0x178] sm:$0xff]
    %v2749 = vld [vmem:[#allocation26 + $0x180] sm:$0xff]
    %v2750 = vld [vmem:[#allocation26 + $0x188] sm:$0xff]
    %v2751 = vld [vmem:[#allocation26 + $0x190] sm:$0xff]
    %v2752 = vld [vmem:[#allocation26 + $0x198] sm:$0xff]
    %v2753 = vld [vmem:[#allocation26 + $0x1a0] sm:$0xff]
    %v2754 = vld [vmem:[#allocation26 + $0x1a8] sm:$0xff]
    %v2755 = vld [vmem:[#allocation26 + $0x1b0] sm:$0xff]
    %v2756 = vld [vmem:[#allocation26 + $0x1b8] sm:$0xff]
    %v2757 = vld [vmem:[#allocation26 + $0x1c0] sm:$0xff]
    %v2758 = vld [vmem:[#allocation26 + $0x1c8] sm:$0xff]
    %v2759 = vld [vmem:[#allocation26 + $0x1d0] sm:$0xff]
    %v2760 = vld [vmem:[#allocation26 + $0x1d8] sm:$0xff]
    %v2761 = vld [vmem:[#allocation26 + $0x1e0] sm:$0xff]
    %v2762 = vld [vmem:[#allocation26 + $0x1e8] sm:$0xff]
    %v2763 = vld [vmem:[#allocation26 + $0x1f0] sm:$0xff]
    %v2764 = vld [vmem:[#allocation26 + $0x1f8] sm:$0xff]
    %v2765 = vld [vmem:[#allocation28] sm:$0x1]
    %v2767 = vlaneseq
    %v2768 = vshrl.u32 %v2767, 7
    %v2769 = vsub.s32 0, %v2768
    %v2770 = vrot.slane %v2765, %v2769
    %2772 = vmatprep.subr.mxu0 0.0
    %2773 = vmatpush1.msra.mxu0 %v2701
    %2774 = vmatprep.subr.mxu0 0.0
    %2775 = vmatpush1.msra.mxu0 %v2702
    %2776 = vmatprep.subr.mxu0 0.0
    %2777 = vmatpush1.msra.mxu0 %v2703
    %2778 = vmatprep.subr.mxu0 0.0
    %2779 = vmatpush1.msra.mxu0 %v2704
    %2780 = vmatprep.subr.mxu0 0.0
    %2781 = vmatpush1.msra.mxu0 %v2705
    %2782 = vmatprep.subr.mxu0 0.0
    %2783 = vmatpush1.msra.mxu0 %v2706
    %2784 = vmatprep.subr.mxu0 0.0
    %2785 = vmatpush1.msra.mxu0 %v2707
    %2786 = vmatprep.subr.mxu0 0.0
    %2787 = vmatpush1.msra.mxu0 %v2708
    %2788 = vmatprep.subr.mxu0 0.0
    %2789 = vmatpush1.msra.mxu0 %v2709
    %2790 = vmatprep.subr.mxu0 0.0
    %2791 = vmatpush1.msra.mxu0 %v2710
    %2792 = vmatprep.subr.mxu0 0.0
    %2793 = vmatpush1.msra.mxu0 %v2711
    %2794 = vmatprep.subr.mxu0 0.0
    %2795 = vmatpush1.msra.mxu0 %v2712
    %2796 = vmatprep.subr.mxu0 0.0
    %2797 = vmatpush1.msra.mxu0 %v2713
    %2798 = vmatprep.subr.mxu0 0.0
    %2799 = vmatpush1.msra.mxu0 %v2714
    %2800 = vmatprep.subr.mxu0 0.0
    %2801 = vmatpush1.msra.mxu0 %v2715
    %2802 = vmatprep.subr.mxu0 0.0
    %2803 = vmatpush1.msra.mxu0 %v2716
    %2804 = vmatprep.subr.mxu0 0.0
    %2805 = vmatpush1.msra.mxu0 %v2717
    %2806 = vmatprep.subr.mxu0 0.0
    %2807 = vmatpush1.msra.mxu0 %v2718
    %2808 = vmatprep.subr.mxu0 0.0
    %2809 = vmatpush1.msra.mxu0 %v2719
    %2810 = vmatprep.subr.mxu0 0.0
    %2811 = vmatpush1.msra.mxu0 %v2720
    %2812 = vmatprep.subr.mxu0 0.0
    %2813 = vmatpush1.msra.mxu0 %v2721
    %2814 = vmatprep.subr.mxu0 0.0
    %2815 = vmatpush1.msra.mxu0 %v2722
    %2816 = vmatprep.subr.mxu0 0.0
    %2817 = vmatpush1.msra.mxu0 %v2723
    %2818 = vmatprep.subr.mxu0 0.0
    %2819 = vmatpush1.msra.mxu0 %v2724
    %2820 = vmatprep.subr.mxu0 0.0
    %2821 = vmatpush1.msra.mxu0 %v2725
    %2822 = vmatprep.subr.mxu0 0.0
    %2823 = vmatpush1.msra.mxu0 %v2726
    %2824 = vmatprep.subr.mxu0 0.0
    %2825 = vmatpush1.msra.mxu0 %v2727
    %2826 = vmatprep.subr.mxu0 0.0
    %2827 = vmatpush1.msra.mxu0 %v2728
    %2828 = vmatprep.subr.mxu0 0.0
    %2829 = vmatpush1.msra.mxu0 %v2729
    %2830 = vmatprep.subr.mxu0 0.0
    %2831 = vmatpush1.msra.mxu0 %v2730
    %2832 = vmatprep.subr.mxu0 0.0
    %2833 = vmatpush1.msra.mxu0 %v2731
    %2834 = vmatprep.subr.mxu0 0.0
    %2835 = vmatpush1.msra.mxu0 %v2732
    %2836 = vmatprep.mubr.f32.mxu0 %v2585
    %2837 = vmatmul.mubr.f32.gmra.mrb[0].mxu0 %v2584
    %v2838 = vpop.f32.mrb[0].mxu0
    %v2839 = vadd.f32 %v2770, %v2838
    %v2840 = vpop.f32.mrb[0].mxu0
    %2841 = vdwg.mxu0
    %2842 = vmatprep.subr.mxu0 0.0
    %2843 = vmatpush1.msra.mxu0 %v2733
    %2844 = vmatprep.subr.mxu0 0.0
    %2845 = vmatpush1.msra.mxu0 %v2734
    %2846 = vmatprep.subr.mxu0 0.0
    %2847 = vmatpush1.msra.mxu0 %v2735
    %2848 = vmatprep.subr.mxu0 0.0
    %2849 = vmatpush1.msra.mxu0 %v2736
    %2850 = vmatprep.subr.mxu0 0.0
    %2851 = vmatpush1.msra.mxu0 %v2737
    %2852 = vmatprep.subr.mxu0 0.0
    %2853 = vmatpush1.msra.mxu0 %v2738
    %2854 = vmatprep.subr.mxu0 0.0
    %2855 = vmatpush1.msra.mxu0 %v2739
    %2856 = vmatprep.subr.mxu0 0.0
    %2857 = vmatpush1.msra.mxu0 %v2740
    %2858 = vmatprep.subr.mxu0 0.0
    %2859 = vmatpush1.msra.mxu0 %v2741
    %2860 = vmatprep.subr.mxu0 0.0
    %2861 = vmatpush1.msra.mxu0 %v2742
    %2862 = vmatprep.subr.mxu0 0.0
    %2863 = vmatpush1.msra.mxu0 %v2743
    %2864 = vmatprep.subr.mxu0 0.0
    %2865 = vmatpush1.msra.mxu0 %v2744
    %2866 = vmatprep.subr.mxu0 0.0
    %2867 = vmatpush1.msra.mxu0 %v2745
    %2868 = vmatprep.subr.mxu0 0.0
    %2869 = vmatpush1.msra.mxu0 %v2746
    %2870 = vmatprep.subr.mxu0 0.0
    %2871 = vmatpush1.msra.mxu0 %v2747
    %2872 = vmatprep.subr.mxu0 0.0
    %2873 = vmatpush1.msra.mxu0 %v2748
    %2874 = vmatprep.subr.mxu0 0.0
    %2875 = vmatpush1.msra.mxu0 %v2749
    %2876 = vmatprep.subr.mxu0 0.0
    %2877 = vmatpush1.msra.mxu0 %v2750
    %2878 = vmatprep.subr.mxu0 0.0
    %2879 = vmatpush1.msra.mxu0 %v2751
    %2880 = vmatprep.subr.mxu0 0.0
    %2881 = vmatpush1.msra.mxu0 %v2752
    %2882 = vmatprep.subr.mxu0 0.0
    %2883 = vmatpush1.msra.mxu0 %v2753
    %2884 = vmatprep.subr.mxu0 0.0
    %2885 = vmatpush1.msra.mxu0 %v2754
    %2886 = vmatprep.subr.mxu0 0.0
    %2887 = vmatpush1.msra.mxu0 %v2755
    %2888 = vmatprep.subr.mxu0 0.0
    %2889 = vmatpush1.msra.mxu0 %v2756
    %2890 = vmatprep.subr.mxu0 0.0
    %2891 = vmatpush1.msra.mxu0 %v2757
    %2892 = vmatprep.subr.mxu0 0.0
    %2893 = vmatpush1.msra.mxu0 %v2758
    %2894 = vmatprep.subr.mxu0 0.0
    %2895 = vmatpush1.msra.mxu0 %v2759
    %2896 = vmatprep.subr.mxu0 0.0
    %2897 = vmatpush1.msra.mxu0 %v2760
    %2898 = vmatprep.subr.mxu0 0.0
    %2899 = vmatpush1.msra.mxu0 %v2761
    %2900 = vmatprep.subr.mxu0 0.0
    %2901 = vmatpush1.msra.mxu0 %v2762
    %2902 = vmatprep.subr.mxu0 0.0
    %2903 = vmatpush1.msra.mxu0 %v2763
    %2904 = vmatprep.subr.mxu0 0.0
    %2905 = vmatpush1.msra.mxu0 %v2764
    %2906 = vmatprep.mubr.f32.mxu0 %v2587
    %2907 = vmatmul.mubr.f32.gmra.mrb[0].mxu0 %v2586
    %v2908 = vpop.f32.mrb[0].mxu0
    %v2909 = vadd.f32 %v2839, %v2908
    %v2910 = vpop.f32.mrb[0].mxu0
    %2911 = vdwg.mxu0
    %2912 = vst [vmem:[#allocation32] sm:$0x3] %v2909
    // Predicated region
    $region138: #{tpu_custom_call.1} parent=1 // pred_check
      _
    $region139: #{tpu_custom_call.1} parent=1 // pred_check_branch
      %2914 = sbr.rel (0) target = $region141
    $region140: #{tpu_custom_call.1} parent=1 // pred_region
      %s2916 = ssub.s32 32, 32
      %2917 = vsyncadd [#allocation4], %s2916
      %s2919 = sshll.u32 [#allocation29], 4
      %s2920 = int_to_ptr.vmem [resolvable:$true] %s2919
      %2922 = dma.vmem_to_hbm [thread:$0]  %s2920, 32, %s17, [#allocation4]
    $region141: #{tpu_custom_call.1} parent=1 // pred_fallthru
      _
    // Predicated region
    $region142: #{tpu_custom_call.1} parent=1 // pred_check
      _
    $region143: #{tpu_custom_call.1} parent=1 // pred_check_branch
      %2924 = sbr.rel (0) target = $region145
    $region144: #{tpu_custom_call.1} parent=1 // pred_region
      %s2926 = ssub.s32 32, 32
      %2927 = vsyncadd [#allocation31], %s2926
      %s2929 = sshll.u32 [#allocation30], 4
      %s2930 = int_to_ptr.vmem [resolvable:$true] %s2929
      %2932 = dma.vmem_to_hbm [thread:$0]  %s2930, 32, %s18, [#allocation31]
    $region145: #{tpu_custom_call.1} parent=1 // pred_fallthru
      _
    // Predicated region
    $region146: #{tpu_custom_call.1} parent=1 // pred_check
      _
    $region147: #{tpu_custom_call.1} parent=1 // pred_check_branch
      %2934 = sbr.rel (0) target = $region149
    $region148: #{tpu_custom_call.1} parent=1 // pred_region
      %s2936 = ssub.s32 32, 32
      %2937 = vsyncadd [#allocation31], %s2936
      %s2939 = sshll.u32 [#allocation32], 4
      %s2940 = int_to_ptr.vmem [resolvable:$true] %s2939
      %2942 = dma.vmem_to_hbm [thread:$0]  %s2940, 32, %s19, [#allocation31]
    $region149: #{tpu_custom_call.1} parent=1 // pred_fallthru
      _
    // Predicated region
    $region150: #{tpu_custom_call.1} parent=1 // pred_check
      _
    $region151: #{tpu_custom_call.1} parent=1 // pred_check_branch
      %2944 = sbr.rel (0) target = $region153
    $region152: #{tpu_custom_call.1} parent=1 // pred_region
      %s2946 = ssub.s32 64, 64
      %2947 = vsyncadd [#allocation34], %s2946
      %s2949 = sshll.u32 [#allocation33], 4
      %s2950 = int_to_ptr.vmem [resolvable:$true] %s2949
      %2952 = dma.vmem_to_hbm [thread:$0]  %s2950, 64, %s20, [#allocation34]
    $region153: #{tpu_custom_call.1} parent=1 // pred_fallthru
      _
    // Predicated region
    $region154: #{tpu_custom_call.1} parent=1 // pred_check
      _
    $region155: #{tpu_custom_call.1} parent=1 // pred_check_branch
      %2954 = sbr.rel (0) target = $region157
    $region156: #{tpu_custom_call.1} parent=1 // pred_region
      %s2956 = ssub.s32 64, 64
      %2957 = vsyncadd [#allocation34], %s2956
      %s2959 = sshll.u32 [#allocation35], 4
      %s2960 = int_to_ptr.vmem [resolvable:$true] %s2959
      %2962 = dma.vmem_to_hbm [thread:$0]  %s2960, 64, %s21, [#allocation34]
    $region157: #{tpu_custom_call.1} parent=1 // pred_fallthru
      _
    // Predicated region
    $region158: #{tpu_custom_call.1} parent=1 // pred_check
      _
    $region159: #{tpu_custom_call.1} parent=1 // pred_check_branch
      %2964 = sbr.rel (0) target = $region161
    $region160: #{tpu_custom_call.1} parent=1 // pred_region
      %2965 = dma.done [#allocation4], 32
    $region161: #{tpu_custom_call.1} parent=1 // pred_fallthru
      _
    // Predicated region
    $region162: #{tpu_custom_call.1} parent=1 // pred_check
      _
    $region163: #{tpu_custom_call.1} parent=1 // pred_check_branch
      %2967 = sbr.rel (0) target = $region165
    $region164: #{tpu_custom_call.1} parent=1 // pred_region
      %2968 = dma.done [#allocation31], 32
    $region165: #{tpu_custom_call.1} parent=1 // pred_fallthru
      _
    // Predicated region
    $region166: #{tpu_custom_call.1} parent=1 // pred_check
      _
    $region167: #{tpu_custom_call.1} parent=1 // pred_check_branch
      %2970 = sbr.rel (0) target = $region169
    $region168: #{tpu_custom_call.1} parent=1 // pred_region
      %2971 = dma.done [#allocation31], 32
    $region169: #{tpu_custom_call.1} parent=1 // pred_fallthru
      _
    // Predicated region
    $region170: #{tpu_custom_call.1} parent=1 // pred_check
      _
    $region171: #{tpu_custom_call.1} parent=1 // pred_check_branch
      %2973 = sbr.rel (0) target = $region173
    $region172: #{tpu_custom_call.1} parent=1 // pred_region
      %2974 = dma.done [#allocation34], 64
    $region173: #{tpu_custom_call.1} parent=1 // pred_fallthru
      _
    // Predicated region
    $region174: #{tpu_custom_call.1} parent=1 // pred_check
      _
    $region175: #{tpu_custom_call.1} parent=1 // pred_check_branch
      %2976 = sbr.rel (0) target = $region177
    $region176: #{tpu_custom_call.1} parent=1 // pred_region
      %2977 = dma.done [#allocation34], 64
    $region177: #{tpu_custom_call.1} parent=1 // pred_fallthru
      _
    %2978 = vsyncpa [#allocation3], 1
    %2979 = vsyncpa [#allocation6], 1
    %2980 = vsyncpa [#allocation9], 1
    %2981 = vsyncpa [#allocation12], 1
    %2982 = vsyncpa [#allocation15], 1
    %2983 = vsyncpa [#allocation18], 1
    %2984 = vsyncpa [#allocation21], 1
    %2985 = vsyncpa [#allocation24], 1
    %2986 = vsyncpa [#allocation27], 1
    %2987 = vsyncpa [#allocation4], 1
    %2988 = vsyncpa [#allocation31], 1
    %2989 = vsyncpa [#allocation34], 1

</llo_original>
